<compile_context>
chip_gen: v6e
topology: v6e:2x2x1
jax: 0.10.0
libtpu: 0.0.40
codegen_flags: <defaults>
</compile_context>

<pallas_src>
import numpy as np
import jax
import jax.numpy as jnp
from jax.experimental import pallas as pl
from jax.experimental.pallas import tpu as pltpu

EPS = 1e-5
_REF_PREC = jax.lax.Precision.HIGHEST   # reference only


# ----------------------------- host-side helpers (glue) -----------------------------

def bilinear_matrix(n_in, n_out):
    """Interpolation matrix of nn.Upsample(scale_factor=2, mode='bilinear', align_corners=True)."""
    m = np.zeros((n_out, n_in), np.float32)
    if n_in == 1:
        m[:, 0] = 1.0
        return m
    scale = (n_in - 1) / (n_out - 1)
    for i in range(n_out):
        src = i * scale
        j0 = min(int(np.floor(src)), n_in - 1)
        j1 = min(j0 + 1, n_in - 1)
        f = src - j0
        m[i, j0] += 1.0 - f
        m[i, j1] += f
    return m


# ----------------------------- fused Pallas kernel + wrapper -----------------------------

def up_sample_forward(x1, x2, params):
    (w1, b1, g1, be1, w2, b2, g2, be2) = params
    N, C1, Hin, Win = x1.shape
    _, C2, H, W = x2.shape
    assert H == 2 * Hin and W == 2 * Win
    Cin = C1 + C2
    Cout = w1.shape[0]
    Cmax = max(Cin, Cout)

    # Spatial layout (lane dim): each image row is stored with one extra zero column
    # (Wp = W+1) so horizontal 3x3 taps never wrap; images are separated by >= Wp+1 zero
    # columns and image starts are 128-lane aligned.
    Wp = W + 1
    HWp = H * Wp
    pad_min = Wp + 1
    base = ((pad_min + 127) // 128) * 128               # leading zero slab (128-aligned)
    stride = ((HWp + pad_min + 127) // 128) * 128       # per-image stride (128-aligned)
    gap = stride - HWp                                  # inter-image zero slab (>= Wp+1)
    SPAN = (N - 1) * stride + HWp                       # columns covered by one tap slice
    L = base + N * stride                               # total padded-spatial length

    # ---- host-side constants / layout glue (all tiny, no transposes of activations) ----
    Mh = bilinear_matrix(Hin, H)
    Mw = bilinear_matrix(Win, W)
    Kr = np.kron(Mh, Mw).reshape(H, W, Hin * Win)               # bilinear resize weights
    Krp = np.zeros((H, Wp, Hin * Win), np.float32)
    Krp[:, :W, :] = Kr                                          # zero rows for the pad column
    krT = jnp.asarray(Krp.reshape(HWp, Hin * Win).T, jnp.bfloat16)   # (HinWin, H*Wp)

    valid_np = np.zeros((1, SPAN), np.float32)                  # 1 on real pixel columns
    for n in range(N):
        for h in range(H):
            s = n * stride + h * Wp
            valid_np[0, s:s + W] = 1.0
    valid_h = jnp.asarray(valid_np)

    x1_2d = x1.reshape(N * C1, Hin * Win).astype(jnp.bfloat16)            # (N*C1, HinWin)
    x2_p = jnp.pad(x2, ((0, 0), (0, 0), (0, 0), (0, Wp - W))
                   ).reshape(N, C2, HWp).astype(jnp.bfloat16)             # (N, C2, H*Wp)
    # conv weights (Cout, Cin, 3, 3) -> per-tap (9, Cout, Cin)
    w1t = jnp.transpose(w1, (2, 3, 0, 1)).reshape(9, Cout, Cin).astype(jnp.bfloat16)
    w2t = jnp.transpose(w2, (2, 3, 0, 1)).reshape(9, Cout, Cout).astype(jnp.bfloat16)
    # packed conv biases / BN gammas / BN betas as columns: (Cout, 6)
    prm = jnp.stack([b1, g1, be1, b2, g2, be2], axis=1).astype(jnp.float32)

    inv_cnt = 1.0 / float(N * H * W)

    def kernel(x1_ref, x2_ref, krT_ref, valid_ref, w1_ref, w2_ref, prm_ref,
               o_ref, xpad_ref):
        sdt = xpad_ref.dtype                                  # bf16 storage dtype

        # ---- zero ONLY the pad slabs; image blocks are fully overwritten below ----
        xpad_ref[:, 0:base] = jnp.zeros((Cmax, base), sdt)
        for n in range(N):
            s0 = base + n * stride + HWp
            xpad_ref[:, s0:s0 + gap] = jnp.zeros((Cmax, gap), sdt)

        valid = valid_ref[...]                                # (1, SPAN) f32

        # ---- bilinear 2x upsample of x1: ONE 2D matmul (N*C1, HinWin) @ (HinWin, H*Wp) ----
        x1_up = jnp.dot(x1_ref[...], krT_ref[...],
                        preferred_element_type=jnp.float32)   # (N*C1, H*Wp) f32

        # ---- channel concat written straight into the padded conv-input scratch ----
        for n in range(N):
            s = base + n * stride                             # 128-aligned image start
            xpad_ref[0:C1, s:s + HWp] = x1_up[n * C1:(n + 1) * C1, :].astype(sdt)
            xpad_ref[C1:Cin, s:s + HWp] = x2_ref[n]

        def conv3x3(cin, w_ref):
            # 9 accumulating 2D dots straight from the padded scratch (no im2col scratch);
            # zero pad columns/rows make every tap a plain static lane-shifted slice.
            acc = None
            for k in range(9):
                dy, dx = k // 3 - 1, k % 3 - 1
                st = base + dy * Wp + dx
                xk = xpad_ref[0:cin, st:st + SPAN]            # (cin, SPAN) bf16
                p = jnp.dot(w_ref[k], xk, preferred_element_type=jnp.float32)
                acc = p if acc is None else acc + p
            return acc                                        # (Cout, SPAN) f32

        def relu_bn(y, b, g, bt):
            # conv bias + ReLU (masked to the N*H*W valid pixels), then BatchNorm2d with
            # batch statistics (train-mode forward), biased variance, eps = 1e-5.
            y = jnp.maximum(y + b, 0.0) * valid
            mean = jnp.sum(y, axis=1, keepdims=True) * inv_cnt
            yc = (y - mean) * valid
            var = jnp.sum(yc * yc, axis=1, keepdims=True) * inv_cnt
            return yc * (g * jax.lax.rsqrt(var + EPS)) + bt   # (Cout, SPAN) f32

        # ---- conv1 -> ReLU -> BN1, written back (zero-masked) as conv2's padded input ----
        y = relu_bn(conv3x3(Cin, w1_ref),
                    prm_ref[:, 0:1], prm_ref[:, 1:2], prm_ref[:, 2:3])
        xpad_ref[0:Cout, base:base + SPAN] = (y * valid).astype(sdt)

        # ---- conv2 -> ReLU -> BN2 ----
        y = relu_bn(conv3x3(Cout, w2_ref),
                    prm_ref[:, 3:4], prm_ref[:, 4:5], prm_ref[:, 5:6])
        for n in range(N):
            s = n * stride                                    # multiple of 128
            o_ref[n] = y[:, s:s + HWp]                        # lane-dense (Cout, H*Wp) store

    out = pl.pallas_call(
        kernel,
        out_shape=jax.ShapeDtypeStruct((N, Cout, HWp), jnp.float32),
        grid=(1,),
        in_specs=[
            pl.BlockSpec((N * C1, Hin * Win), lambda i: (0, 0)),   # x1, flat (N*C1, HinWin)
            pl.BlockSpec((N, C2, HWp), lambda i: (0, 0, 0)),       # x2, row-padded per image
            pl.BlockSpec((Hin * Win, HWp), lambda i: (0, 0)),      # bilinear matrix^T (padded)
            pl.BlockSpec((1, SPAN), lambda i: (0, 0)),             # valid-pixel mask
            pl.BlockSpec((9, Cout, Cin), lambda i: (0, 0, 0)),     # conv1 per-tap weights
            pl.BlockSpec((9, Cout, Cout), lambda i: (0, 0, 0)),    # conv2 per-tap weights
            pl.BlockSpec((Cout, 6), lambda i: (0, 0)),             # packed bias/gamma/beta
        ],
        out_specs=pl.BlockSpec((N, Cout, HWp), lambda i: (0, 0, 0)),
        scratch_shapes=[pltpu.VMEM((Cmax, L), jnp.bfloat16)],      # padded conv input (bf16)
        compiler_params=pltpu.CompilerParams(
            dimension_semantics=("arbitrary",),
            vmem_limit_bytes=32 * 1024 * 1024),
    )(x1_2d, x2_p, krT, valid_h, w1t, w2t, prm)

    # strip the per-row pad column and recover NCHW (host glue)
    return out.reshape(N, Cout, H, Wp)[..., :W]


# ----------------------------- pure-JAX reference -----------------------------

def reference_forward(x1, x2, params):
    (w1, b1, g1, be1, w2, b2, g2, be2) = params
    N, C1, Hin, Win = x1.shape
    H, W = 2 * Hin, 2 * Win
    Mh = jnp.asarray(bilinear_matrix(Hin, H))
    Mw = jnp.asarray(bilinear_matrix(Win, W))
    x1u = jnp.einsum('hH,wW,ncHW->nchw', Mh, Mw, x1, precision=_REF_PREC)
    x = jnp.concatenate([x1u, x2], axis=1)

    def conv(v, w, b):
        y = jax.lax.conv_general_dilated(
            v, w, window_strides=(1, 1), padding='SAME',
            dimension_numbers=('NCHW', 'OIHW', 'NCHW'), precision=_REF_PREC)
        return y + b[None, :, None, None]

    def relu_bn(y, g, bt):
        y = jnp.maximum(y, 0.0)
        mean = jnp.mean(y, axis=(0, 2, 3), keepdims=True)
        var = jnp.mean((y - mean) ** 2, axis=(0, 2, 3), keepdims=True)
        return ((y - mean) * jax.lax.rsqrt(var + EPS) * g[None, :, None, None]
                + bt[None, :, None, None])

    y = relu_bn(conv(x, w1, b1), g1, be1)
    y = relu_bn(conv(y, w2, b2), g2, be2)
    return y


# ----------------------------- main -----------------------------

if __name__ == "__main__":
    key = jax.random.PRNGKey(0)
    N, C1, C2 = 2, 4, 4
    Hin = Win = 8
    H, W = 2 * Hin, 2 * Win
    Cin, Cout = C1 + C2, 4          # up_sample(in_channel=8, out_channel=4)

    ks = jax.random.split(key, 6)
    x1 = jax.random.normal(ks[0], (N, C1, Hin, Win), jnp.float32)   # low-res skip input
    x2 = jax.random.normal(ks[1], (N, C2, H, W), jnp.float32)       # high-res skip input

    # deterministic synthetic parameters (shapes from double_conv.__init__)
    w1 = 0.1 * jax.random.normal(ks[2], (Cout, Cin, 3, 3), jnp.float32)
    b1 = 0.1 * jax.random.normal(ks[3], (Cout,), jnp.float32)
    w2 = 0.1 * jax.random.normal(ks[4], (Cout, Cout, 3, 3), jnp.float32)
    b2 = 0.1 * jax.random.normal(ks[5], (Cout,), jnp.float32)
    g1 = jnp.ones((Cout,), jnp.float32); be1 = jnp.zeros((Cout,), jnp.float32)
    g2 = jnp.ones((Cout,), jnp.float32); be2 = jnp.zeros((Cout,), jnp.float32)
    params = (w1, b1, g1, be1, w2, b2, g2, be2)

    out = up_sample_forward(x1, x2, params)
    out = jax.block_until_ready(out)
    assert out.shape == (N, Cout, H, W), out.shape

    ref = reference_forward(x1, x2, params)
    err = float(jnp.max(jnp.abs(out - ref)))
    # kernel matmuls/activations use the bf16 MXU path (f32 accumulation); the reference is
    # full f32/HIGHEST, so allow a slightly looser tolerance.
    assert err < 5e-2, f"max abs err {err}"
    print("KERNEL_OK")
</pallas_src>

<mosaic_0001>
module attributes {stable_mosaic.version = 11 : i64} {
  func.func @kernel(%arg0: i32, %arg1: memref<8x64xbf16, #tpu.memory_space<vmem>>, %arg2: memref<2x4x272xbf16, #tpu.memory_space<vmem>>, %arg3: memref<64x272xbf16, #tpu.memory_space<vmem>>, %arg4: memref<1x656xf32, #tpu.memory_space<vmem>>, %arg5: memref<9x4x8xbf16, #tpu.memory_space<vmem>>, %arg6: memref<9x4x4xbf16, #tpu.memory_space<vmem>>, %arg7: memref<4x6xf32, #tpu.memory_space<vmem>>, %arg8: memref<2x4x272xf32, #tpu.memory_space<vmem>>, %arg9: memref<8x896xbf16, #tpu.memory_space<vmem>>) attributes {dimension_semantics = [#tpu.dimension_semantics<arbitrary>], iteration_bounds = array<i64: 1>, scalar_prefetch = 0 : i64, scratch_operands = 1 : i64, tpu.core_type = #tpu.core_type<tc>, window_params = [{pipeline_mode = #tpu.pipeline_mode<synchronous>, transform_indices = @transform_0, window_bounds = array<i64: 8, 64>}, {pipeline_mode = #tpu.pipeline_mode<synchronous>, transform_indices = @transform_1, window_bounds = array<i64: 2, 4, 272>}, {pipeline_mode = #tpu.pipeline_mode<synchronous>, transform_indices = @transform_2, window_bounds = array<i64: 64, 272>}, {pipeline_mode = #tpu.pipeline_mode<synchronous>, transform_indices = @transform_3, window_bounds = array<i64: 1, 656>}, {pipeline_mode = #tpu.pipeline_mode<synchronous>, transform_indices = @transform_4, window_bounds = array<i64: 9, 4, 8>}, {pipeline_mode = #tpu.pipeline_mode<synchronous>, transform_indices = @transform_5, window_bounds = array<i64: 9, 4, 4>}, {pipeline_mode = #tpu.pipeline_mode<synchronous>, transform_indices = @transform_6, window_bounds = array<i64: 4, 6>}, {pipeline_mode = #tpu.pipeline_mode<synchronous>, transform_indices = @transform_7, window_bounds = array<i64: 2, 4, 272>}]} {
    %cst = arith.constant 0.000000e+00 : bf16
    %0 = vector.broadcast %cst : bf16 to vector<8x128xbf16>
    %c0 = arith.constant 0 : index
    %c0_0 = arith.constant 0 : index
    %1 = vector.load %arg9[%c0, %c0_0] : memref<8x896xbf16, #tpu.memory_space<vmem>>, vector<8x128xbf16>
    tpu.vector_store %arg9[%c0, %c0_0], %0 {strides = array<i32>} : memref<8x896xbf16, #tpu.memory_space<vmem>>, vector<8x128xbf16>,
    %cst_1 = arith.constant 0.000000e+00 : bf16
    %2 = vector.broadcast %cst_1 : bf16 to vector<8x112xbf16>
    %c0_2 = arith.constant 0 : index
    %c400 = arith.constant 400 : index
    %3 = vector.load %arg9[%c0_2, %c400] : memref<8x896xbf16, #tpu.memory_space<vmem>>, vector<8x112xbf16>
    tpu.vector_store %arg9[%c0_2, %c400], %2 {strides = array<i32>} : memref<8x896xbf16, #tpu.memory_space<vmem>>, vector<8x112xbf16>,
    %cst_3 = arith.constant 0.000000e+00 : bf16
    %4 = vector.broadcast %cst_3 : bf16 to vector<8x112xbf16>
    %c0_4 = arith.constant 0 : index
    %c784 = arith.constant 784 : index
    %5 = vector.load %arg9[%c0_4, %c784] : memref<8x896xbf16, #tpu.memory_space<vmem>>, vector<8x112xbf16>
    tpu.vector_store %arg9[%c0_4, %c784], %4 {strides = array<i32>} : memref<8x896xbf16, #tpu.memory_space<vmem>>, vector<8x112xbf16>,
    %c0_5 = arith.constant 0 : index
    %c0_6 = arith.constant 0 : index
    %6 = vector.load %arg4[%c0_5, %c0_6] : memref<1x656xf32, #tpu.memory_space<vmem>>, vector<1x656xf32>
    %c0_7 = arith.constant 0 : index
    %c0_8 = arith.constant 0 : index
    %7 = vector.load %arg1[%c0_7, %c0_8] : memref<8x64xbf16, #tpu.memory_space<vmem>>, vector<8x64xbf16>
    %c0_9 = arith.constant 0 : index
    %c0_10 = arith.constant 0 : index
    %8 = vector.load %arg3[%c0_9, %c0_10] : memref<64x272xbf16, #tpu.memory_space<vmem>>, vector<64x272xbf16>
    %cst_11 = arith.constant dense<0.000000e+00> : vector<8x272xf32>
    %9 = tpu.matmul %7, %8, %cst_11 {dimension_numbers = #tpu.dot_dimension_numbers<[1], [0], [0], [1], [0, 0, 1, 1], [], []>} : vector<8x64xbf16>, vector<64x272xbf16>, vector<8x272xf32> -> vector<8x272xf32>
    %10 = vector.extract_strided_slice %9 {offsets = [0, 0], sizes = [4, 272], strides = [1, 1]} : vector<8x272xf32> to vector<4x272xf32>
    %11 = arith.truncf %10 : vector<4x272xf32> to vector<4x272xbf16>
    %c0_12 = arith.constant 0 : index
    %c128 = arith.constant 128 : index
    %12 = vector.load %arg9[%c0_12, %c128] : memref<8x896xbf16, #tpu.memory_space<vmem>>, vector<4x272xbf16>
    tpu.vector_store %arg9[%c0_12, %c128], %11 {strides = array<i32>} : memref<8x896xbf16, #tpu.memory_space<vmem>>, vector<4x272xbf16>,
    %c0_13 = arith.constant 0 : index
    %c0_14 = arith.constant 0 : index
    %c0_15 = arith.constant 0 : index
    %13 = vector.load %arg2[%c0_13, %c0_14, %c0_15] : memref<2x4x272xbf16, #tpu.memory_space<vmem>>, vector<1x4x272xbf16>
    %14 = vector.shape_cast %13 : vector<1x4x272xbf16> to vector<4x272xbf16>
    %c4 = arith.constant 4 : index
    %c128_16 = arith.constant 128 : index
    %15 = vector.load %arg9[%c4, %c128_16] : memref<8x896xbf16, #tpu.memory_space<vmem>>, vector<4x272xbf16>
    tpu.vector_store %arg9[%c4, %c128_16], %14 {strides = array<i32>} : memref<8x896xbf16, #tpu.memory_space<vmem>>, vector<4x272xbf16>,
    %16 = vector.extract_strided_slice %9 {offsets = [4, 0], sizes = [4, 272], strides = [1, 1]} : vector<8x272xf32> to vector<4x272xf32>
    %17 = arith.truncf %16 : vector<4x272xf32> to vector<4x272xbf16>
    %c0_17 = arith.constant 0 : index
    %c512 = arith.constant 512 : index
    %18 = vector.load %arg9[%c0_17, %c512] : memref<8x896xbf16, #tpu.memory_space<vmem>>, vector<4x272xbf16>
    tpu.vector_store %arg9[%c0_17, %c512], %17 {strides = array<i32>} : memref<8x896xbf16, #tpu.memory_space<vmem>>, vector<4x272xbf16>,
    %c1 = arith.constant 1 : index
    %c0_18 = arith.constant 0 : index
    %c0_19 = arith.constant 0 : index
    %19 = vector.load %arg2[%c1, %c0_18, %c0_19] : memref<2x4x272xbf16, #tpu.memory_space<vmem>>, vector<1x4x272xbf16>
    %20 = vector.shape_cast %19 : vector<1x4x272xbf16> to vector<4x272xbf16>
    %c4_20 = arith.constant 4 : index
    %c512_21 = arith.constant 512 : index
    %21 = vector.load %arg9[%c4_20, %c512_21] : memref<8x896xbf16, #tpu.memory_space<vmem>>, vector<4x272xbf16>
    tpu.vector_store %arg9[%c4_20, %c512_21], %20 {strides = array<i32>} : memref<8x896xbf16, #tpu.memory_space<vmem>>, vector<4x272xbf16>,
    %c0_22 = arith.constant 0 : index
    %c110 = arith.constant 110 : index
    %22 = vector.load %arg9[%c0_22, %c110] : memref<8x896xbf16, #tpu.memory_space<vmem>>, vector<8x656xbf16>
    %c0_23 = arith.constant 0 : index
    %c0_24 = arith.constant 0 : index
    %c0_25 = arith.constant 0 : index
    %23 = vector.load %arg5[%c0_23, %c0_24, %c0_25] : memref<9x4x8xbf16, #tpu.memory_space<vmem>>, vector<1x4x8xbf16>
    %24 = vector.shape_cast %23 : vector<1x4x8xbf16> to vector<4x8xbf16>
    %cst_26 = arith.constant dense<0.000000e+00> : vector<4x656xf32>
    %25 = tpu.matmul %24, %22, %cst_26 {dimension_numbers = #tpu.dot_dimension_numbers<[1], [0], [0], [1], [0, 0, 1, 1], [], []>} : vector<4x8xbf16>, vector<8x656xbf16>, vector<4x656xf32> -> vector<4x656xf32>
    %c0_27 = arith.constant 0 : index
    %c111 = arith.constant 111 : index
    %26 = vector.load %arg9[%c0_27, %c111] : memref<8x896xbf16, #tpu.memory_space<vmem>>, vector<8x656xbf16>
    %c1_28 = arith.constant 1 : index
    %c0_29 = arith.constant 0 : index
    %c0_30 = arith.constant 0 : index
    %27 = vector.load %arg5[%c1_28, %c0_29, %c0_30] : memref<9x4x8xbf16, #tpu.memory_space<vmem>>, vector<1x4x8xbf16>
    %28 = vector.shape_cast %27 : vector<1x4x8xbf16> to vector<4x8xbf16>
    %cst_31 = arith.constant dense<0.000000e+00> : vector<4x656xf32>
    %29 = tpu.matmul %28, %26, %cst_31 {dimension_numbers = #tpu.dot_dimension_numbers<[1], [0], [0], [1], [0, 0, 1, 1], [], []>} : vector<4x8xbf16>, vector<8x656xbf16>, vector<4x656xf32> -> vector<4x656xf32>
    %30 = arith.addf %25, %29 : vector<4x656xf32>
    %c0_32 = arith.constant 0 : index
    %c112 = arith.constant 112 : index
    %31 = vector.load %arg9[%c0_32, %c112] : memref<8x896xbf16, #tpu.memory_space<vmem>>, vector<8x656xbf16>
    %c2 = arith.constant 2 : index
    %c0_33 = arith.constant 0 : index
    %c0_34 = arith.constant 0 : index
    %32 = vector.load %arg5[%c2, %c0_33, %c0_34] : memref<9x4x8xbf16, #tpu.memory_space<vmem>>, vector<1x4x8xbf16>
    %33 = vector.shape_cast %32 : vector<1x4x8xbf16> to vector<4x8xbf16>
    %cst_35 = arith.constant dense<0.000000e+00> : vector<4x656xf32>
    %34 = tpu.matmul %33, %31, %cst_35 {dimension_numbers = #tpu.dot_dimension_numbers<[1], [0], [0], [1], [0, 0, 1, 1], [], []>} : vector<4x8xbf16>, vector<8x656xbf16>, vector<4x656xf32> -> vector<4x656xf32>
    %35 = arith.addf %30, %34 : vector<4x656xf32>
    %c0_36 = arith.constant 0 : index
    %c127 = arith.constant 127 : index
    %36 = vector.load %arg9[%c0_36, %c127] : memref<8x896xbf16, #tpu.memory_space<vmem>>, vector<8x656xbf16>
    %c3 = arith.constant 3 : index
    %c0_37 = arith.constant 0 : index
    %c0_38 = arith.constant 0 : index
    %37 = vector.load %arg5[%c3, %c0_37, %c0_38] : memref<9x4x8xbf16, #tpu.memory_space<vmem>>, vector<1x4x8xbf16>
    %38 = vector.shape_cast %37 : vector<1x4x8xbf16> to vector<4x8xbf16>
    %cst_39 = arith.constant dense<0.000000e+00> : vector<4x656xf32>
    %39 = tpu.matmul %38, %36, %cst_39 {dimension_numbers = #tpu.dot_dimension_numbers<[1], [0], [0], [1], [0, 0, 1, 1], [], []>} : vector<4x8xbf16>, vector<8x656xbf16>, vector<4x656xf32> -> vector<4x656xf32>
    %40 = arith.addf %35, %39 : vector<4x656xf32>
    %c0_40 = arith.constant 0 : index
    %c128_41 = arith.constant 128 : index
    %41 = vector.load %arg9[%c0_40, %c128_41] : memref<8x896xbf16, #tpu.memory_space<vmem>>, vector<8x656xbf16>
    %c4_42 = arith.constant 4 : index
    %c0_43 = arith.constant 0 : index
    %c0_44 = arith.constant 0 : index
    %42 = vector.load %arg5[%c4_42, %c0_43, %c0_44] : memref<9x4x8xbf16, #tpu.memory_space<vmem>>, vector<1x4x8xbf16>
    %43 = vector.shape_cast %42 : vector<1x4x8xbf16> to vector<4x8xbf16>
    %cst_45 = arith.constant dense<0.000000e+00> : vector<4x656xf32>
    %44 = tpu.matmul %43, %41, %cst_45 {dimension_numbers = #tpu.dot_dimension_numbers<[1], [0], [0], [1], [0, 0, 1, 1], [], []>} : vector<4x8xbf16>, vector<8x656xbf16>, vector<4x656xf32> -> vector<4x656xf32>
    %45 = arith.addf %40, %44 : vector<4x656xf32>
    %c0_46 = arith.constant 0 : index
    %c129 = arith.constant 129 : index
    %46 = vector.load %arg9[%c0_46, %c129] : memref<8x896xbf16, #tpu.memory_space<vmem>>, vector<8x656xbf16>
    %c5 = arith.constant 5 : index
    %c0_47 = arith.constant 0 : index
    %c0_48 = arith.constant 0 : index
    %47 = vector.load %arg5[%c5, %c0_47, %c0_48] : memref<9x4x8xbf16, #tpu.memory_space<vmem>>, vector<1x4x8xbf16>
    %48 = vector.shape_cast %47 : vector<1x4x8xbf16> to vector<4x8xbf16>
    %cst_49 = arith.constant dense<0.000000e+00> : vector<4x656xf32>
    %49 = tpu.matmul %48, %46, %cst_49 {dimension_numbers = #tpu.dot_dimension_numbers<[1], [0], [0], [1], [0, 0, 1, 1], [], []>} : vector<4x8xbf16>, vector<8x656xbf16>, vector<4x656xf32> -> vector<4x656xf32>
    %50 = arith.addf %45, %49 : vector<4x656xf32>
    %c0_50 = arith.constant 0 : index
    %c144 = arith.constant 144 : index
    %51 = vector.load %arg9[%c0_50, %c144] : memref<8x896xbf16, #tpu.memory_space<vmem>>, vector<8x656xbf16>
    %c6 = arith.constant 6 : index
    %c0_51 = arith.constant 0 : index
    %c0_52 = arith.constant 0 : index
    %52 = vector.load %arg5[%c6, %c0_51, %c0_52] : memref<9x4x8xbf16, #tpu.memory_space<vmem>>, vector<1x4x8xbf16>
    %53 = vector.shape_cast %52 : vector<1x4x8xbf16> to vector<4x8xbf16>
    %cst_53 = arith.constant dense<0.000000e+00> : vector<4x656xf32>
    %54 = tpu.matmul %53, %51, %cst_53 {dimension_numbers = #tpu.dot_dimension_numbers<[1], [0], [0], [1], [0, 0, 1, 1], [], []>} : vector<4x8xbf16>, vector<8x656xbf16>, vector<4x656xf32> -> vector<4x656xf32>
    %55 = arith.addf %50, %54 : vector<4x656xf32>
    %c0_54 = arith.constant 0 : index
    %c145 = arith.constant 145 : index
    %56 = vector.load %arg9[%c0_54, %c145] : memref<8x896xbf16, #tpu.memory_space<vmem>>, vector<8x656xbf16>
    %c7 = arith.constant 7 : index
    %c0_55 = arith.constant 0 : index
    %c0_56 = arith.constant 0 : index
    %57 = vector.load %arg5[%c7, %c0_55, %c0_56] : memref<9x4x8xbf16, #tpu.memory_space<vmem>>, vector<1x4x8xbf16>
    %58 = vector.shape_cast %57 : vector<1x4x8xbf16> to vector<4x8xbf16>
    %cst_57 = arith.constant dense<0.000000e+00> : vector<4x656xf32>
    %59 = tpu.matmul %58, %56, %cst_57 {dimension_numbers = #tpu.dot_dimension_numbers<[1], [0], [0], [1], [0, 0, 1, 1], [], []>} : vector<4x8xbf16>, vector<8x656xbf16>, vector<4x656xf32> -> vector<4x656xf32>
    %60 = arith.addf %55, %59 : vector<4x656xf32>
    %c0_58 = arith.constant 0 : index
    %c146 = arith.constant 146 : index
    %61 = vector.load %arg9[%c0_58, %c146] : memref<8x896xbf16, #tpu.memory_space<vmem>>, vector<8x656xbf16>
    %c8 = arith.constant 8 : index
    %c0_59 = arith.constant 0 : index
    %c0_60 = arith.constant 0 : index
    %62 = vector.load %arg5[%c8, %c0_59, %c0_60] : memref<9x4x8xbf16, #tpu.memory_space<vmem>>, vector<1x4x8xbf16>
    %63 = vector.shape_cast %62 : vector<1x4x8xbf16> to vector<4x8xbf16>
    %cst_61 = arith.constant dense<0.000000e+00> : vector<4x656xf32>
    %64 = tpu.matmul %63, %61, %cst_61 {dimension_numbers = #tpu.dot_dimension_numbers<[1], [0], [0], [1], [0, 0, 1, 1], [], []>} : vector<4x8xbf16>, vector<8x656xbf16>, vector<4x656xf32> -> vector<4x656xf32>
    %65 = arith.addf %60, %64 : vector<4x656xf32>
    %c0_62 = arith.constant 0 : index
    %c0_63 = arith.constant 0 : index
    %66 = vector.load %arg7[%c0_62, %c0_63] : memref<4x6xf32, #tpu.memory_space<vmem>>, vector<4x1xf32>
    %c0_64 = arith.constant 0 : index
    %c1_65 = arith.constant 1 : index
    %67 = vector.load %arg7[%c0_64, %c1_65] : memref<4x6xf32, #tpu.memory_space<vmem>>, vector<4x1xf32>
    %c0_66 = arith.constant 0 : index
    %c2_67 = arith.constant 2 : index
    %68 = vector.load %arg7[%c0_66, %c2_67] : memref<4x6xf32, #tpu.memory_space<vmem>>, vector<4x1xf32>
    %69 = vector.broadcast %66 : vector<4x1xf32> to vector<4x656xf32>
    %70 = arith.addf %65, %69 : vector<4x656xf32>
    %cst_68 = arith.constant 0.000000e+00 : f32
    %71 = vector.broadcast %cst_68 : f32 to vector<4x656xf32>
    %72 = arith.maximumf %70, %71 : vector<4x656xf32>
    %73 = vector.broadcast %6 : vector<1x656xf32> to vector<4x656xf32>
    %74 = arith.mulf %72, %73 : vector<4x656xf32>
    %cst_69 = arith.constant dense<0.000000e+00> : vector<4xf32>
    %75 = vector.multi_reduction <add>, %74, %cst_69 [1] : vector<4x656xf32> to vector<4xf32>
    %76 = vector.shape_cast %75 : vector<4xf32> to vector<4x1xf32>
    %cst_70 = arith.constant 0.001953125 : f32
    %77 = vector.broadcast %cst_70 : f32 to vector<4x1xf32>
    %78 = arith.mulf %76, %77 : vector<4x1xf32>
    %79 = vector.broadcast %78 : vector<4x1xf32> to vector<4x656xf32>
    %80 = arith.subf %74, %79 : vector<4x656xf32>
    %81 = vector.broadcast %6 : vector<1x656xf32> to vector<4x656xf32>
    %82 = arith.mulf %80, %81 : vector<4x656xf32>
    %83 = arith.mulf %82, %82 : vector<4x656xf32>
    %cst_71 = arith.constant dense<0.000000e+00> : vector<4xf32>
    %84 = vector.multi_reduction <add>, %83, %cst_71 [1] : vector<4x656xf32> to vector<4xf32>
    %85 = vector.shape_cast %84 : vector<4xf32> to vector<4x1xf32>
    %cst_72 = arith.constant 0.001953125 : f32
    %86 = vector.broadcast %cst_72 : f32 to vector<4x1xf32>
    %87 = arith.mulf %85, %86 : vector<4x1xf32>
    %cst_73 = arith.constant 9.99999974E-6 : f32
    %88 = vector.broadcast %cst_73 : f32 to vector<4x1xf32>
    %89 = arith.addf %87, %88 : vector<4x1xf32>
    %90 = math.rsqrt %89 : vector<4x1xf32>
    %91 = arith.mulf %67, %90 : vector<4x1xf32>
    %92 = vector.broadcast %91 : vector<4x1xf32> to vector<4x656xf32>
    %93 = arith.mulf %82, %92 : vector<4x656xf32>
    %94 = vector.broadcast %68 : vector<4x1xf32> to vector<4x656xf32>
    %95 = arith.addf %93, %94 : vector<4x656xf32>
    %96 = vector.broadcast %6 : vector<1x656xf32> to vector<4x656xf32>
    %97 = arith.mulf %95, %96 : vector<4x656xf32>
    %98 = arith.truncf %97 : vector<4x656xf32> to vector<4x656xbf16>
    %c0_74 = arith.constant 0 : index
    %c128_75 = arith.constant 128 : index
    %99 = vector.load %arg9[%c0_74, %c128_75] : memref<8x896xbf16, #tpu.memory_space<vmem>>, vector<4x656xbf16>
    tpu.vector_store %arg9[%c0_74, %c128_75], %98 {strides = array<i32>} : memref<8x896xbf16, #tpu.memory_space<vmem>>, vector<4x656xbf16>,
    %c0_76 = arith.constant 0 : index
    %c110_77 = arith.constant 110 : index
    %100 = vector.load %arg9[%c0_76, %c110_77] : memref<8x896xbf16, #tpu.memory_space<vmem>>, vector<4x656xbf16>
    %c0_78 = arith.constant 0 : index
    %c0_79 = arith.constant 0 : index
    %c0_80 = arith.constant 0 : index
    %101 = vector.load %arg6[%c0_78, %c0_79, %c0_80] : memref<9x4x4xbf16, #tpu.memory_space<vmem>>, vector<1x4x4xbf16>
    %102 = vector.shape_cast %101 : vector<1x4x4xbf16> to vector<4x4xbf16>
    %cst_81 = arith.constant dense<0.000000e+00> : vector<4x656xf32>
    %103 = tpu.matmul %102, %100, %cst_81 {dimension_numbers = #tpu.dot_dimension_numbers<[1], [0], [0], [1], [0, 0, 1, 1], [], []>} : vector<4x4xbf16>, vector<4x656xbf16>, vector<4x656xf32> -> vector<4x656xf32>
    %c0_82 = arith.constant 0 : index
    %c111_83 = arith.constant 111 : index
    %104 = vector.load %arg9[%c0_82, %c111_83] : memref<8x896xbf16, #tpu.memory_space<vmem>>, vector<4x656xbf16>
    %c1_84 = arith.constant 1 : index
    %c0_85 = arith.constant 0 : index
    %c0_86 = arith.constant 0 : index
    %105 = vector.load %arg6[%c1_84, %c0_85, %c0_86] : memref<9x4x4xbf16, #tpu.memory_space<vmem>>, vector<1x4x4xbf16>
    %106 = vector.shape_cast %105 : vector<1x4x4xbf16> to vector<4x4xbf16>
    %cst_87 = arith.constant dense<0.000000e+00> : vector<4x656xf32>
    %107 = tpu.matmul %106, %104, %cst_87 {dimension_numbers = #tpu.dot_dimension_numbers<[1], [0], [0], [1], [0, 0, 1, 1], [], []>} : vector<4x4xbf16>, vector<4x656xbf16>, vector<4x656xf32> -> vector<4x656xf32>
    %108 = arith.addf %103, %107 : vector<4x656xf32>
    %c0_88 = arith.constant 0 : index
    %c112_89 = arith.constant 112 : index
    %109 = vector.load %arg9[%c0_88, %c112_89] : memref<8x896xbf16, #tpu.memory_space<vmem>>, vector<4x656xbf16>
    %c2_90 = arith.constant 2 : index
    %c0_91 = arith.constant 0 : index
    %c0_92 = arith.constant 0 : index
    %110 = vector.load %arg6[%c2_90, %c0_91, %c0_92] : memref<9x4x4xbf16, #tpu.memory_space<vmem>>, vector<1x4x4xbf16>
    %111 = vector.shape_cast %110 : vector<1x4x4xbf16> to vector<4x4xbf16>
    %cst_93 = arith.constant dense<0.000000e+00> : vector<4x656xf32>
    %112 = tpu.matmul %111, %109, %cst_93 {dimension_numbers = #tpu.dot_dimension_numbers<[1], [0], [0], [1], [0, 0, 1, 1], [], []>} : vector<4x4xbf16>, vector<4x656xbf16>, vector<4x656xf32> -> vector<4x656xf32>
    %113 = arith.addf %108, %112 : vector<4x656xf32>
    %c0_94 = arith.constant 0 : index
    %c127_95 = arith.constant 127 : index
    %114 = vector.load %arg9[%c0_94, %c127_95] : memref<8x896xbf16, #tpu.memory_space<vmem>>, vector<4x656xbf16>
    %c3_96 = arith.constant 3 : index
    %c0_97 = arith.constant 0 : index
    %c0_98 = arith.constant 0 : index
    %115 = vector.load %arg6[%c3_96, %c0_97, %c0_98] : memref<9x4x4xbf16, #tpu.memory_space<vmem>>, vector<1x4x4xbf16>
    %116 = vector.shape_cast %115 : vector<1x4x4xbf16> to vector<4x4xbf16>
    %cst_99 = arith.constant dense<0.000000e+00> : vector<4x656xf32>
    %117 = tpu.matmul %116, %114, %cst_99 {dimension_numbers = #tpu.dot_dimension_numbers<[1], [0], [0], [1], [0, 0, 1, 1], [], []>} : vector<4x4xbf16>, vector<4x656xbf16>, vector<4x656xf32> -> vector<4x656xf32>
    %118 = arith.addf %113, %117 : vector<4x656xf32>
    %c0_100 = arith.constant 0 : index
    %c128_101 = arith.constant 128 : index
    %119 = vector.load %arg9[%c0_100, %c128_101] : memref<8x896xbf16, #tpu.memory_space<vmem>>, vector<4x656xbf16>
    %c4_102 = arith.constant 4 : index
    %c0_103 = arith.constant 0 : index
    %c0_104 = arith.constant 0 : index
    %120 = vector.load %arg6[%c4_102, %c0_103, %c0_104] : memref<9x4x4xbf16, #tpu.memory_space<vmem>>, vector<1x4x4xbf16>
    %121 = vector.shape_cast %120 : vector<1x4x4xbf16> to vector<4x4xbf16>
    %cst_105 = arith.constant dense<0.000000e+00> : vector<4x656xf32>
    %122 = tpu.matmul %121, %119, %cst_105 {dimension_numbers = #tpu.dot_dimension_numbers<[1], [0], [0], [1], [0, 0, 1, 1], [], []>} : vector<4x4xbf16>, vector<4x656xbf16>, vector<4x656xf32> -> vector<4x656xf32>
    %123 = arith.addf %118, %122 : vector<4x656xf32>
    %c0_106 = arith.constant 0 : index
    %c129_107 = arith.constant 129 : index
    %124 = vector.load %arg9[%c0_106, %c129_107] : memref<8x896xbf16, #tpu.memory_space<vmem>>, vector<4x656xbf16>
    %c5_108 = arith.constant 5 : index
    %c0_109 = arith.constant 0 : index
    %c0_110 = arith.constant 0 : index
    %125 = vector.load %arg6[%c5_108, %c0_109, %c0_110] : memref<9x4x4xbf16, #tpu.memory_space<vmem>>, vector<1x4x4xbf16>
    %126 = vector.shape_cast %125 : vector<1x4x4xbf16> to vector<4x4xbf16>
    %cst_111 = arith.constant dense<0.000000e+00> : vector<4x656xf32>
    %127 = tpu.matmul %126, %124, %cst_111 {dimension_numbers = #tpu.dot_dimension_numbers<[1], [0], [0], [1], [0, 0, 1, 1], [], []>} : vector<4x4xbf16>, vector<4x656xbf16>, vector<4x656xf32> -> vector<4x656xf32>
    %128 = arith.addf %123, %127 : vector<4x656xf32>
    %c0_112 = arith.constant 0 : index
    %c144_113 = arith.constant 144 : index
    %129 = vector.load %arg9[%c0_112, %c144_113] : memref<8x896xbf16, #tpu.memory_space<vmem>>, vector<4x656xbf16>
    %c6_114 = arith.constant 6 : index
    %c0_115 = arith.constant 0 : index
    %c0_116 = arith.constant 0 : index
    %130 = vector.load %arg6[%c6_114, %c0_115, %c0_116] : memref<9x4x4xbf16, #tpu.memory_space<vmem>>, vector<1x4x4xbf16>
    %131 = vector.shape_cast %130 : vector<1x4x4xbf16> to vector<4x4xbf16>
    %cst_117 = arith.constant dense<0.000000e+00> : vector<4x656xf32>
    %132 = tpu.matmul %131, %129, %cst_117 {dimension_numbers = #tpu.dot_dimension_numbers<[1], [0], [0], [1], [0, 0, 1, 1], [], []>} : vector<4x4xbf16>, vector<4x656xbf16>, vector<4x656xf32> -> vector<4x656xf32>
    %133 = arith.addf %128, %132 : vector<4x656xf32>
    %c0_118 = arith.constant 0 : index
    %c145_119 = arith.constant 145 : index
    %134 = vector.load %arg9[%c0_118, %c145_119] : memref<8x896xbf16, #tpu.memory_space<vmem>>, vector<4x656xbf16>
    %c7_120 = arith.constant 7 : index
    %c0_121 = arith.constant 0 : index
    %c0_122 = arith.constant 0 : index
    %135 = vector.load %arg6[%c7_120, %c0_121, %c0_122] : memref<9x4x4xbf16, #tpu.memory_space<vmem>>, vector<1x4x4xbf16>
    %136 = vector.shape_cast %135 : vector<1x4x4xbf16> to vector<4x4xbf16>
    %cst_123 = arith.constant dense<0.000000e+00> : vector<4x656xf32>
    %137 = tpu.matmul %136, %134, %cst_123 {dimension_numbers = #tpu.dot_dimension_numbers<[1], [0], [0], [1], [0, 0, 1, 1], [], []>} : vector<4x4xbf16>, vector<4x656xbf16>, vector<4x656xf32> -> vector<4x656xf32>
    %138 = arith.addf %133, %137 : vector<4x656xf32>
    %c0_124 = arith.constant 0 : index
    %c146_125 = arith.constant 146 : index
    %139 = vector.load %arg9[%c0_124, %c146_125] : memref<8x896xbf16, #tpu.memory_space<vmem>>, vector<4x656xbf16>
    %c8_126 = arith.constant 8 : index
    %c0_127 = arith.constant 0 : index
    %c0_128 = arith.constant 0 : index
    %140 = vector.load %arg6[%c8_126, %c0_127, %c0_128] : memref<9x4x4xbf16, #tpu.memory_space<vmem>>, vector<1x4x4xbf16>
    %141 = vector.shape_cast %140 : vector<1x4x4xbf16> to vector<4x4xbf16>
    %cst_129 = arith.constant dense<0.000000e+00> : vector<4x656xf32>
    %142 = tpu.matmul %141, %139, %cst_129 {dimension_numbers = #tpu.dot_dimension_numbers<[1], [0], [0], [1], [0, 0, 1, 1], [], []>} : vector<4x4xbf16>, vector<4x656xbf16>, vector<4x656xf32> -> vector<4x656xf32>
    %143 = arith.addf %138, %142 : vector<4x656xf32>
    %c0_130 = arith.constant 0 : index
    %c3_131 = arith.constant 3 : index
    %144 = vector.load %arg7[%c0_130, %c3_131] : memref<4x6xf32, #tpu.memory_space<vmem>>, vector<4x1xf32>
    %c0_132 = arith.constant 0 : index
    %c4_133 = arith.constant 4 : index
    %145 = vector.load %arg7[%c0_132, %c4_133] : memref<4x6xf32, #tpu.memory_space<vmem>>, vector<4x1xf32>
    %c0_134 = arith.constant 0 : index
    %c5_135 = arith.constant 5 : index
    %146 = vector.load %arg7[%c0_134, %c5_135] : memref<4x6xf32, #tpu.memory_space<vmem>>, vector<4x1xf32>
    %147 = vector.broadcast %144 : vector<4x1xf32> to vector<4x656xf32>
    %148 = arith.addf %143, %147 : vector<4x656xf32>
    %cst_136 = arith.constant 0.000000e+00 : f32
    %149 = vector.broadcast %cst_136 : f32 to vector<4x656xf32>
    %150 = arith.maximumf %148, %149 : vector<4x656xf32>
    %151 = vector.broadcast %6 : vector<1x656xf32> to vector<4x656xf32>
    %152 = arith.mulf %150, %151 : vector<4x656xf32>
    %cst_137 = arith.constant dense<0.000000e+00> : vector<4xf32>
    %153 = vector.multi_reduction <add>, %152, %cst_137 [1] : vector<4x656xf32> to vector<4xf32>
    %154 = vector.shape_cast %153 : vector<4xf32> to vector<4x1xf32>
    %cst_138 = arith.constant 0.001953125 : f32
    %155 = vector.broadcast %cst_138 : f32 to vector<4x1xf32>
    %156 = arith.mulf %154, %155 : vector<4x1xf32>
    %157 = vector.broadcast %156 : vector<4x1xf32> to vector<4x656xf32>
    %158 = arith.subf %152, %157 : vector<4x656xf32>
    %159 = vector.broadcast %6 : vector<1x656xf32> to vector<4x656xf32>
    %160 = arith.mulf %158, %159 : vector<4x656xf32>
    %161 = arith.mulf %160, %160 : vector<4x656xf32>
    %cst_139 = arith.constant dense<0.000000e+00> : vector<4xf32>
    %162 = vector.multi_reduction <add>, %161, %cst_139 [1] : vector<4x656xf32> to vector<4xf32>
    %163 = vector.shape_cast %162 : vector<4xf32> to vector<4x1xf32>
    %cst_140 = arith.constant 0.001953125 : f32
    %164 = vector.broadcast %cst_140 : f32 to vector<4x1xf32>
    %165 = arith.mulf %163, %164 : vector<4x1xf32>
    %cst_141 = arith.constant 9.99999974E-6 : f32
    %166 = vector.broadcast %cst_141 : f32 to vector<4x1xf32>
    %167 = arith.addf %165, %166 : vector<4x1xf32>
    %168 = math.rsqrt %167 : vector<4x1xf32>
    %169 = arith.mulf %145, %168 : vector<4x1xf32>
    %170 = vector.broadcast %169 : vector<4x1xf32> to vector<4x656xf32>
    %171 = arith.mulf %160, %170 : vector<4x656xf32>
    %172 = vector.broadcast %146 : vector<4x1xf32> to vector<4x656xf32>
    %173 = arith.addf %171, %172 : vector<4x656xf32>
    %174 = vector.extract_strided_slice %173 {offsets = [0, 0], sizes = [4, 272], strides = [1, 1]} : vector<4x656xf32> to vector<4x272xf32>
    %c0_142 = arith.constant 0 : index
    %c0_143 = arith.constant 0 : index
    %c0_144 = arith.constant 0 : index
    %175 = vector.load %arg8[%c0_142, %c0_143, %c0_144] : memref<2x4x272xf32, #tpu.memory_space<vmem>>, vector<1x4x272xf32>
    %176 = vector.shape_cast %175 : vector<1x4x272xf32> to vector<4x272xf32>
    %177 = vector.shape_cast %174 : vector<4x272xf32> to vector<1x4x272xf32>
    tpu.vector_store %arg8[%c0_142, %c0_143, %c0_144], %177 {strides = array<i32>} : memref<2x4x272xf32, #tpu.memory_space<vmem>>, vector<1x4x272xf32>,
    %178 = vector.extract_strided_slice %173 {offsets = [0, 384], sizes = [4, 272], strides = [1, 1]} : vector<4x656xf32> to vector<4x272xf32>
    %c1_145 = arith.constant 1 : index
    %c0_146 = arith.constant 0 : index
    %c0_147 = arith.constant 0 : index
    %179 = vector.load %arg8[%c1_145, %c0_146, %c0_147] : memref<2x4x272xf32, #tpu.memory_space<vmem>>, vector<1x4x272xf32>
    %180 = vector.shape_cast %179 : vector<1x4x272xf32> to vector<4x272xf32>
    %181 = vector.shape_cast %178 : vector<4x272xf32> to vector<1x4x272xf32>
    tpu.vector_store %arg8[%c1_145, %c0_146, %c0_147], %181 {strides = array<i32>} : memref<2x4x272xf32, #tpu.memory_space<vmem>>, vector<1x4x272xf32>,
    return
  }
  func.func @transform_0(%arg0: i32) -> (i32, i32) {
    %c0_i32 = arith.constant 0 : i32
    %c0_i32_0 = arith.constant 0 : i32
    %c0_i32_1 = arith.constant 0 : i32
    return %c0_i32, %c0_i32_0 : i32, i32
  }
  func.func @transform_1(%arg0: i32) -> (i32, i32, i32) {
    %c0_i32 = arith.constant 0 : i32
    %c0_i32_0 = arith.constant 0 : i32
    %c0_i32_1 = arith.constant 0 : i32
    %c0_i32_2 = arith.constant 0 : i32
    return %c0_i32, %c0_i32_0, %c0_i32_1 : i32, i32, i32
  }
  func.func @transform_2(%arg0: i32) -> (i32, i32) {
    %c0_i32 = arith.constant 0 : i32
    %c0_i32_0 = arith.constant 0 : i32
    %c0_i32_1 = arith.constant 0 : i32
    return %c0_i32, %c0_i32_0 : i32, i32
  }
  func.func @transform_3(%arg0: i32) -> (i32, i32) {
    %c0_i32 = arith.constant 0 : i32
    %c0_i32_0 = arith.constant 0 : i32
    %c0_i32_1 = arith.constant 0 : i32
    return %c0_i32, %c0_i32_0 : i32, i32
  }
  func.func @transform_4(%arg0: i32) -> (i32, i32, i32) {
    %c0_i32 = arith.constant 0 : i32
    %c0_i32_0 = arith.constant 0 : i32
    %c0_i32_1 = arith.constant 0 : i32
    %c0_i32_2 = arith.constant 0 : i32
    return %c0_i32, %c0_i32_0, %c0_i32_1 : i32, i32, i32
  }
  func.func @transform_5(%arg0: i32) -> (i32, i32, i32) {
    %c0_i32 = arith.constant 0 : i32
    %c0_i32_0 = arith.constant 0 : i32
    %c0_i32_1 = arith.constant 0 : i32
    %c0_i32_2 = arith.constant 0 : i32
    return %c0_i32, %c0_i32_0, %c0_i32_1 : i32, i32, i32
  }
  func.func @transform_6(%arg0: i32) -> (i32, i32) {
    %c0_i32 = arith.constant 0 : i32
    %c0_i32_0 = arith.constant 0 : i32
    %c0_i32_1 = arith.constant 0 : i32
    return %c0_i32, %c0_i32_0 : i32, i32
  }
  func.func @transform_7(%arg0: i32) -> (i32, i32, i32) {
    %c0_i32 = arith.constant 0 : i32
    %c0_i32_0 = arith.constant 0 : i32
    %c0_i32_1 = arith.constant 0 : i32
    %c0_i32_2 = arith.constant 0 : i32
    return %c0_i32, %c0_i32_0, %c0_i32_1 : i32, i32, i32
  }
}

</mosaic_0001>

<llo_original>
// kernel: tpu_custom_call.1
$region0: #{tpu_custom_call.1}
  #allocation0 [shape = 'u32[]', space=smem, size = 0x4, offset = 0x4, fixed_abs, tag = 'smem constant byte address 0x4 - core index']
  #allocation1 [shape = 'u32[144,128]{1,0:T(1,128)}', space=vmem, size = 0x12000, scoped, tag = 'internal scratch']
  #allocation2 [shape = 'bf16[8,896]{1,0:T(8,128)(2,1)}', space=vmem, size = 0x3800, scoped, tag = 'scratch operand']
  %s0 = inlined_call_operand.vmem [shape: bf16[8,64], index: 0, kind: input, shape index: {}]
  %s1 = inlined_call_operand.vmem [shape: bf16[2,4,272], index: 1, kind: input, shape index: {}]
  %s2 = inlined_call_operand.hbm [shape: bf16[64,272], index: 2, kind: input, shape index: {}]
  %s3 = inlined_call_operand.vmem [shape: f32[1,656], index: 3, kind: input, shape index: {}]
  %s4 = inlined_call_operand.vmem [shape: bf16[9,4,8], index: 4, kind: input, shape index: {}]
  %s5 = inlined_call_operand.vmem [shape: bf16[9,4,4], index: 5, kind: input, shape index: {}]
  %s6 = inlined_call_operand.vmem [shape: f32[4,6], index: 6, kind: input, shape index: {}]
  %s7 = inlined_call_operand.hbm [shape: f32[2,4,272], index: 7, kind: output, shape index: {}]
  %s8 = sld [smem:[#allocation0]]
  $region42: #{tpu_custom_call.1} parent=0
    _
  %s10 = ssub.s32 1, %s8
  %s11 = scalar_select 0, %s10, %s8
  $region1: #{tpu_custom_call.1} parent=0
    #allocation3 [shape = 'u8[49152]{0}', space=vmem, size = 0xc000, scoped, tag = 'input window, operand 2, single buffered']
    #allocation4 [shape = 's32[1]{0}', space=sflag, size = 0x4, scoped, tag = 'scoped memory for tpu_custom_call.1']
    #allocation5 [shape = 's32[1]{0}', space=sflag, size = 0x4, scoped, tag = 'scoped memory for tpu_custom_call.1']
    #allocation6 [shape = 'u8[12288]{0}', space=vmem, size = 0x3000, scoped, tag = 'output window, operand 0, single buffered']
    %12 = vsyncpa [#allocation4], 0
    %13 = vsyncpa [#allocation5], 0
    // Predicated region
    $region2: #{tpu_custom_call.1} parent=1 // pred_check
      _
    $region3: #{tpu_custom_call.1} parent=1 // pred_check_branch
      %15 = sbr.rel (0) target = $region5
    $region4: #{tpu_custom_call.1} parent=1 // pred_region
      _
    $region5: #{tpu_custom_call.1} parent=1 // pred_fallthru
      _
    // Predicated region
    $region6: #{tpu_custom_call.1} parent=1 // pred_check
      _
    $region7: #{tpu_custom_call.1} parent=1 // pred_check_branch
      %17 = sbr.rel (0) target = $region9
    $region8: #{tpu_custom_call.1} parent=1 // pred_region
      _
    $region9: #{tpu_custom_call.1} parent=1 // pred_fallthru
      _
    // Predicated region
    $region10: #{tpu_custom_call.1} parent=1 // pred_check
      _
    $region11: #{tpu_custom_call.1} parent=1 // pred_check_branch
      %19 = sbr.rel (0) target = $region13
    $region12: #{tpu_custom_call.1} parent=1 // pred_region
      %s21 = ssub.s32 1536, 1536
      %22 = vsyncadd [#allocation4], %s21
      %s23 = sshll.u32 [#allocation3], 4
      %s24 = int_to_ptr.vmem [resolvable:$true] %s23
      %29 = dma.hbm_to_vmem [thread:$0]  %s2, 1536, %s24, [#allocation4], 192, 192, 12
    $region13: #{tpu_custom_call.1} parent=1 // pred_fallthru
      _
    // Predicated region
    $region14: #{tpu_custom_call.1} parent=1 // pred_check
      _
    $region15: #{tpu_custom_call.1} parent=1 // pred_check_branch
      %31 = sbr.rel (0) target = $region17
    $region16: #{tpu_custom_call.1} parent=1 // pred_region
      _
    $region17: #{tpu_custom_call.1} parent=1 // pred_fallthru
      _
    // Predicated region
    $region18: #{tpu_custom_call.1} parent=1 // pred_check
      _
    $region19: #{tpu_custom_call.1} parent=1 // pred_check_branch
      %33 = sbr.rel (0) target = $region21
    $region20: #{tpu_custom_call.1} parent=1 // pred_region
      _
    $region21: #{tpu_custom_call.1} parent=1 // pred_fallthru
      _
    // Predicated region
    $region22: #{tpu_custom_call.1} parent=1 // pred_check
      _
    $region23: #{tpu_custom_call.1} parent=1 // pred_check_branch
      %35 = sbr.rel (0) target = $region25
    $region24: #{tpu_custom_call.1} parent=1 // pred_region
      _
    $region25: #{tpu_custom_call.1} parent=1 // pred_fallthru
      _
    // Predicated region
    $region26: #{tpu_custom_call.1} parent=1 // pred_check
      _
    $region27: #{tpu_custom_call.1} parent=1 // pred_check_branch
      %37 = sbr.rel (0) target = $region29
    $region28: #{tpu_custom_call.1} parent=1 // pred_region
      _
    $region29: #{tpu_custom_call.1} parent=1 // pred_fallthru
      _
    // Predicated region
    $region30: #{tpu_custom_call.1} parent=1 // pred_check
      _
    $region31: #{tpu_custom_call.1} parent=1 // pred_check_branch
      %39 = sbr.rel (0) target = $region33
    $region32: #{tpu_custom_call.1} parent=1 // pred_region
      %40 = dma.done [#allocation4], 1536
    $region33: #{tpu_custom_call.1} parent=1 // pred_fallthru
      _
    %42 = vst [vmem:[#allocation2] sm:$0xf] 0
    %vm43 = vcmask 1043584
    %44 = vst.msk [vmem:[#allocation2 + $0xc] sm:$0xf] %vm43, 0
    %45 = vst.msk [vmem:[#allocation2 + $0x18] sm:$0xf] %vm43, 0
    %v46 = vld [vmem:[%s3] sm:$0x3f]
    %v47 = vld [vmem:[%s0] sm:$0xf]
    %v48 = vld [vmem:[#allocation3] sm:$0xff]
    %v49 = vld [vmem:[#allocation3 + $0x8] sm:$0xf]
    %v50 = vld [vmem:[#allocation3 + $0xc] sm:$0xff]
    %v51 = vld [vmem:[#allocation3 + $0x14] sm:$0xf]
    %v52 = vld [vmem:[#allocation3 + $0x18] sm:$0xff]
    %v53 = vld [vmem:[#allocation3 + $0x20] sm:$0xf]
    %v54 = vld [vmem:[#allocation3 + $0x24] sm:$0xff]
    %v55 = vld [vmem:[#allocation3 + $0x2c] sm:$0xf]
    %v56 = vld [vmem:[#allocation3 + $0x30] sm:$0xff]
    %v57 = vld [vmem:[#allocation3 + $0x38] sm:$0xf]
    %v58 = vld [vmem:[#allocation3 + $0x3c] sm:$0xff]
    %v59 = vld [vmem:[#allocation3 + $0x44] sm:$0xf]
    %v60 = vld [vmem:[#allocation3 + $0x48] sm:$0xff]
    %v61 = vld [vmem:[#allocation3 + $0x50] sm:$0xf]
    %v62 = vld [vmem:[#allocation3 + $0x54] sm:$0xff]
    %v63 = vld [vmem:[#allocation3 + $0x5c] sm:$0xf]
    %v80 = vunpack.c.l.b16 %v48
    %v81 = vunpack.c.h.b16 %v48
    %v82 = vunpack.c.l.b16 %v49
    %v83 = vunpack.c.l.b16 %v50
    %v84 = vunpack.c.h.b16 %v50
    %v85 = vunpack.c.l.b16 %v51
    %v86 = vunpack.c.l.b16 %v52
    %v87 = vunpack.c.h.b16 %v52
    %v88 = vunpack.c.l.b16 %v53
    %v89 = vunpack.c.l.b16 %v54
    %v90 = vunpack.c.h.b16 %v54
    %v91 = vunpack.c.l.b16 %v55
    %v92 = vunpack.c.l.b16 %v56
    %v93 = vunpack.c.h.b16 %v56
    %v94 = vunpack.c.l.b16 %v57
    %v95 = vunpack.c.l.b16 %v58
    %v96 = vunpack.c.h.b16 %v58
    %v97 = vunpack.c.l.b16 %v59
    %v98 = vunpack.c.l.b16 %v60
    %v99 = vunpack.c.h.b16 %v60
    %v100 = vunpack.c.l.b16 %v61
    %v101 = vunpack.c.l.b16 %v62
    %v102 = vunpack.c.h.b16 %v62
    %v103 = vunpack.c.l.b16 %v63
    %v104 = vpack.c.b16 %v83, %v80
    %v105 = vpack.c.b16 %v84, %v81
    %v106 = vpack.c.b16 %v85, %v82
    %v107 = vpack.c.b16 %v89, %v86
    %v108 = vpack.c.b16 %v90, %v87
    %v109 = vpack.c.b16 %v91, %v88
    %v110 = vpack.c.b16 %v95, %v92
    %v111 = vpack.c.b16 %v96, %v93
    %v112 = vpack.c.b16 %v97, %v94
    %v113 = vpack.c.b16 %v101, %v98
    %v114 = vpack.c.b16 %v102, %v99
    %v115 = vpack.c.b16 %v103, %v100
    %vm128 = vcmask 523264
    %v130 = vsel %vm128, %v47, 0
    %132 = vmatprep.subr.bf16.mxu0 0
    %133 = vmatpush1.bf16.msra.mxu0 0
    %134 = vmatprep.subr.bf16.mxu0 0
    %135 = vmatpush1.bf16.msra.mxu0 0
    %136 = vmatprep.subr.bf16.mxu0 0
    %137 = vmatpush1.bf16.msra.mxu0 0
    %138 = vmatprep.subr.bf16.mxu0 0
    %139 = vmatpush1.bf16.msra.mxu0 0
    %140 = vmatprep.subr.bf16.mxu0 %v114
    %141 = vmatpush1.bf16.msra.mxu0 %v113
    %142 = vmatprep.subr.bf16.mxu0 %v111
    %143 = vmatpush1.bf16.msra.mxu0 %v110
    %144 = vmatprep.subr.bf16.mxu0 %v108
    %145 = vmatpush1.bf16.msra.mxu0 %v107
    %146 = vmatprep.subr.bf16.mxu0 %v105
    %147 = vmatpush1.bf16.msra.mxu0 %v104
    %148 = vmatprep.subr.bf16.mxu0 0
    %149 = vmatpush2.bf16.msra.mxu0 0
    %150 = vmatprep.subr.bf16.mxu0 0
    %151 = vmatpush2.bf16.msra.mxu0 0
    %152 = vmatprep.subr.bf16.mxu0 0
    %153 = vmatpush2.bf16.msra.mxu0 0
    %154 = vmatprep.subr.bf16.mxu0 0
    %155 = vmatpush2.bf16.msra.mxu0 0
    %156 = vmatprep.subr.bf16.mxu0 0
    %157 = vmatpush2.bf16.msra.mxu0 0
    %158 = vmatprep.subr.bf16.mxu0 0
    %159 = vmatpush2.bf16.msra.mxu0 0
    %160 = vmatprep.subr.bf16.mxu0 0
    %161 = vmatpush2.bf16.msra.mxu0 0
    %162 = vmatprep.subr.bf16.mxu0 0
    %163 = vmatpush2.bf16.msra.mxu0 0
    %164 = vmatprep.mubr.bf16.mxu0 0
    %165 = vmatmul.mubr.bf16.gmra.mxu0 %v130
    %v166 = vpop.f32.mrf.mxu0
    %v167 = vadd.f32 0.0, %v166
    %v168 = vpop.f32.mrf.mxu0
    %v169 = vadd.f32 0.0, %v168
    %v170 = vpop.f32.mrf.mxu0
    %v171 = vpop.f32.mrf.mxu0
    %172 = vdwg.mxu0
    %173 = vmatprep.subr.bf16.mxu0 0
    %174 = vmatpush1.bf16.msra.mxu0 0
    %175 = vmatprep.subr.bf16.mxu0 0
    %176 = vmatpush1.bf16.msra.mxu0 0
    %177 = vmatprep.subr.bf16.mxu0 0
    %178 = vmatpush1.bf16.msra.mxu0 0
    %179 = vmatprep.subr.bf16.mxu0 0
    %180 = vmatpush1.bf16.msra.mxu0 0
    %181 = vmatprep.subr.bf16.mxu0 0
    %182 = vmatpush1.bf16.msra.mxu0 %v115
    %183 = vmatprep.subr.bf16.mxu0 0
    %184 = vmatpush1.bf16.msra.mxu0 %v112
    %185 = vmatprep.subr.bf16.mxu0 0
    %186 = vmatpush1.bf16.msra.mxu0 %v109
    %187 = vmatprep.subr.bf16.mxu0 0
    %188 = vmatpush1.bf16.msra.mxu0 %v106
    %189 = vmatprep.subr.bf16.mxu0 0
    %190 = vmatpush2.bf16.msra.mxu0 0
    %191 = vmatprep.subr.bf16.mxu0 0
    %192 = vmatpush2.bf16.msra.mxu0 0
    %193 = vmatprep.subr.bf16.mxu0 0
    %194 = vmatpush2.bf16.msra.mxu0 0
    %195 = vmatprep.subr.bf16.mxu0 0
    %196 = vmatpush2.bf16.msra.mxu0 0
    %197 = vmatprep.subr.bf16.mxu0 0
    %198 = vmatpush2.bf16.msra.mxu0 0
    %199 = vmatprep.subr.bf16.mxu0 0
    %200 = vmatpush2.bf16.msra.mxu0 0
    %201 = vmatprep.subr.bf16.mxu0 0
    %202 = vmatpush2.bf16.msra.mxu0 0
    %203 = vmatprep.subr.bf16.mxu0 0
    %204 = vmatpush2.bf16.msra.mxu0 0
    %205 = vmatprep.mubr.bf16.mxu0 0
    %206 = vmatmul.mubr.bf16.gmra.mxu0 %v130
    %v207 = vpop.f32.mrf.mxu0
    %v208 = vadd.f32 0.0, %v207
    %v209 = vpop.f32.mrf.mxu0
    %v210 = vpop.f32.mrf.mxu0
    %v211 = vpop.f32.mrf.mxu0
    %212 = vdwg.mxu0
    %v213 = vpack.c.bf16 %v167, %v167
    %v214 = vpack.c.bf16 %v169, %v169
    %v215 = vpack.c.bf16 %v208, %v208
    %v219 = vunpack.c.l.b16 %v213
    %v220 = vunpack.c.l.b16 %v214
    %v221 = vunpack.c.l.b16 %v215
    %v222 = vpack.c.b16 %v220, %v219
    %v223 = vpack.c.b16 %v221, %v221
    %226 = vst [vmem:[#allocation2 + $0x4] sm:$0x33] %v222
    %vm227 = vcmask 123904
    %228 = vst.msk [vmem:[#allocation2 + $0xc] sm:$0x3] %vm227, %v223
    %v229 = vld [vmem:[%s1] sm:$0x3f]
    %v231 = vcombine.low %v229, %v229
    %v233 = vunpack.c.l.s4 1983009808
    %v234 = vunpack.c.0.s8 %v233
    %v235 = vlaneseq
    %v236 = vshrl.u32 %v235, 7
    %v237 = vsub.s32 %v234, %v236
    %v238 = vrot.slane %v231, %v237
    %v240 = vunpack.c.l.s4 1983009808
    %v241 = vunpack.c.0.s8 %v240
    %v242 = vlaneseq
    %v243 = vshrl.u32 %v242, 7
    %v244 = vsub.s32 %v241, %v243
    %v245 = vrot.slane %v229, %v244
    %248 = vst [vmem:[#allocation2 + $0x4] sm:$0xcc] %v238
    %vm249 = vcmask 125954
    %250 = vst.msk [vmem:[#allocation2 + $0xc] sm:$0xc] %vm249, %v245
    %v251 = vrot.slane %v222, 6
    %v252 = vrot.slane %v251, 4
    %v253 = vrot.slane %v223, 6
    %v254 = vrot.slane %v253, 4
    %257 = vst [vmem:[#allocation2 + $0x10] sm:$0x33] %v252
    %258 = vst.msk [vmem:[#allocation2 + $0x18] sm:$0x3] %vm227, %v254
    %s259 = scalar_lea.vmem %s1, 6
    %v260 = vld [vmem:[%s259] sm:$0x3f]
    %v262 = vcombine.low %v260, %v260
    %v264 = vunpack.c.l.s4 1983009808
    %v265 = vunpack.c.0.s8 %v264
    %v266 = vlaneseq
    %v267 = vshrl.u32 %v266, 7
    %v268 = vsub.s32 %v265, %v267
    %v269 = vrot.slane %v262, %v268
    %v271 = vunpack.c.l.s4 1983009808
    %v272 = vunpack.c.0.s8 %v271
    %v273 = vlaneseq
    %v274 = vshrl.u32 %v273, 7
    %v275 = vsub.s32 %v272, %v274
    %v276 = vrot.slane %v260, %v275
    %279 = vst [vmem:[#allocation2 + $0x10] sm:$0xcc] %v269
    %280 = vst.msk [vmem:[#allocation2 + $0x18] sm:$0xc] %vm249, %v276
    %v281 = vld [vmem:[#allocation2] sm:$0xff]
    %v282 = vld [vmem:[#allocation2 + $0x8] sm:$0xff]
    %v283 = vld [vmem:[#allocation2 + $0x10] sm:$0xff]
    %v284 = vld [vmem:[%s4] sm:$0x3]
    %s285 = scalar_lea.vmem %s4, 2
    %v286 = vld [vmem:[%s285] sm:$0x3]
    %v290 = vunpack.c.l.b16 %v281
    %v291 = vunpack.c.h.b16 %v281
    %v292 = vunpack.c.l.b16 %v282
    %v293 = vunpack.c.h.b16 %v282
    %v294 = vunpack.c.l.b16 %v283
    %v295 = vunpack.c.h.b16 %v283
    %v296 = vpack.c.b16 %v290, %v290
    %v297 = vpack.c.b16 %v291, %v291
    %v298 = vpack.c.b16 %v292, %v292
    %v299 = vpack.c.b16 %v293, %v293
    %v300 = vpack.c.b16 %v294, %v294
    %v301 = vpack.c.b16 %v295, %v295
    %302 = vrot.lane.b32.xlu0 %v296, 17
    %v303 = vpop.permute.xlu0 %302
    %304 = vrot.lane.b32.xlu0 %v297, 17
    %v305 = vpop.permute.xlu0 %304
    %306 = vrot.lane.b32.xlu0 %v298, 17
    %v307 = vpop.permute.xlu0 %306
    %308 = vrot.lane.b32.xlu0 %v299, 17
    %v309 = vpop.permute.xlu0 %308
    %310 = vrot.lane.b32.xlu0 %v300, 17
    %v311 = vpop.permute.xlu0 %310
    %312 = vrot.lane.b32.xlu0 %v301, 17
    %v313 = vpop.permute.xlu0 %312
    %vm314 = vcmask 138240
    %v315 = vsel %vm314, %v303, %v305
    %v316 = vsel %vm314, %v305, %v307
    %v317 = vsel %vm314, %v307, %v309
    %v318 = vsel %vm314, %v309, %v311
    %v319 = vsel %vm314, %v311, %v313
    %vm320 = vcmask 64512
    %v322 = vsel %vm320, %v286, 0
    %vm324 = vcmask 1043456
    %v326 = vsel %vm324, %v315, 0
    %v329 = vsel %vm324, %v316, 0
    %v332 = vsel %vm324, %v317, 0
    %v335 = vsel %vm324, %v318, 0
    %v338 = vsel %vm324, %v319, 0
    %v341 = vsel %vm324, %v313, 0
    %343 = vmatprep.subr.bf16.mxu0 0
    %344 = vmatpush1.bf16.msra.mxu0 0
    %345 = vmatprep.subr.bf16.mxu0 0
    %346 = vmatpush1.bf16.msra.mxu0 0
    %347 = vmatprep.subr.bf16.mxu0 0
    %348 = vmatpush1.bf16.msra.mxu0 0
    %349 = vmatprep.subr.bf16.mxu0 0
    %350 = vmatpush1.bf16.msra.mxu0 0
    %351 = vmatprep.subr.bf16.mxu0 0
    %352 = vmatpush1.bf16.msra.mxu0 0
    %353 = vmatprep.subr.bf16.mxu0 0
    %354 = vmatpush1.bf16.msra.mxu0 0
    %355 = vmatprep.subr.bf16.mxu0 0
    %356 = vmatpush1.bf16.msra.mxu0 0
    %357 = vmatprep.subr.bf16.mxu0 %v329
    %358 = vmatpush1.bf16.msra.mxu0 %v326
    %359 = vmatprep.subr.bf16.mxu0 0
    %360 = vmatpush2.bf16.msra.mxu0 0
    %361 = vmatprep.subr.bf16.mxu0 0
    %362 = vmatpush2.bf16.msra.mxu0 0
    %363 = vmatprep.subr.bf16.mxu0 0
    %364 = vmatpush2.bf16.msra.mxu0 0
    %365 = vmatprep.subr.bf16.mxu0 0
    %366 = vmatpush2.bf16.msra.mxu0 0
    %367 = vmatprep.subr.bf16.mxu0 0
    %368 = vmatpush2.bf16.msra.mxu0 0
    %369 = vmatprep.subr.bf16.mxu0 0
    %370 = vmatpush2.bf16.msra.mxu0 0
    %371 = vmatprep.subr.bf16.mxu0 0
    %372 = vmatpush2.bf16.msra.mxu0 0
    %373 = vmatprep.subr.bf16.mxu0 0
    %374 = vmatpush2.bf16.msra.mxu0 0
    %375 = vmatprep.mubr.bf16.mxu0 0
    %376 = vmatmul.mubr.bf16.gmra.mxu0 %v322
    %v377 = vpop.f32.mrf.mxu0
    %v378 = vadd.f32 0.0, %v377
    %v379 = vpop.f32.mrf.mxu0
    %v380 = vadd.f32 0.0, %v379
    %v381 = vpop.f32.mrf.mxu0
    %v382 = vpop.f32.mrf.mxu0
    %383 = vdwg.mxu0
    %384 = vmatprep.subr.bf16.mxu0 0
    %385 = vmatpush1.bf16.msra.mxu0 0
    %386 = vmatprep.subr.bf16.mxu0 0
    %387 = vmatpush1.bf16.msra.mxu0 0
    %388 = vmatprep.subr.bf16.mxu0 0
    %389 = vmatpush1.bf16.msra.mxu0 0
    %390 = vmatprep.subr.bf16.mxu0 0
    %391 = vmatpush1.bf16.msra.mxu0 0
    %392 = vmatprep.subr.bf16.mxu0 0
    %393 = vmatpush1.bf16.msra.mxu0 0
    %394 = vmatprep.subr.bf16.mxu0 0
    %395 = vmatpush1.bf16.msra.mxu0 0
    %396 = vmatprep.subr.bf16.mxu0 0
    %397 = vmatpush1.bf16.msra.mxu0 0
    %398 = vmatprep.subr.bf16.mxu0 %v335
    %399 = vmatpush1.bf16.msra.mxu0 %v332
    %400 = vmatprep.subr.bf16.mxu0 0
    %401 = vmatpush2.bf16.msra.mxu0 0
    %402 = vmatprep.subr.bf16.mxu0 0
    %403 = vmatpush2.bf16.msra.mxu0 0
    %404 = vmatprep.subr.bf16.mxu0 0
    %405 = vmatpush2.bf16.msra.mxu0 0
    %406 = vmatprep.subr.bf16.mxu0 0
    %407 = vmatpush2.bf16.msra.mxu0 0
    %408 = vmatprep.subr.bf16.mxu0 0
    %409 = vmatpush2.bf16.msra.mxu0 0
    %410 = vmatprep.subr.bf16.mxu0 0
    %411 = vmatpush2.bf16.msra.mxu0 0
    %412 = vmatprep.subr.bf16.mxu0 0
    %413 = vmatpush2.bf16.msra.mxu0 0
    %414 = vmatprep.subr.bf16.mxu0 0
    %415 = vmatpush2.bf16.msra.mxu0 0
    %416 = vmatprep.mubr.bf16.mxu0 0
    %417 = vmatmul.mubr.bf16.gmra.mxu0 %v322
    %v418 = vpop.f32.mrf.mxu0
    %v419 = vadd.f32 0.0, %v418
    %v420 = vpop.f32.mrf.mxu0
    %v421 = vadd.f32 0.0, %v420
    %v422 = vpop.f32.mrf.mxu0
    %v423 = vpop.f32.mrf.mxu0
    %424 = vdwg.mxu0
    %425 = vmatprep.subr.bf16.mxu0 0
    %426 = vmatpush1.bf16.msra.mxu0 0
    %427 = vmatprep.subr.bf16.mxu0 0
    %428 = vmatpush1.bf16.msra.mxu0 0
    %429 = vmatprep.subr.bf16.mxu0 0
    %430 = vmatpush1.bf16.msra.mxu0 0
    %431 = vmatprep.subr.bf16.mxu0 0
    %432 = vmatpush1.bf16.msra.mxu0 0
    %433 = vmatprep.subr.bf16.mxu0 0
    %434 = vmatpush1.bf16.msra.mxu0 0
    %435 = vmatprep.subr.bf16.mxu0 0
    %436 = vmatpush1.bf16.msra.mxu0 0
    %437 = vmatprep.subr.bf16.mxu0 0
    %438 = vmatpush1.bf16.msra.mxu0 0
    %439 = vmatprep.subr.bf16.mxu0 %v341
    %440 = vmatpush1.bf16.msra.mxu0 %v338
    %441 = vmatprep.subr.bf16.mxu0 0
    %442 = vmatpush2.bf16.msra.mxu0 0
    %443 = vmatprep.subr.bf16.mxu0 0
    %444 = vmatpush2.bf16.msra.mxu0 0
    %445 = vmatprep.subr.bf16.mxu0 0
    %446 = vmatpush2.bf16.msra.mxu0 0
    %447 = vmatprep.subr.bf16.mxu0 0
    %448 = vmatpush2.bf16.msra.mxu0 0
    %449 = vmatprep.subr.bf16.mxu0 0
    %450 = vmatpush2.bf16.msra.mxu0 0
    %451 = vmatprep.subr.bf16.mxu0 0
    %452 = vmatpush2.bf16.msra.mxu0 0
    %453 = vmatprep.subr.bf16.mxu0 0
    %454 = vmatpush2.bf16.msra.mxu0 0
    %455 = vmatprep.subr.bf16.mxu0 0
    %456 = vmatpush2.bf16.msra.mxu0 0
    %457 = vmatprep.mubr.bf16.mxu0 0
    %458 = vmatmul.mubr.bf16.gmra.mxu0 %v322
    %v459 = vpop.f32.mrf.mxu0
    %v460 = vadd.f32 0.0, %v459
    %v461 = vpop.f32.mrf.mxu0
    %v462 = vadd.f32 0.0, %v461
    %v463 = vpop.f32.mrf.mxu0
    %v464 = vpop.f32.mrf.mxu0
    %465 = vdwg.mxu0
    %466 = vrot.lane.b32.xlu0 %v296, 18
    %v467 = vpop.permute.xlu0 %466
    %468 = vrot.lane.b32.xlu0 %v297, 18
    %v469 = vpop.permute.xlu0 %468
    %470 = vrot.lane.b32.xlu0 %v298, 18
    %v471 = vpop.permute.xlu0 %470
    %472 = vrot.lane.b32.xlu0 %v299, 18
    %v473 = vpop.permute.xlu0 %472
    %474 = vrot.lane.b32.xlu0 %v300, 18
    %v475 = vpop.permute.xlu0 %474
    %476 = vrot.lane.b32.xlu0 %v301, 18
    %v477 = vpop.permute.xlu0 %476
    %vm478 = vcmask 146432
    %v479 = vsel %vm478, %v467, %v469
    %v480 = vsel %vm478, %v469, %v471
    %v481 = vsel %vm478, %v471, %v473
    %v482 = vsel %vm478, %v473, %v475
    %v483 = vsel %vm478, %v475, %v477
    %v485 = vsel %vm320, %v284, 0
    %v488 = vsel %vm324, %v479, 0
    %v491 = vsel %vm324, %v480, 0
    %v494 = vsel %vm324, %v481, 0
    %v497 = vsel %vm324, %v482, 0
    %v500 = vsel %vm324, %v483, 0
    %v503 = vsel %vm324, %v477, 0
    %505 = vmatprep.subr.bf16.mxu0 0
    %506 = vmatpush1.bf16.msra.mxu0 0
    %507 = vmatprep.subr.bf16.mxu0 0
    %508 = vmatpush1.bf16.msra.mxu0 0
    %509 = vmatprep.subr.bf16.mxu0 0
    %510 = vmatpush1.bf16.msra.mxu0 0
    %511 = vmatprep.subr.bf16.mxu0 0
    %512 = vmatpush1.bf16.msra.mxu0 0
    %513 = vmatprep.subr.bf16.mxu0 0
    %514 = vmatpush1.bf16.msra.mxu0 0
    %515 = vmatprep.subr.bf16.mxu0 0
    %516 = vmatpush1.bf16.msra.mxu0 0
    %517 = vmatprep.subr.bf16.mxu0 0
    %518 = vmatpush1.bf16.msra.mxu0 0
    %519 = vmatprep.subr.bf16.mxu0 %v491
    %520 = vmatpush1.bf16.msra.mxu0 %v488
    %521 = vmatprep.subr.bf16.mxu0 0
    %522 = vmatpush2.bf16.msra.mxu0 0
    %523 = vmatprep.subr.bf16.mxu0 0
    %524 = vmatpush2.bf16.msra.mxu0 0
    %525 = vmatprep.subr.bf16.mxu0 0
    %526 = vmatpush2.bf16.msra.mxu0 0
    %527 = vmatprep.subr.bf16.mxu0 0
    %528 = vmatpush2.bf16.msra.mxu0 0
    %529 = vmatprep.subr.bf16.mxu0 0
    %530 = vmatpush2.bf16.msra.mxu0 0
    %531 = vmatprep.subr.bf16.mxu0 0
    %532 = vmatpush2.bf16.msra.mxu0 0
    %533 = vmatprep.subr.bf16.mxu0 0
    %534 = vmatpush2.bf16.msra.mxu0 0
    %535 = vmatprep.subr.bf16.mxu0 0
    %536 = vmatpush2.bf16.msra.mxu0 0
    %537 = vmatprep.mubr.bf16.mxu0 0
    %538 = vmatmul.mubr.bf16.gmra.mxu0 %v485
    %v539 = vpop.f32.mrf.mxu0
    %v540 = vadd.f32 %v378, %v539
    %v541 = vpop.f32.mrf.mxu0
    %v542 = vadd.f32 %v380, %v541
    %v543 = vpop.f32.mrf.mxu0
    %v544 = vpop.f32.mrf.mxu0
    %545 = vdwg.mxu0
    %546 = vmatprep.subr.bf16.mxu0 0
    %547 = vmatpush1.bf16.msra.mxu0 0
    %548 = vmatprep.subr.bf16.mxu0 0
    %549 = vmatpush1.bf16.msra.mxu0 0
    %550 = vmatprep.subr.bf16.mxu0 0
    %551 = vmatpush1.bf16.msra.mxu0 0
    %552 = vmatprep.subr.bf16.mxu0 0
    %553 = vmatpush1.bf16.msra.mxu0 0
    %554 = vmatprep.subr.bf16.mxu0 0
    %555 = vmatpush1.bf16.msra.mxu0 0
    %556 = vmatprep.subr.bf16.mxu0 0
    %557 = vmatpush1.bf16.msra.mxu0 0
    %558 = vmatprep.subr.bf16.mxu0 0
    %559 = vmatpush1.bf16.msra.mxu0 0
    %560 = vmatprep.subr.bf16.mxu0 %v497
    %561 = vmatpush1.bf16.msra.mxu0 %v494
    %562 = vmatprep.subr.bf16.mxu0 0
    %563 = vmatpush2.bf16.msra.mxu0 0
    %564 = vmatprep.subr.bf16.mxu0 0
    %565 = vmatpush2.bf16.msra.mxu0 0
    %566 = vmatprep.subr.bf16.mxu0 0
    %567 = vmatpush2.bf16.msra.mxu0 0
    %568 = vmatprep.subr.bf16.mxu0 0
    %569 = vmatpush2.bf16.msra.mxu0 0
    %570 = vmatprep.subr.bf16.mxu0 0
    %571 = vmatpush2.bf16.msra.mxu0 0
    %572 = vmatprep.subr.bf16.mxu0 0
    %573 = vmatpush2.bf16.msra.mxu0 0
    %574 = vmatprep.subr.bf16.mxu0 0
    %575 = vmatpush2.bf16.msra.mxu0 0
    %576 = vmatprep.subr.bf16.mxu0 0
    %577 = vmatpush2.bf16.msra.mxu0 0
    %578 = vmatprep.mubr.bf16.mxu0 0
    %579 = vmatmul.mubr.bf16.gmra.mxu0 %v485
    %v580 = vpop.f32.mrf.mxu0
    %v581 = vadd.f32 %v419, %v580
    %v582 = vpop.f32.mrf.mxu0
    %v583 = vadd.f32 %v421, %v582
    %v584 = vpop.f32.mrf.mxu0
    %v585 = vpop.f32.mrf.mxu0
    %586 = vdwg.mxu0
    %587 = vmatprep.subr.bf16.mxu0 0
    %588 = vmatpush1.bf16.msra.mxu0 0
    %589 = vmatprep.subr.bf16.mxu0 0
    %590 = vmatpush1.bf16.msra.mxu0 0
    %591 = vmatprep.subr.bf16.mxu0 0
    %592 = vmatpush1.bf16.msra.mxu0 0
    %593 = vmatprep.subr.bf16.mxu0 0
    %594 = vmatpush1.bf16.msra.mxu0 0
    %595 = vmatprep.subr.bf16.mxu0 0
    %596 = vmatpush1.bf16.msra.mxu0 0
    %597 = vmatprep.subr.bf16.mxu0 0
    %598 = vmatpush1.bf16.msra.mxu0 0
    %599 = vmatprep.subr.bf16.mxu0 0
    %600 = vmatpush1.bf16.msra.mxu0 0
    %601 = vmatprep.subr.bf16.mxu0 %v503
    %602 = vmatpush1.bf16.msra.mxu0 %v500
    %603 = vmatprep.subr.bf16.mxu0 0
    %604 = vmatpush2.bf16.msra.mxu0 0
    %605 = vmatprep.subr.bf16.mxu0 0
    %606 = vmatpush2.bf16.msra.mxu0 0
    %607 = vmatprep.subr.bf16.mxu0 0
    %608 = vmatpush2.bf16.msra.mxu0 0
    %609 = vmatprep.subr.bf16.mxu0 0
    %610 = vmatpush2.bf16.msra.mxu0 0
    %611 = vmatprep.subr.bf16.mxu0 0
    %612 = vmatpush2.bf16.msra.mxu0 0
    %613 = vmatprep.subr.bf16.mxu0 0
    %614 = vmatpush2.bf16.msra.mxu0 0
    %615 = vmatprep.subr.bf16.mxu0 0
    %616 = vmatpush2.bf16.msra.mxu0 0
    %617 = vmatprep.subr.bf16.mxu0 0
    %618 = vmatpush2.bf16.msra.mxu0 0
    %619 = vmatprep.mubr.bf16.mxu0 0
    %620 = vmatmul.mubr.bf16.gmra.mxu0 %v485
    %v621 = vpop.f32.mrf.mxu0
    %v622 = vadd.f32 %v460, %v621
    %v623 = vpop.f32.mrf.mxu0
    %v624 = vadd.f32 %v462, %v623
    %v625 = vpop.f32.mrf.mxu0
    %v626 = vpop.f32.mrf.mxu0
    %627 = vdwg.mxu0
    %s628 = scalar_lea.vmem %s4, 4
    %v629 = vld [vmem:[%s628] sm:$0x3]
    %630 = vrot.lane.b32.xlu0 %v296, 16
    %v631 = vpop.permute.xlu0 %630
    %632 = vrot.lane.b32.xlu0 %v297, 16
    %v633 = vpop.permute.xlu0 %632
    %634 = vrot.lane.b32.xlu0 %v298, 16
    %v635 = vpop.permute.xlu0 %634
    %636 = vrot.lane.b32.xlu0 %v299, 16
    %v637 = vpop.permute.xlu0 %636
    %638 = vrot.lane.b32.xlu0 %v300, 16
    %v639 = vpop.permute.xlu0 %638
    %640 = vrot.lane.b32.xlu0 %v301, 16
    %v641 = vpop.permute.xlu0 %640
    %vm642 = vcmask 130048
    %v643 = vsel %vm642, %v631, %v633
    %v644 = vsel %vm642, %v633, %v635
    %v645 = vsel %vm642, %v635, %v637
    %v646 = vsel %vm642, %v637, %v639
    %v647 = vsel %vm642, %v639, %v641
    %v649 = vsel %vm320, %v629, 0
    %v652 = vsel %vm324, %v643, 0
    %v655 = vsel %vm324, %v644, 0
    %v658 = vsel %vm324, %v645, 0
    %v661 = vsel %vm324, %v646, 0
    %v664 = vsel %vm324, %v647, 0
    %v667 = vsel %vm324, %v641, 0
    %669 = vmatprep.subr.bf16.mxu0 0
    %670 = vmatpush1.bf16.msra.mxu0 0
    %671 = vmatprep.subr.bf16.mxu0 0
    %672 = vmatpush1.bf16.msra.mxu0 0
    %673 = vmatprep.subr.bf16.mxu0 0
    %674 = vmatpush1.bf16.msra.mxu0 0
    %675 = vmatprep.subr.bf16.mxu0 0
    %676 = vmatpush1.bf16.msra.mxu0 0
    %677 = vmatprep.subr.bf16.mxu0 0
    %678 = vmatpush1.bf16.msra.mxu0 0
    %679 = vmatprep.subr.bf16.mxu0 0
    %680 = vmatpush1.bf16.msra.mxu0 0
    %681 = vmatprep.subr.bf16.mxu0 0
    %682 = vmatpush1.bf16.msra.mxu0 0
    %683 = vmatprep.subr.bf16.mxu0 %v655
    %684 = vmatpush1.bf16.msra.mxu0 %v652
    %685 = vmatprep.subr.bf16.mxu0 0
    %686 = vmatpush2.bf16.msra.mxu0 0
    %687 = vmatprep.subr.bf16.mxu0 0
    %688 = vmatpush2.bf16.msra.mxu0 0
    %689 = vmatprep.subr.bf16.mxu0 0
    %690 = vmatpush2.bf16.msra.mxu0 0
    %691 = vmatprep.subr.bf16.mxu0 0
    %692 = vmatpush2.bf16.msra.mxu0 0
    %693 = vmatprep.subr.bf16.mxu0 0
    %694 = vmatpush2.bf16.msra.mxu0 0
    %695 = vmatprep.subr.bf16.mxu0 0
    %696 = vmatpush2.bf16.msra.mxu0 0
    %697 = vmatprep.subr.bf16.mxu0 0
    %698 = vmatpush2.bf16.msra.mxu0 0
    %699 = vmatprep.subr.bf16.mxu0 0
    %700 = vmatpush2.bf16.msra.mxu0 0
    %701 = vmatprep.mubr.bf16.mxu0 0
    %702 = vmatmul.mubr.bf16.gmra.mxu0 %v649
    %v703 = vpop.f32.mrf.mxu0
    %v704 = vadd.f32 0.0, %v703
    %v705 = vpop.f32.mrf.mxu0
    %v706 = vadd.f32 0.0, %v705
    %v707 = vpop.f32.mrf.mxu0
    %v708 = vpop.f32.mrf.mxu0
    %709 = vdwg.mxu0
    %710 = vmatprep.subr.bf16.mxu0 0
    %711 = vmatpush1.bf16.msra.mxu0 0
    %712 = vmatprep.subr.bf16.mxu0 0
    %713 = vmatpush1.bf16.msra.mxu0 0
    %714 = vmatprep.subr.bf16.mxu0 0
    %715 = vmatpush1.bf16.msra.mxu0 0
    %716 = vmatprep.subr.bf16.mxu0 0
    %717 = vmatpush1.bf16.msra.mxu0 0
    %718 = vmatprep.subr.bf16.mxu0 0
    %719 = vmatpush1.bf16.msra.mxu0 0
    %720 = vmatprep.subr.bf16.mxu0 0
    %721 = vmatpush1.bf16.msra.mxu0 0
    %722 = vmatprep.subr.bf16.mxu0 0
    %723 = vmatpush1.bf16.msra.mxu0 0
    %724 = vmatprep.subr.bf16.mxu0 %v661
    %725 = vmatpush1.bf16.msra.mxu0 %v658
    %726 = vmatprep.subr.bf16.mxu0 0
    %727 = vmatpush2.bf16.msra.mxu0 0
    %728 = vmatprep.subr.bf16.mxu0 0
    %729 = vmatpush2.bf16.msra.mxu0 0
    %730 = vmatprep.subr.bf16.mxu0 0
    %731 = vmatpush2.bf16.msra.mxu0 0
    %732 = vmatprep.subr.bf16.mxu0 0
    %733 = vmatpush2.bf16.msra.mxu0 0
    %734 = vmatprep.subr.bf16.mxu0 0
    %735 = vmatpush2.bf16.msra.mxu0 0
    %736 = vmatprep.subr.bf16.mxu0 0
    %737 = vmatpush2.bf16.msra.mxu0 0
    %738 = vmatprep.subr.bf16.mxu0 0
    %739 = vmatpush2.bf16.msra.mxu0 0
    %740 = vmatprep.subr.bf16.mxu0 0
    %741 = vmatpush2.bf16.msra.mxu0 0
    %742 = vmatprep.mubr.bf16.mxu0 0
    %743 = vmatmul.mubr.bf16.gmra.mxu0 %v649
    %v744 = vpop.f32.mrf.mxu0
    %v745 = vadd.f32 0.0, %v744
    %v746 = vpop.f32.mrf.mxu0
    %v747 = vadd.f32 0.0, %v746
    %v748 = vpop.f32.mrf.mxu0
    %v749 = vpop.f32.mrf.mxu0
    %750 = vdwg.mxu0
    %751 = vmatprep.subr.bf16.mxu0 0
    %752 = vmatpush1.bf16.msra.mxu0 0
    %753 = vmatprep.subr.bf16.mxu0 0
    %754 = vmatpush1.bf16.msra.mxu0 0
    %755 = vmatprep.subr.bf16.mxu0 0
    %756 = vmatpush1.bf16.msra.mxu0 0
    %757 = vmatprep.subr.bf16.mxu0 0
    %758 = vmatpush1.bf16.msra.mxu0 0
    %759 = vmatprep.subr.bf16.mxu0 0
    %760 = vmatpush1.bf16.msra.mxu0 0
    %761 = vmatprep.subr.bf16.mxu0 0
    %762 = vmatpush1.bf16.msra.mxu0 0
    %763 = vmatprep.subr.bf16.mxu0 0
    %764 = vmatpush1.bf16.msra.mxu0 0
    %765 = vmatprep.subr.bf16.mxu0 %v667
    %766 = vmatpush1.bf16.msra.mxu0 %v664
    %767 = vmatprep.subr.bf16.mxu0 0
    %768 = vmatpush2.bf16.msra.mxu0 0
    %769 = vmatprep.subr.bf16.mxu0 0
    %770 = vmatpush2.bf16.msra.mxu0 0
    %771 = vmatprep.subr.bf16.mxu0 0
    %772 = vmatpush2.bf16.msra.mxu0 0
    %773 = vmatprep.subr.bf16.mxu0 0
    %774 = vmatpush2.bf16.msra.mxu0 0
    %775 = vmatprep.subr.bf16.mxu0 0
    %776 = vmatpush2.bf16.msra.mxu0 0
    %777 = vmatprep.subr.bf16.mxu0 0
    %778 = vmatpush2.bf16.msra.mxu0 0
    %779 = vmatprep.subr.bf16.mxu0 0
    %780 = vmatpush2.bf16.msra.mxu0 0
    %781 = vmatprep.subr.bf16.mxu0 0
    %782 = vmatpush2.bf16.msra.mxu0 0
    %783 = vmatprep.mubr.bf16.mxu0 0
    %784 = vmatmul.mubr.bf16.gmra.mxu0 %v649
    %v785 = vpop.f32.mrf.mxu0
    %v786 = vadd.f32 0.0, %v785
    %v787 = vpop.f32.mrf.mxu0
    %v788 = vadd.f32 0.0, %v787
    %v789 = vpop.f32.mrf.mxu0
    %v790 = vpop.f32.mrf.mxu0
    %791 = vdwg.mxu0
    %v792 = vadd.f32 %v540, %v704
    %v793 = vadd.f32 %v542, %v706
    %v794 = vadd.f32 %v581, %v745
    %v795 = vadd.f32 %v583, %v747
    %v796 = vadd.f32 %v622, %v786
    %v797 = vadd.f32 %v624, %v788
    %v798 = vld [vmem:[#allocation2] sm:$0xff]
    %v799 = vld [vmem:[#allocation2 + $0x8] sm:$0xff]
    %v800 = vld [vmem:[#allocation2 + $0x10] sm:$0xff]
    %v801 = vld [vmem:[#allocation2 + $0x18] sm:$0xf]
    %s802 = scalar_lea.vmem %s4, 6
    %v803 = vld [vmem:[%s802] sm:$0x3]
    %v808 = vunpack.c.l.b16 %v798
    %v809 = vunpack.c.h.b16 %v798
    %v810 = vunpack.c.l.b16 %v799
    %v811 = vunpack.c.h.b16 %v799
    %v812 = vunpack.c.l.b16 %v800
    %v813 = vunpack.c.h.b16 %v800
    %v814 = vunpack.c.l.b16 %v801
    %v815 = vpack.c.b16 %v808, %v808
    %v816 = vpack.c.b16 %v809, %v809
    %v817 = vpack.c.b16 %v810, %v810
    %v818 = vpack.c.b16 %v811, %v811
    %v819 = vpack.c.b16 %v812, %v812
    %v820 = vpack.c.b16 %v813, %v813
    %v821 = vpack.c.b16 %v814, %v814
    %822 = vrot.lane.b32.xlu0 %v815, 1
    %v823 = vpop.permute.xlu0 %822
    %824 = vrot.lane.b32.xlu0 %v816, 1
    %v825 = vpop.permute.xlu0 %824
    %826 = vrot.lane.b32.xlu0 %v817, 1
    %v827 = vpop.permute.xlu0 %826
    %828 = vrot.lane.b32.xlu0 %v818, 1
    %v829 = vpop.permute.xlu0 %828
    %830 = vrot.lane.b32.xlu0 %v819, 1
    %v831 = vpop.permute.xlu0 %830
    %832 = vrot.lane.b32.xlu0 %v820, 1
    %v833 = vpop.permute.xlu0 %832
    %834 = vrot.lane.b32.xlu0 %v821, 1
    %v835 = vpop.permute.xlu0 %834
    %vm836 = vcmask 7168
    %v837 = vsel %vm836, %v823, %v825
    %v838 = vsel %vm836, %v825, %v827
    %v839 = vsel %vm836, %v827, %v829
    %v840 = vsel %vm836, %v829, %v831
    %v841 = vsel %vm836, %v831, %v833
    %v842 = vsel %vm836, %v833, %v835
    %v844 = vsel %vm320, %v803, 0
    %v847 = vsel %vm324, %v837, 0
    %v850 = vsel %vm324, %v838, 0
    %v853 = vsel %vm324, %v839, 0
    %v856 = vsel %vm324, %v840, 0
    %v859 = vsel %vm324, %v841, 0
    %v862 = vsel %vm324, %v842, 0
    %864 = vmatprep.subr.bf16.mxu0 0
    %865 = vmatpush1.bf16.msra.mxu0 0
    %866 = vmatprep.subr.bf16.mxu0 0
    %867 = vmatpush1.bf16.msra.mxu0 0
    %868 = vmatprep.subr.bf16.mxu0 0
    %869 = vmatpush1.bf16.msra.mxu0 0
    %870 = vmatprep.subr.bf16.mxu0 0
    %871 = vmatpush1.bf16.msra.mxu0 0
    %872 = vmatprep.subr.bf16.mxu0 0
    %873 = vmatpush1.bf16.msra.mxu0 0
    %874 = vmatprep.subr.bf16.mxu0 0
    %875 = vmatpush1.bf16.msra.mxu0 0
    %876 = vmatprep.subr.bf16.mxu0 0
    %877 = vmatpush1.bf16.msra.mxu0 0
    %878 = vmatprep.subr.bf16.mxu0 %v850
    %879 = vmatpush1.bf16.msra.mxu0 %v847
    %880 = vmatprep.subr.bf16.mxu0 0
    %881 = vmatpush2.bf16.msra.mxu0 0
    %882 = vmatprep.subr.bf16.mxu0 0
    %883 = vmatpush2.bf16.msra.mxu0 0
    %884 = vmatprep.subr.bf16.mxu0 0
    %885 = vmatpush2.bf16.msra.mxu0 0
    %886 = vmatprep.subr.bf16.mxu0 0
    %887 = vmatpush2.bf16.msra.mxu0 0
    %888 = vmatprep.subr.bf16.mxu0 0
    %889 = vmatpush2.bf16.msra.mxu0 0
    %890 = vmatprep.subr.bf16.mxu0 0
    %891 = vmatpush2.bf16.msra.mxu0 0
    %892 = vmatprep.subr.bf16.mxu0 0
    %893 = vmatpush2.bf16.msra.mxu0 0
    %894 = vmatprep.subr.bf16.mxu0 0
    %895 = vmatpush2.bf16.msra.mxu0 0
    %896 = vmatprep.mubr.bf16.mxu0 0
    %897 = vmatmul.mubr.bf16.gmra.mxu0 %v844
    %v898 = vpop.f32.mrf.mxu0
    %v899 = vadd.f32 0.0, %v898
    %v900 = vpop.f32.mrf.mxu0
    %v901 = vadd.f32 0.0, %v900
    %v902 = vpop.f32.mrf.mxu0
    %v903 = vpop.f32.mrf.mxu0
    %904 = vdwg.mxu0
    %905 = vmatprep.subr.bf16.mxu0 0
    %906 = vmatpush1.bf16.msra.mxu0 0
    %907 = vmatprep.subr.bf16.mxu0 0
    %908 = vmatpush1.bf16.msra.mxu0 0
    %909 = vmatprep.subr.bf16.mxu0 0
    %910 = vmatpush1.bf16.msra.mxu0 0
    %911 = vmatprep.subr.bf16.mxu0 0
    %912 = vmatpush1.bf16.msra.mxu0 0
    %913 = vmatprep.subr.bf16.mxu0 0
    %914 = vmatpush1.bf16.msra.mxu0 0
    %915 = vmatprep.subr.bf16.mxu0 0
    %916 = vmatpush1.bf16.msra.mxu0 0
    %917 = vmatprep.subr.bf16.mxu0 0
    %918 = vmatpush1.bf16.msra.mxu0 0
    %919 = vmatprep.subr.bf16.mxu0 %v856
    %920 = vmatpush1.bf16.msra.mxu0 %v853
    %921 = vmatprep.subr.bf16.mxu0 0
    %922 = vmatpush2.bf16.msra.mxu0 0
    %923 = vmatprep.subr.bf16.mxu0 0
    %924 = vmatpush2.bf16.msra.mxu0 0
    %925 = vmatprep.subr.bf16.mxu0 0
    %926 = vmatpush2.bf16.msra.mxu0 0
    %927 = vmatprep.subr.bf16.mxu0 0
    %928 = vmatpush2.bf16.msra.mxu0 0
    %929 = vmatprep.subr.bf16.mxu0 0
    %930 = vmatpush2.bf16.msra.mxu0 0
    %931 = vmatprep.subr.bf16.mxu0 0
    %932 = vmatpush2.bf16.msra.mxu0 0
    %933 = vmatprep.subr.bf16.mxu0 0
    %934 = vmatpush2.bf16.msra.mxu0 0
    %935 = vmatprep.subr.bf16.mxu0 0
    %936 = vmatpush2.bf16.msra.mxu0 0
    %937 = vmatprep.mubr.bf16.mxu0 0
    %938 = vmatmul.mubr.bf16.gmra.mxu0 %v844
    %v939 = vpop.f32.mrf.mxu0
    %v940 = vadd.f32 0.0, %v939
    %v941 = vpop.f32.mrf.mxu0
    %v942 = vadd.f32 0.0, %v941
    %v943 = vpop.f32.mrf.mxu0
    %v944 = vpop.f32.mrf.mxu0
    %945 = vdwg.mxu0
    %946 = vmatprep.subr.bf16.mxu0 0
    %947 = vmatpush1.bf16.msra.mxu0 0
    %948 = vmatprep.subr.bf16.mxu0 0
    %949 = vmatpush1.bf16.msra.mxu0 0
    %950 = vmatprep.subr.bf16.mxu0 0
    %951 = vmatpush1.bf16.msra.mxu0 0
    %952 = vmatprep.subr.bf16.mxu0 0
    %953 = vmatpush1.bf16.msra.mxu0 0
    %954 = vmatprep.subr.bf16.mxu0 0
    %955 = vmatpush1.bf16.msra.mxu0 0
    %956 = vmatprep.subr.bf16.mxu0 0
    %957 = vmatpush1.bf16.msra.mxu0 0
    %958 = vmatprep.subr.bf16.mxu0 0
    %959 = vmatpush1.bf16.msra.mxu0 0
    %960 = vmatprep.subr.bf16.mxu0 %v862
    %961 = vmatpush1.bf16.msra.mxu0 %v859
    %962 = vmatprep.subr.bf16.mxu0 0
    %963 = vmatpush2.bf16.msra.mxu0 0
    %964 = vmatprep.subr.bf16.mxu0 0
    %965 = vmatpush2.bf16.msra.mxu0 0
    %966 = vmatprep.subr.bf16.mxu0 0
    %967 = vmatpush2.bf16.msra.mxu0 0
    %968 = vmatprep.subr.bf16.mxu0 0
    %969 = vmatpush2.bf16.msra.mxu0 0
    %970 = vmatprep.subr.bf16.mxu0 0
    %971 = vmatpush2.bf16.msra.mxu0 0
    %972 = vmatprep.subr.bf16.mxu0 0
    %973 = vmatpush2.bf16.msra.mxu0 0
    %974 = vmatprep.subr.bf16.mxu0 0
    %975 = vmatpush2.bf16.msra.mxu0 0
    %976 = vmatprep.subr.bf16.mxu0 0
    %977 = vmatpush2.bf16.msra.mxu0 0
    %978 = vmatprep.mubr.bf16.mxu0 0
    %979 = vmatmul.mubr.bf16.gmra.mxu0 %v844
    %v980 = vpop.f32.mrf.mxu0
    %v981 = vadd.f32 0.0, %v980
    %v982 = vpop.f32.mrf.mxu0
    %v983 = vadd.f32 0.0, %v982
    %v984 = vpop.f32.mrf.mxu0
    %v985 = vpop.f32.mrf.mxu0
    %986 = vdwg.mxu0
    %v987 = vadd.f32 %v792, %v899
    %v988 = vadd.f32 %v793, %v901
    %v989 = vadd.f32 %v794, %v940
    %v990 = vadd.f32 %v795, %v942
    %v991 = vadd.f32 %v796, %v981
    %v992 = vadd.f32 %v797, %v983
    %v993 = vld [vmem:[#allocation2 + $0x4] sm:$0xff]
    %v994 = vld [vmem:[#allocation2 + $0xc] sm:$0xff]
    %v995 = vld [vmem:[#allocation2 + $0x14] sm:$0xff]
    %s996 = scalar_lea.vmem %s4, 8
    %v997 = vld [vmem:[%s996] sm:$0x3]
    %v1001 = vunpack.c.l.b16 %v993
    %v1002 = vunpack.c.h.b16 %v993
    %v1003 = vunpack.c.l.b16 %v994
    %v1004 = vunpack.c.h.b16 %v994
    %v1005 = vunpack.c.l.b16 %v995
    %v1006 = vunpack.c.h.b16 %v995
    %v1007 = vpack.c.b16 %v1001, %v1001
    %v1008 = vpack.c.b16 %v1002, %v1002
    %v1009 = vpack.c.b16 %v1003, %v1003
    %v1010 = vpack.c.b16 %v1004, %v1004
    %v1011 = vpack.c.b16 %v1005, %v1005
    %v1012 = vpack.c.b16 %v1006, %v1006
    %v1014 = vsel %vm320, %v997, 0
    %v1017 = vsel %vm324, %v1007, 0
    %v1020 = vsel %vm324, %v1008, 0
    %v1023 = vsel %vm324, %v1009, 0
    %v1026 = vsel %vm324, %v1010, 0
    %v1029 = vsel %vm324, %v1011, 0
    %v1032 = vsel %vm324, %v1012, 0
    %1034 = vmatprep.subr.bf16.mxu0 0
    %1035 = vmatpush1.bf16.msra.mxu0 0
    %1036 = vmatprep.subr.bf16.mxu0 0
    %1037 = vmatpush1.bf16.msra.mxu0 0
    %1038 = vmatprep.subr.bf16.mxu0 0
    %1039 = vmatpush1.bf16.msra.mxu0 0
    %1040 = vmatprep.subr.bf16.mxu0 0
    %1041 = vmatpush1.bf16.msra.mxu0 0
    %1042 = vmatprep.subr.bf16.mxu0 0
    %1043 = vmatpush1.bf16.msra.mxu0 0
    %1044 = vmatprep.subr.bf16.mxu0 0
    %1045 = vmatpush1.bf16.msra.mxu0 0
    %1046 = vmatprep.subr.bf16.mxu0 0
    %1047 = vmatpush1.bf16.msra.mxu0 0
    %1048 = vmatprep.subr.bf16.mxu0 %v1020
    %1049 = vmatpush1.bf16.msra.mxu0 %v1017
    %1050 = vmatprep.subr.bf16.mxu0 0
    %1051 = vmatpush2.bf16.msra.mxu0 0
    %1052 = vmatprep.subr.bf16.mxu0 0
    %1053 = vmatpush2.bf16.msra.mxu0 0
    %1054 = vmatprep.subr.bf16.mxu0 0
    %1055 = vmatpush2.bf16.msra.mxu0 0
    %1056 = vmatprep.subr.bf16.mxu0 0
    %1057 = vmatpush2.bf16.msra.mxu0 0
    %1058 = vmatprep.subr.bf16.mxu0 0
    %1059 = vmatpush2.bf16.msra.mxu0 0
    %1060 = vmatprep.subr.bf16.mxu0 0
    %1061 = vmatpush2.bf16.msra.mxu0 0
    %1062 = vmatprep.subr.bf16.mxu0 0
    %1063 = vmatpush2.bf16.msra.mxu0 0
    %1064 = vmatprep.subr.bf16.mxu0 0
    %1065 = vmatpush2.bf16.msra.mxu0 0
    %1066 = vmatprep.mubr.bf16.mxu0 0
    %1067 = vmatmul.mubr.bf16.gmra.mxu0 %v1014
    %v1068 = vpop.f32.mrf.mxu0
    %v1069 = vadd.f32 0.0, %v1068
    %v1070 = vpop.f32.mrf.mxu0
    %v1071 = vadd.f32 0.0, %v1070
    %v1072 = vpop.f32.mrf.mxu0
    %v1073 = vpop.f32.mrf.mxu0
    %1074 = vdwg.mxu0
    %1075 = vmatprep.subr.bf16.mxu0 0
    %1076 = vmatpush1.bf16.msra.mxu0 0
    %1077 = vmatprep.subr.bf16.mxu0 0
    %1078 = vmatpush1.bf16.msra.mxu0 0
    %1079 = vmatprep.subr.bf16.mxu0 0
    %1080 = vmatpush1.bf16.msra.mxu0 0
    %1081 = vmatprep.subr.bf16.mxu0 0
    %1082 = vmatpush1.bf16.msra.mxu0 0
    %1083 = vmatprep.subr.bf16.mxu0 0
    %1084 = vmatpush1.bf16.msra.mxu0 0
    %1085 = vmatprep.subr.bf16.mxu0 0
    %1086 = vmatpush1.bf16.msra.mxu0 0
    %1087 = vmatprep.subr.bf16.mxu0 0
    %1088 = vmatpush1.bf16.msra.mxu0 0
    %1089 = vmatprep.subr.bf16.mxu0 %v1026
    %1090 = vmatpush1.bf16.msra.mxu0 %v1023
    %1091 = vmatprep.subr.bf16.mxu0 0
    %1092 = vmatpush2.bf16.msra.mxu0 0
    %1093 = vmatprep.subr.bf16.mxu0 0
    %1094 = vmatpush2.bf16.msra.mxu0 0
    %1095 = vmatprep.subr.bf16.mxu0 0
    %1096 = vmatpush2.bf16.msra.mxu0 0
    %1097 = vmatprep.subr.bf16.mxu0 0
    %1098 = vmatpush2.bf16.msra.mxu0 0
    %1099 = vmatprep.subr.bf16.mxu0 0
    %1100 = vmatpush2.bf16.msra.mxu0 0
    %1101 = vmatprep.subr.bf16.mxu0 0
    %1102 = vmatpush2.bf16.msra.mxu0 0
    %1103 = vmatprep.subr.bf16.mxu0 0
    %1104 = vmatpush2.bf16.msra.mxu0 0
    %1105 = vmatprep.subr.bf16.mxu0 0
    %1106 = vmatpush2.bf16.msra.mxu0 0
    %1107 = vmatprep.mubr.bf16.mxu0 0
    %1108 = vmatmul.mubr.bf16.gmra.mxu0 %v1014
    %v1109 = vpop.f32.mrf.mxu0
    %v1110 = vadd.f32 0.0, %v1109
    %v1111 = vpop.f32.mrf.mxu0
    %v1112 = vadd.f32 0.0, %v1111
    %v1113 = vpop.f32.mrf.mxu0
    %v1114 = vpop.f32.mrf.mxu0
    %1115 = vdwg.mxu0
    %1116 = vmatprep.subr.bf16.mxu0 0
    %1117 = vmatpush1.bf16.msra.mxu0 0
    %1118 = vmatprep.subr.bf16.mxu0 0
    %1119 = vmatpush1.bf16.msra.mxu0 0
    %1120 = vmatprep.subr.bf16.mxu0 0
    %1121 = vmatpush1.bf16.msra.mxu0 0
    %1122 = vmatprep.subr.bf16.mxu0 0
    %1123 = vmatpush1.bf16.msra.mxu0 0
    %1124 = vmatprep.subr.bf16.mxu0 0
    %1125 = vmatpush1.bf16.msra.mxu0 0
    %1126 = vmatprep.subr.bf16.mxu0 0
    %1127 = vmatpush1.bf16.msra.mxu0 0
    %1128 = vmatprep.subr.bf16.mxu0 0
    %1129 = vmatpush1.bf16.msra.mxu0 0
    %1130 = vmatprep.subr.bf16.mxu0 %v1032
    %1131 = vmatpush1.bf16.msra.mxu0 %v1029
    %1132 = vmatprep.subr.bf16.mxu0 0
    %1133 = vmatpush2.bf16.msra.mxu0 0
    %1134 = vmatprep.subr.bf16.mxu0 0
    %1135 = vmatpush2.bf16.msra.mxu0 0
    %1136 = vmatprep.subr.bf16.mxu0 0
    %1137 = vmatpush2.bf16.msra.mxu0 0
    %1138 = vmatprep.subr.bf16.mxu0 0
    %1139 = vmatpush2.bf16.msra.mxu0 0
    %1140 = vmatprep.subr.bf16.mxu0 0
    %1141 = vmatpush2.bf16.msra.mxu0 0
    %1142 = vmatprep.subr.bf16.mxu0 0
    %1143 = vmatpush2.bf16.msra.mxu0 0
    %1144 = vmatprep.subr.bf16.mxu0 0
    %1145 = vmatpush2.bf16.msra.mxu0 0
    %1146 = vmatprep.subr.bf16.mxu0 0
    %1147 = vmatpush2.bf16.msra.mxu0 0
    %1148 = vmatprep.mubr.bf16.mxu0 0
    %1149 = vmatmul.mubr.bf16.gmra.mxu0 %v1014
    %v1150 = vpop.f32.mrf.mxu0
    %v1151 = vadd.f32 0.0, %v1150
    %v1152 = vpop.f32.mrf.mxu0
    %v1153 = vadd.f32 0.0, %v1152
    %v1154 = vpop.f32.mrf.mxu0
    %v1155 = vpop.f32.mrf.mxu0
    %1156 = vdwg.mxu0
    %v1157 = vadd.f32 %v987, %v1069
    %v1158 = vadd.f32 %v988, %v1071
    %v1159 = vadd.f32 %v989, %v1110
    %v1160 = vadd.f32 %v990, %v1112
    %v1161 = vadd.f32 %v991, %v1151
    %v1162 = vadd.f32 %v992, %v1153
    %s1163 = scalar_lea.vmem %s4, 10
    %v1164 = vld [vmem:[%s1163] sm:$0x3]
    %1165 = vrot.lane.b32.xlu0 %v1007, 127
    %v1166 = vpop.permute.xlu0 %1165
    %1167 = vrot.lane.b32.xlu0 %v1008, 127
    %v1168 = vpop.permute.xlu0 %1167
    %1169 = vrot.lane.b32.xlu0 %v1009, 127
    %v1170 = vpop.permute.xlu0 %1169
    %1171 = vrot.lane.b32.xlu0 %v1010, 127
    %v1172 = vpop.permute.xlu0 %1171
    %1173 = vrot.lane.b32.xlu0 %v1011, 127
    %v1174 = vpop.permute.xlu0 %1173
    %1175 = vrot.lane.b32.xlu0 %v1012, 127
    %v1176 = vpop.permute.xlu0 %1175
    %vm1177 = vcmask 1039360
    %v1178 = vsel %vm1177, %v1166, %v1168
    %v1179 = vsel %vm1177, %v1168, %v1170
    %v1180 = vsel %vm1177, %v1170, %v1172
    %v1181 = vsel %vm1177, %v1172, %v1174
    %v1182 = vsel %vm1177, %v1174, %v1176
    %v1184 = vsel %vm320, %v1164, 0
    %v1187 = vsel %vm324, %v1178, 0
    %v1190 = vsel %vm324, %v1179, 0
    %v1193 = vsel %vm324, %v1180, 0
    %v1196 = vsel %vm324, %v1181, 0
    %v1199 = vsel %vm324, %v1182, 0
    %v1202 = vsel %vm324, %v1176, 0
    %1204 = vmatprep.subr.bf16.mxu0 0
    %1205 = vmatpush1.bf16.msra.mxu0 0
    %1206 = vmatprep.subr.bf16.mxu0 0
    %1207 = vmatpush1.bf16.msra.mxu0 0
    %1208 = vmatprep.subr.bf16.mxu0 0
    %1209 = vmatpush1.bf16.msra.mxu0 0
    %1210 = vmatprep.subr.bf16.mxu0 0
    %1211 = vmatpush1.bf16.msra.mxu0 0
    %1212 = vmatprep.subr.bf16.mxu0 0
    %1213 = vmatpush1.bf16.msra.mxu0 0
    %1214 = vmatprep.subr.bf16.mxu0 0
    %1215 = vmatpush1.bf16.msra.mxu0 0
    %1216 = vmatprep.subr.bf16.mxu0 0
    %1217 = vmatpush1.bf16.msra.mxu0 0
    %1218 = vmatprep.subr.bf16.mxu0 %v1190
    %1219 = vmatpush1.bf16.msra.mxu0 %v1187
    %1220 = vmatprep.subr.bf16.mxu0 0
    %1221 = vmatpush2.bf16.msra.mxu0 0
    %1222 = vmatprep.subr.bf16.mxu0 0
    %1223 = vmatpush2.bf16.msra.mxu0 0
    %1224 = vmatprep.subr.bf16.mxu0 0
    %1225 = vmatpush2.bf16.msra.mxu0 0
    %1226 = vmatprep.subr.bf16.mxu0 0
    %1227 = vmatpush2.bf16.msra.mxu0 0
    %1228 = vmatprep.subr.bf16.mxu0 0
    %1229 = vmatpush2.bf16.msra.mxu0 0
    %1230 = vmatprep.subr.bf16.mxu0 0
    %1231 = vmatpush2.bf16.msra.mxu0 0
    %1232 = vmatprep.subr.bf16.mxu0 0
    %1233 = vmatpush2.bf16.msra.mxu0 0
    %1234 = vmatprep.subr.bf16.mxu0 0
    %1235 = vmatpush2.bf16.msra.mxu0 0
    %1236 = vmatprep.mubr.bf16.mxu0 0
    %1237 = vmatmul.mubr.bf16.gmra.mxu0 %v1184
    %v1238 = vpop.f32.mrf.mxu0
    %v1239 = vadd.f32 0.0, %v1238
    %v1240 = vpop.f32.mrf.mxu0
    %v1241 = vadd.f32 0.0, %v1240
    %v1242 = vpop.f32.mrf.mxu0
    %v1243 = vpop.f32.mrf.mxu0
    %1244 = vdwg.mxu0
    %1245 = vmatprep.subr.bf16.mxu0 0
    %1246 = vmatpush1.bf16.msra.mxu0 0
    %1247 = vmatprep.subr.bf16.mxu0 0
    %1248 = vmatpush1.bf16.msra.mxu0 0
    %1249 = vmatprep.subr.bf16.mxu0 0
    %1250 = vmatpush1.bf16.msra.mxu0 0
    %1251 = vmatprep.subr.bf16.mxu0 0
    %1252 = vmatpush1.bf16.msra.mxu0 0
    %1253 = vmatprep.subr.bf16.mxu0 0
    %1254 = vmatpush1.bf16.msra.mxu0 0
    %1255 = vmatprep.subr.bf16.mxu0 0
    %1256 = vmatpush1.bf16.msra.mxu0 0
    %1257 = vmatprep.subr.bf16.mxu0 0
    %1258 = vmatpush1.bf16.msra.mxu0 0
    %1259 = vmatprep.subr.bf16.mxu0 %v1196
    %1260 = vmatpush1.bf16.msra.mxu0 %v1193
    %1261 = vmatprep.subr.bf16.mxu0 0
    %1262 = vmatpush2.bf16.msra.mxu0 0
    %1263 = vmatprep.subr.bf16.mxu0 0
    %1264 = vmatpush2.bf16.msra.mxu0 0
    %1265 = vmatprep.subr.bf16.mxu0 0
    %1266 = vmatpush2.bf16.msra.mxu0 0
    %1267 = vmatprep.subr.bf16.mxu0 0
    %1268 = vmatpush2.bf16.msra.mxu0 0
    %1269 = vmatprep.subr.bf16.mxu0 0
    %1270 = vmatpush2.bf16.msra.mxu0 0
    %1271 = vmatprep.subr.bf16.mxu0 0
    %1272 = vmatpush2.bf16.msra.mxu0 0
    %1273 = vmatprep.subr.bf16.mxu0 0
    %1274 = vmatpush2.bf16.msra.mxu0 0
    %1275 = vmatprep.subr.bf16.mxu0 0
    %1276 = vmatpush2.bf16.msra.mxu0 0
    %1277 = vmatprep.mubr.bf16.mxu0 0
    %1278 = vmatmul.mubr.bf16.gmra.mxu0 %v1184
    %v1279 = vpop.f32.mrf.mxu0
    %v1280 = vadd.f32 0.0, %v1279
    %v1281 = vpop.f32.mrf.mxu0
    %v1282 = vadd.f32 0.0, %v1281
    %v1283 = vpop.f32.mrf.mxu0
    %v1284 = vpop.f32.mrf.mxu0
    %1285 = vdwg.mxu0
    %1286 = vmatprep.subr.bf16.mxu0 0
    %1287 = vmatpush1.bf16.msra.mxu0 0
    %1288 = vmatprep.subr.bf16.mxu0 0
    %1289 = vmatpush1.bf16.msra.mxu0 0
    %1290 = vmatprep.subr.bf16.mxu0 0
    %1291 = vmatpush1.bf16.msra.mxu0 0
    %1292 = vmatprep.subr.bf16.mxu0 0
    %1293 = vmatpush1.bf16.msra.mxu0 0
    %1294 = vmatprep.subr.bf16.mxu0 0
    %1295 = vmatpush1.bf16.msra.mxu0 0
    %1296 = vmatprep.subr.bf16.mxu0 0
    %1297 = vmatpush1.bf16.msra.mxu0 0
    %1298 = vmatprep.subr.bf16.mxu0 0
    %1299 = vmatpush1.bf16.msra.mxu0 0
    %1300 = vmatprep.subr.bf16.mxu0 %v1202
    %1301 = vmatpush1.bf16.msra.mxu0 %v1199
    %1302 = vmatprep.subr.bf16.mxu0 0
    %1303 = vmatpush2.bf16.msra.mxu0 0
    %1304 = vmatprep.subr.bf16.mxu0 0
    %1305 = vmatpush2.bf16.msra.mxu0 0
    %1306 = vmatprep.subr.bf16.mxu0 0
    %1307 = vmatpush2.bf16.msra.mxu0 0
    %1308 = vmatprep.subr.bf16.mxu0 0
    %1309 = vmatpush2.bf16.msra.mxu0 0
    %1310 = vmatprep.subr.bf16.mxu0 0
    %1311 = vmatpush2.bf16.msra.mxu0 0
    %1312 = vmatprep.subr.bf16.mxu0 0
    %1313 = vmatpush2.bf16.msra.mxu0 0
    %1314 = vmatprep.subr.bf16.mxu0 0
    %1315 = vmatpush2.bf16.msra.mxu0 0
    %1316 = vmatprep.subr.bf16.mxu0 0
    %1317 = vmatpush2.bf16.msra.mxu0 0
    %1318 = vmatprep.mubr.bf16.mxu0 0
    %1319 = vmatmul.mubr.bf16.gmra.mxu0 %v1184
    %v1320 = vpop.f32.mrf.mxu0
    %v1321 = vadd.f32 0.0, %v1320
    %v1322 = vpop.f32.mrf.mxu0
    %v1323 = vadd.f32 0.0, %v1322
    %v1324 = vpop.f32.mrf.mxu0
    %v1325 = vpop.f32.mrf.mxu0
    %1326 = vdwg.mxu0
    %v1327 = vadd.f32 %v1157, %v1239
    %v1328 = vadd.f32 %v1158, %v1241
    %v1329 = vadd.f32 %v1159, %v1280
    %v1330 = vadd.f32 %v1160, %v1282
    %v1331 = vadd.f32 %v1161, %v1321
    %v1332 = vadd.f32 %v1162, %v1323
    %s1333 = scalar_lea.vmem %s4, 12
    %v1334 = vld [vmem:[%s1333] sm:$0x3]
    %1335 = vrot.lane.b32.xlu0 %v1007, 112
    %v1336 = vpop.permute.xlu0 %1335
    %1337 = vrot.lane.b32.xlu0 %v1008, 112
    %v1338 = vpop.permute.xlu0 %1337
    %1339 = vrot.lane.b32.xlu0 %v1009, 112
    %v1340 = vpop.permute.xlu0 %1339
    %1341 = vrot.lane.b32.xlu0 %v1010, 112
    %v1342 = vpop.permute.xlu0 %1341
    %1343 = vrot.lane.b32.xlu0 %v1011, 112
    %v1344 = vpop.permute.xlu0 %1343
    %1345 = vrot.lane.b32.xlu0 %v1012, 112
    %v1346 = vpop.permute.xlu0 %1345
    %vm1347 = vcmask 916480
    %v1348 = vsel %vm1347, %v1336, %v1338
    %v1349 = vsel %vm1347, %v1338, %v1340
    %v1350 = vsel %vm1347, %v1340, %v1342
    %v1351 = vsel %vm1347, %v1342, %v1344
    %v1352 = vsel %vm1347, %v1344, %v1346
    %v1354 = vsel %vm320, %v1334, 0
    %v1357 = vsel %vm324, %v1348, 0
    %v1360 = vsel %vm324, %v1349, 0
    %v1363 = vsel %vm324, %v1350, 0
    %v1366 = vsel %vm324, %v1351, 0
    %v1369 = vsel %vm324, %v1352, 0
    %v1372 = vsel %vm324, %v1346, 0
    %1374 = vmatprep.subr.bf16.mxu0 0
    %1375 = vmatpush1.bf16.msra.mxu0 0
    %1376 = vmatprep.subr.bf16.mxu0 0
    %1377 = vmatpush1.bf16.msra.mxu0 0
    %1378 = vmatprep.subr.bf16.mxu0 0
    %1379 = vmatpush1.bf16.msra.mxu0 0
    %1380 = vmatprep.subr.bf16.mxu0 0
    %1381 = vmatpush1.bf16.msra.mxu0 0
    %1382 = vmatprep.subr.bf16.mxu0 0
    %1383 = vmatpush1.bf16.msra.mxu0 0
    %1384 = vmatprep.subr.bf16.mxu0 0
    %1385 = vmatpush1.bf16.msra.mxu0 0
    %1386 = vmatprep.subr.bf16.mxu0 0
    %1387 = vmatpush1.bf16.msra.mxu0 0
    %1388 = vmatprep.subr.bf16.mxu0 %v1360
    %1389 = vmatpush1.bf16.msra.mxu0 %v1357
    %1390 = vmatprep.subr.bf16.mxu0 0
    %1391 = vmatpush2.bf16.msra.mxu0 0
    %1392 = vmatprep.subr.bf16.mxu0 0
    %1393 = vmatpush2.bf16.msra.mxu0 0
    %1394 = vmatprep.subr.bf16.mxu0 0
    %1395 = vmatpush2.bf16.msra.mxu0 0
    %1396 = vmatprep.subr.bf16.mxu0 0
    %1397 = vmatpush2.bf16.msra.mxu0 0
    %1398 = vmatprep.subr.bf16.mxu0 0
    %1399 = vmatpush2.bf16.msra.mxu0 0
    %1400 = vmatprep.subr.bf16.mxu0 0
    %1401 = vmatpush2.bf16.msra.mxu0 0
    %1402 = vmatprep.subr.bf16.mxu0 0
    %1403 = vmatpush2.bf16.msra.mxu0 0
    %1404 = vmatprep.subr.bf16.mxu0 0
    %1405 = vmatpush2.bf16.msra.mxu0 0
    %1406 = vmatprep.mubr.bf16.mxu0 0
    %1407 = vmatmul.mubr.bf16.gmra.mxu0 %v1354
    %v1408 = vpop.f32.mrf.mxu0
    %v1409 = vadd.f32 0.0, %v1408
    %v1410 = vpop.f32.mrf.mxu0
    %v1411 = vadd.f32 0.0, %v1410
    %v1412 = vpop.f32.mrf.mxu0
    %v1413 = vpop.f32.mrf.mxu0
    %1414 = vdwg.mxu0
    %1415 = vmatprep.subr.bf16.mxu0 0
    %1416 = vmatpush1.bf16.msra.mxu0 0
    %1417 = vmatprep.subr.bf16.mxu0 0
    %1418 = vmatpush1.bf16.msra.mxu0 0
    %1419 = vmatprep.subr.bf16.mxu0 0
    %1420 = vmatpush1.bf16.msra.mxu0 0
    %1421 = vmatprep.subr.bf16.mxu0 0
    %1422 = vmatpush1.bf16.msra.mxu0 0
    %1423 = vmatprep.subr.bf16.mxu0 0
    %1424 = vmatpush1.bf16.msra.mxu0 0
    %1425 = vmatprep.subr.bf16.mxu0 0
    %1426 = vmatpush1.bf16.msra.mxu0 0
    %1427 = vmatprep.subr.bf16.mxu0 0
    %1428 = vmatpush1.bf16.msra.mxu0 0
    %1429 = vmatprep.subr.bf16.mxu0 %v1366
    %1430 = vmatpush1.bf16.msra.mxu0 %v1363
    %1431 = vmatprep.subr.bf16.mxu0 0
    %1432 = vmatpush2.bf16.msra.mxu0 0
    %1433 = vmatprep.subr.bf16.mxu0 0
    %1434 = vmatpush2.bf16.msra.mxu0 0
    %1435 = vmatprep.subr.bf16.mxu0 0
    %1436 = vmatpush2.bf16.msra.mxu0 0
    %1437 = vmatprep.subr.bf16.mxu0 0
    %1438 = vmatpush2.bf16.msra.mxu0 0
    %1439 = vmatprep.subr.bf16.mxu0 0
    %1440 = vmatpush2.bf16.msra.mxu0 0
    %1441 = vmatprep.subr.bf16.mxu0 0
    %1442 = vmatpush2.bf16.msra.mxu0 0
    %1443 = vmatprep.subr.bf16.mxu0 0
    %1444 = vmatpush2.bf16.msra.mxu0 0
    %1445 = vmatprep.subr.bf16.mxu0 0
    %1446 = vmatpush2.bf16.msra.mxu0 0
    %1447 = vmatprep.mubr.bf16.mxu0 0
    %1448 = vmatmul.mubr.bf16.gmra.mxu0 %v1354
    %v1449 = vpop.f32.mrf.mxu0
    %v1450 = vadd.f32 0.0, %v1449
    %v1451 = vpop.f32.mrf.mxu0
    %v1452 = vadd.f32 0.0, %v1451
    %v1453 = vpop.f32.mrf.mxu0
    %v1454 = vpop.f32.mrf.mxu0
    %1455 = vdwg.mxu0
    %1456 = vmatprep.subr.bf16.mxu0 0
    %1457 = vmatpush1.bf16.msra.mxu0 0
    %1458 = vmatprep.subr.bf16.mxu0 0
    %1459 = vmatpush1.bf16.msra.mxu0 0
    %1460 = vmatprep.subr.bf16.mxu0 0
    %1461 = vmatpush1.bf16.msra.mxu0 0
    %1462 = vmatprep.subr.bf16.mxu0 0
    %1463 = vmatpush1.bf16.msra.mxu0 0
    %1464 = vmatprep.subr.bf16.mxu0 0
    %1465 = vmatpush1.bf16.msra.mxu0 0
    %1466 = vmatprep.subr.bf16.mxu0 0
    %1467 = vmatpush1.bf16.msra.mxu0 0
    %1468 = vmatprep.subr.bf16.mxu0 0
    %1469 = vmatpush1.bf16.msra.mxu0 0
    %1470 = vmatprep.subr.bf16.mxu0 %v1372
    %1471 = vmatpush1.bf16.msra.mxu0 %v1369
    %1472 = vmatprep.subr.bf16.mxu0 0
    %1473 = vmatpush2.bf16.msra.mxu0 0
    %1474 = vmatprep.subr.bf16.mxu0 0
    %1475 = vmatpush2.bf16.msra.mxu0 0
    %1476 = vmatprep.subr.bf16.mxu0 0
    %1477 = vmatpush2.bf16.msra.mxu0 0
    %1478 = vmatprep.subr.bf16.mxu0 0
    %1479 = vmatpush2.bf16.msra.mxu0 0
    %1480 = vmatprep.subr.bf16.mxu0 0
    %1481 = vmatpush2.bf16.msra.mxu0 0
    %1482 = vmatprep.subr.bf16.mxu0 0
    %1483 = vmatpush2.bf16.msra.mxu0 0
    %1484 = vmatprep.subr.bf16.mxu0 0
    %1485 = vmatpush2.bf16.msra.mxu0 0
    %1486 = vmatprep.subr.bf16.mxu0 0
    %1487 = vmatpush2.bf16.msra.mxu0 0
    %1488 = vmatprep.mubr.bf16.mxu0 0
    %1489 = vmatmul.mubr.bf16.gmra.mxu0 %v1354
    %v1490 = vpop.f32.mrf.mxu0
    %v1491 = vadd.f32 0.0, %v1490
    %v1492 = vpop.f32.mrf.mxu0
    %v1493 = vadd.f32 0.0, %v1492
    %v1494 = vpop.f32.mrf.mxu0
    %v1495 = vpop.f32.mrf.mxu0
    %1496 = vdwg.mxu0
    %v1497 = vadd.f32 %v1327, %v1409
    %v1498 = vadd.f32 %v1328, %v1411
    %v1499 = vadd.f32 %v1329, %v1450
    %v1500 = vadd.f32 %v1330, %v1452
    %v1501 = vadd.f32 %v1331, %v1491
    %v1502 = vadd.f32 %v1332, %v1493
    %s1503 = scalar_lea.vmem %s4, 14
    %v1504 = vld [vmem:[%s1503] sm:$0x3]
    %1505 = vrot.lane.b32.xlu0 %v1007, 111
    %v1506 = vpop.permute.xlu0 %1505
    %1507 = vrot.lane.b32.xlu0 %v1008, 111
    %v1508 = vpop.permute.xlu0 %1507
    %1509 = vrot.lane.b32.xlu0 %v1009, 111
    %v1510 = vpop.permute.xlu0 %1509
    %1511 = vrot.lane.b32.xlu0 %v1010, 111
    %v1512 = vpop.permute.xlu0 %1511
    %1513 = vrot.lane.b32.xlu0 %v1011, 111
    %v1514 = vpop.permute.xlu0 %1513
    %1515 = vrot.lane.b32.xlu0 %v1012, 111
    %v1516 = vpop.permute.xlu0 %1515
    %vm1517 = vcmask 908288
    %v1518 = vsel %vm1517, %v1506, %v1508
    %v1519 = vsel %vm1517, %v1508, %v1510
    %v1520 = vsel %vm1517, %v1510, %v1512
    %v1521 = vsel %vm1517, %v1512, %v1514
    %v1522 = vsel %vm1517, %v1514, %v1516
    %v1524 = vsel %vm320, %v1504, 0
    %v1527 = vsel %vm324, %v1518, 0
    %v1530 = vsel %vm324, %v1519, 0
    %v1533 = vsel %vm324, %v1520, 0
    %v1536 = vsel %vm324, %v1521, 0
    %v1539 = vsel %vm324, %v1522, 0
    %v1542 = vsel %vm324, %v1516, 0
    %1544 = vmatprep.subr.bf16.mxu0 0
    %1545 = vmatpush1.bf16.msra.mxu0 0
    %1546 = vmatprep.subr.bf16.mxu0 0
    %1547 = vmatpush1.bf16.msra.mxu0 0
    %1548 = vmatprep.subr.bf16.mxu0 0
    %1549 = vmatpush1.bf16.msra.mxu0 0
    %1550 = vmatprep.subr.bf16.mxu0 0
    %1551 = vmatpush1.bf16.msra.mxu0 0
    %1552 = vmatprep.subr.bf16.mxu0 0
    %1553 = vmatpush1.bf16.msra.mxu0 0
    %1554 = vmatprep.subr.bf16.mxu0 0
    %1555 = vmatpush1.bf16.msra.mxu0 0
    %1556 = vmatprep.subr.bf16.mxu0 0
    %1557 = vmatpush1.bf16.msra.mxu0 0
    %1558 = vmatprep.subr.bf16.mxu0 %v1530
    %1559 = vmatpush1.bf16.msra.mxu0 %v1527
    %1560 = vmatprep.subr.bf16.mxu0 0
    %1561 = vmatpush2.bf16.msra.mxu0 0
    %1562 = vmatprep.subr.bf16.mxu0 0
    %1563 = vmatpush2.bf16.msra.mxu0 0
    %1564 = vmatprep.subr.bf16.mxu0 0
    %1565 = vmatpush2.bf16.msra.mxu0 0
    %1566 = vmatprep.subr.bf16.mxu0 0
    %1567 = vmatpush2.bf16.msra.mxu0 0
    %1568 = vmatprep.subr.bf16.mxu0 0
    %1569 = vmatpush2.bf16.msra.mxu0 0
    %1570 = vmatprep.subr.bf16.mxu0 0
    %1571 = vmatpush2.bf16.msra.mxu0 0
    %1572 = vmatprep.subr.bf16.mxu0 0
    %1573 = vmatpush2.bf16.msra.mxu0 0
    %1574 = vmatprep.subr.bf16.mxu0 0
    %1575 = vmatpush2.bf16.msra.mxu0 0
    %1576 = vmatprep.mubr.bf16.mxu0 0
    %1577 = vmatmul.mubr.bf16.gmra.mxu0 %v1524
    %v1578 = vpop.f32.mrf.mxu0
    %v1579 = vadd.f32 0.0, %v1578
    %v1580 = vpop.f32.mrf.mxu0
    %v1581 = vadd.f32 0.0, %v1580
    %v1582 = vpop.f32.mrf.mxu0
    %v1583 = vpop.f32.mrf.mxu0
    %1584 = vdwg.mxu0
    %1585 = vmatprep.subr.bf16.mxu0 0
    %1586 = vmatpush1.bf16.msra.mxu0 0
    %1587 = vmatprep.subr.bf16.mxu0 0
    %1588 = vmatpush1.bf16.msra.mxu0 0
    %1589 = vmatprep.subr.bf16.mxu0 0
    %1590 = vmatpush1.bf16.msra.mxu0 0
    %1591 = vmatprep.subr.bf16.mxu0 0
    %1592 = vmatpush1.bf16.msra.mxu0 0
    %1593 = vmatprep.subr.bf16.mxu0 0
    %1594 = vmatpush1.bf16.msra.mxu0 0
    %1595 = vmatprep.subr.bf16.mxu0 0
    %1596 = vmatpush1.bf16.msra.mxu0 0
    %1597 = vmatprep.subr.bf16.mxu0 0
    %1598 = vmatpush1.bf16.msra.mxu0 0
    %1599 = vmatprep.subr.bf16.mxu0 %v1536
    %1600 = vmatpush1.bf16.msra.mxu0 %v1533
    %1601 = vmatprep.subr.bf16.mxu0 0
    %1602 = vmatpush2.bf16.msra.mxu0 0
    %1603 = vmatprep.subr.bf16.mxu0 0
    %1604 = vmatpush2.bf16.msra.mxu0 0
    %1605 = vmatprep.subr.bf16.mxu0 0
    %1606 = vmatpush2.bf16.msra.mxu0 0
    %1607 = vmatprep.subr.bf16.mxu0 0
    %1608 = vmatpush2.bf16.msra.mxu0 0
    %1609 = vmatprep.subr.bf16.mxu0 0
    %1610 = vmatpush2.bf16.msra.mxu0 0
    %1611 = vmatprep.subr.bf16.mxu0 0
    %1612 = vmatpush2.bf16.msra.mxu0 0
    %1613 = vmatprep.subr.bf16.mxu0 0
    %1614 = vmatpush2.bf16.msra.mxu0 0
    %1615 = vmatprep.subr.bf16.mxu0 0
    %1616 = vmatpush2.bf16.msra.mxu0 0
    %1617 = vmatprep.mubr.bf16.mxu0 0
    %1618 = vmatmul.mubr.bf16.gmra.mxu0 %v1524
    %v1619 = vpop.f32.mrf.mxu0
    %v1620 = vadd.f32 0.0, %v1619
    %v1621 = vpop.f32.mrf.mxu0
    %v1622 = vadd.f32 0.0, %v1621
    %v1623 = vpop.f32.mrf.mxu0
    %v1624 = vpop.f32.mrf.mxu0
    %1625 = vdwg.mxu0
    %1626 = vmatprep.subr.bf16.mxu0 0
    %1627 = vmatpush1.bf16.msra.mxu0 0
    %1628 = vmatprep.subr.bf16.mxu0 0
    %1629 = vmatpush1.bf16.msra.mxu0 0
    %1630 = vmatprep.subr.bf16.mxu0 0
    %1631 = vmatpush1.bf16.msra.mxu0 0
    %1632 = vmatprep.subr.bf16.mxu0 0
    %1633 = vmatpush1.bf16.msra.mxu0 0
    %1634 = vmatprep.subr.bf16.mxu0 0
    %1635 = vmatpush1.bf16.msra.mxu0 0
    %1636 = vmatprep.subr.bf16.mxu0 0
    %1637 = vmatpush1.bf16.msra.mxu0 0
    %1638 = vmatprep.subr.bf16.mxu0 0
    %1639 = vmatpush1.bf16.msra.mxu0 0
    %1640 = vmatprep.subr.bf16.mxu0 %v1542
    %1641 = vmatpush1.bf16.msra.mxu0 %v1539
    %1642 = vmatprep.subr.bf16.mxu0 0
    %1643 = vmatpush2.bf16.msra.mxu0 0
    %1644 = vmatprep.subr.bf16.mxu0 0
    %1645 = vmatpush2.bf16.msra.mxu0 0
    %1646 = vmatprep.subr.bf16.mxu0 0
    %1647 = vmatpush2.bf16.msra.mxu0 0
    %1648 = vmatprep.subr.bf16.mxu0 0
    %1649 = vmatpush2.bf16.msra.mxu0 0
    %1650 = vmatprep.subr.bf16.mxu0 0
    %1651 = vmatpush2.bf16.msra.mxu0 0
    %1652 = vmatprep.subr.bf16.mxu0 0
    %1653 = vmatpush2.bf16.msra.mxu0 0
    %1654 = vmatprep.subr.bf16.mxu0 0
    %1655 = vmatpush2.bf16.msra.mxu0 0
    %1656 = vmatprep.subr.bf16.mxu0 0
    %1657 = vmatpush2.bf16.msra.mxu0 0
    %1658 = vmatprep.mubr.bf16.mxu0 0
    %1659 = vmatmul.mubr.bf16.gmra.mxu0 %v1524
    %v1660 = vpop.f32.mrf.mxu0
    %v1661 = vadd.f32 0.0, %v1660
    %v1662 = vpop.f32.mrf.mxu0
    %v1663 = vadd.f32 0.0, %v1662
    %v1664 = vpop.f32.mrf.mxu0
    %v1665 = vpop.f32.mrf.mxu0
    %1666 = vdwg.mxu0
    %v1667 = vadd.f32 %v1497, %v1579
    %v1668 = vadd.f32 %v1498, %v1581
    %v1669 = vadd.f32 %v1499, %v1620
    %v1670 = vadd.f32 %v1500, %v1622
    %v1671 = vadd.f32 %v1501, %v1661
    %v1672 = vadd.f32 %v1502, %v1663
    %s1673 = scalar_lea.vmem %s4, 16
    %v1674 = vld [vmem:[%s1673] sm:$0x3]
    %1675 = vrot.lane.b32.xlu0 %v1007, 110
    %v1676 = vpop.permute.xlu0 %1675
    %1677 = vrot.lane.b32.xlu0 %v1008, 110
    %v1678 = vpop.permute.xlu0 %1677
    %1679 = vrot.lane.b32.xlu0 %v1009, 110
    %v1680 = vpop.permute.xlu0 %1679
    %1681 = vrot.lane.b32.xlu0 %v1010, 110
    %v1682 = vpop.permute.xlu0 %1681
    %1683 = vrot.lane.b32.xlu0 %v1011, 110
    %v1684 = vpop.permute.xlu0 %1683
    %1685 = vrot.lane.b32.xlu0 %v1012, 110
    %v1686 = vpop.permute.xlu0 %1685
    %vm1687 = vcmask 900096
    %v1688 = vsel %vm1687, %v1676, %v1678
    %v1689 = vsel %vm1687, %v1678, %v1680
    %v1690 = vsel %vm1687, %v1680, %v1682
    %v1691 = vsel %vm1687, %v1682, %v1684
    %v1692 = vsel %vm1687, %v1684, %v1686
    %v1694 = vsel %vm320, %v1674, 0
    %v1697 = vsel %vm324, %v1688, 0
    %v1700 = vsel %vm324, %v1689, 0
    %v1703 = vsel %vm324, %v1690, 0
    %v1706 = vsel %vm324, %v1691, 0
    %v1709 = vsel %vm324, %v1692, 0
    %v1712 = vsel %vm324, %v1686, 0
    %1714 = vmatprep.subr.bf16.mxu0 0
    %1715 = vmatpush1.bf16.msra.mxu0 0
    %1716 = vmatprep.subr.bf16.mxu0 0
    %1717 = vmatpush1.bf16.msra.mxu0 0
    %1718 = vmatprep.subr.bf16.mxu0 0
    %1719 = vmatpush1.bf16.msra.mxu0 0
    %1720 = vmatprep.subr.bf16.mxu0 0
    %1721 = vmatpush1.bf16.msra.mxu0 0
    %1722 = vmatprep.subr.bf16.mxu0 0
    %1723 = vmatpush1.bf16.msra.mxu0 0
    %1724 = vmatprep.subr.bf16.mxu0 0
    %1725 = vmatpush1.bf16.msra.mxu0 0
    %1726 = vmatprep.subr.bf16.mxu0 0
    %1727 = vmatpush1.bf16.msra.mxu0 0
    %1728 = vmatprep.subr.bf16.mxu0 %v1700
    %1729 = vmatpush1.bf16.msra.mxu0 %v1697
    %1730 = vmatprep.subr.bf16.mxu0 0
    %1731 = vmatpush2.bf16.msra.mxu0 0
    %1732 = vmatprep.subr.bf16.mxu0 0
    %1733 = vmatpush2.bf16.msra.mxu0 0
    %1734 = vmatprep.subr.bf16.mxu0 0
    %1735 = vmatpush2.bf16.msra.mxu0 0
    %1736 = vmatprep.subr.bf16.mxu0 0
    %1737 = vmatpush2.bf16.msra.mxu0 0
    %1738 = vmatprep.subr.bf16.mxu0 0
    %1739 = vmatpush2.bf16.msra.mxu0 0
    %1740 = vmatprep.subr.bf16.mxu0 0
    %1741 = vmatpush2.bf16.msra.mxu0 0
    %1742 = vmatprep.subr.bf16.mxu0 0
    %1743 = vmatpush2.bf16.msra.mxu0 0
    %1744 = vmatprep.subr.bf16.mxu0 0
    %1745 = vmatpush2.bf16.msra.mxu0 0
    %1746 = vmatprep.mubr.bf16.mxu0 0
    %1747 = vmatmul.mubr.bf16.gmra.mxu0 %v1694
    %v1748 = vpop.f32.mrf.mxu0
    %v1749 = vadd.f32 0.0, %v1748
    %v1750 = vpop.f32.mrf.mxu0
    %v1751 = vadd.f32 0.0, %v1750
    %v1752 = vpop.f32.mrf.mxu0
    %v1753 = vpop.f32.mrf.mxu0
    %1754 = vdwg.mxu0
    %1755 = vmatprep.subr.bf16.mxu0 0
    %1756 = vmatpush1.bf16.msra.mxu0 0
    %1757 = vmatprep.subr.bf16.mxu0 0
    %1758 = vmatpush1.bf16.msra.mxu0 0
    %1759 = vmatprep.subr.bf16.mxu0 0
    %1760 = vmatpush1.bf16.msra.mxu0 0
    %1761 = vmatprep.subr.bf16.mxu0 0
    %1762 = vmatpush1.bf16.msra.mxu0 0
    %1763 = vmatprep.subr.bf16.mxu0 0
    %1764 = vmatpush1.bf16.msra.mxu0 0
    %1765 = vmatprep.subr.bf16.mxu0 0
    %1766 = vmatpush1.bf16.msra.mxu0 0
    %1767 = vmatprep.subr.bf16.mxu0 0
    %1768 = vmatpush1.bf16.msra.mxu0 0
    %1769 = vmatprep.subr.bf16.mxu0 %v1706
    %1770 = vmatpush1.bf16.msra.mxu0 %v1703
    %1771 = vmatprep.subr.bf16.mxu0 0
    %1772 = vmatpush2.bf16.msra.mxu0 0
    %1773 = vmatprep.subr.bf16.mxu0 0
    %1774 = vmatpush2.bf16.msra.mxu0 0
    %1775 = vmatprep.subr.bf16.mxu0 0
    %1776 = vmatpush2.bf16.msra.mxu0 0
    %1777 = vmatprep.subr.bf16.mxu0 0
    %1778 = vmatpush2.bf16.msra.mxu0 0
    %1779 = vmatprep.subr.bf16.mxu0 0
    %1780 = vmatpush2.bf16.msra.mxu0 0
    %1781 = vmatprep.subr.bf16.mxu0 0
    %1782 = vmatpush2.bf16.msra.mxu0 0
    %1783 = vmatprep.subr.bf16.mxu0 0
    %1784 = vmatpush2.bf16.msra.mxu0 0
    %1785 = vmatprep.subr.bf16.mxu0 0
    %1786 = vmatpush2.bf16.msra.mxu0 0
    %1787 = vmatprep.mubr.bf16.mxu0 0
    %1788 = vmatmul.mubr.bf16.gmra.mxu0 %v1694
    %v1789 = vpop.f32.mrf.mxu0
    %v1790 = vadd.f32 0.0, %v1789
    %v1791 = vpop.f32.mrf.mxu0
    %v1792 = vadd.f32 0.0, %v1791
    %v1793 = vpop.f32.mrf.mxu0
    %v1794 = vpop.f32.mrf.mxu0
    %1795 = vdwg.mxu0
    %1796 = vmatprep.subr.bf16.mxu0 0
    %1797 = vmatpush1.bf16.msra.mxu0 0
    %1798 = vmatprep.subr.bf16.mxu0 0
    %1799 = vmatpush1.bf16.msra.mxu0 0
    %1800 = vmatprep.subr.bf16.mxu0 0
    %1801 = vmatpush1.bf16.msra.mxu0 0
    %1802 = vmatprep.subr.bf16.mxu0 0
    %1803 = vmatpush1.bf16.msra.mxu0 0
    %1804 = vmatprep.subr.bf16.mxu0 0
    %1805 = vmatpush1.bf16.msra.mxu0 0
    %1806 = vmatprep.subr.bf16.mxu0 0
    %1807 = vmatpush1.bf16.msra.mxu0 0
    %1808 = vmatprep.subr.bf16.mxu0 0
    %1809 = vmatpush1.bf16.msra.mxu0 0
    %1810 = vmatprep.subr.bf16.mxu0 %v1712
    %1811 = vmatpush1.bf16.msra.mxu0 %v1709
    %1812 = vmatprep.subr.bf16.mxu0 0
    %1813 = vmatpush2.bf16.msra.mxu0 0
    %1814 = vmatprep.subr.bf16.mxu0 0
    %1815 = vmatpush2.bf16.msra.mxu0 0
    %1816 = vmatprep.subr.bf16.mxu0 0
    %1817 = vmatpush2.bf16.msra.mxu0 0
    %1818 = vmatprep.subr.bf16.mxu0 0
    %1819 = vmatpush2.bf16.msra.mxu0 0
    %1820 = vmatprep.subr.bf16.mxu0 0
    %1821 = vmatpush2.bf16.msra.mxu0 0
    %1822 = vmatprep.subr.bf16.mxu0 0
    %1823 = vmatpush2.bf16.msra.mxu0 0
    %1824 = vmatprep.subr.bf16.mxu0 0
    %1825 = vmatpush2.bf16.msra.mxu0 0
    %1826 = vmatprep.subr.bf16.mxu0 0
    %1827 = vmatpush2.bf16.msra.mxu0 0
    %1828 = vmatprep.mubr.bf16.mxu0 0
    %1829 = vmatmul.mubr.bf16.gmra.mxu0 %v1694
    %v1830 = vpop.f32.mrf.mxu0
    %v1831 = vadd.f32 0.0, %v1830
    %v1832 = vpop.f32.mrf.mxu0
    %v1833 = vadd.f32 0.0, %v1832
    %v1834 = vpop.f32.mrf.mxu0
    %v1835 = vpop.f32.mrf.mxu0
    %1836 = vdwg.mxu0
    %v1837 = vadd.f32 %v1667, %v1749
    %v1838 = vadd.f32 %v1668, %v1751
    %v1839 = vadd.f32 %v1669, %v1790
    %v1840 = vadd.f32 %v1670, %v1792
    %v1841 = vadd.f32 %v1671, %v1831
    %v1842 = vadd.f32 %v1672, %v1833
    %v1843 = vld [vmem:[%s6] sm:$0xf]
    %1845 = vset.pattern.permute.xlu0 0
    %1846 = vperm.xlu0 %1845, %v1843
    %v1847 = vpop.permute.xlu0 %1846
    %v1849 = vadd.f32 %v1837, %v1847
    %v1850 = vadd.f32 %v1838, %v1847
    %v1851 = vadd.f32 %v1839, %v1847
    %v1852 = vadd.f32 %v1840, %v1847
    %v1853 = vadd.f32 %v1841, %v1847
    %v1854 = vadd.f32 %v1842, %v1847
    %v1855 = vmax.f32 %v1849, 0.0
    %v1856 = vmax.f32 %v1850, 0.0
    %v1857 = vmax.f32 %v1851, 0.0
    %v1858 = vmax.f32 %v1852, 0.0
    %v1859 = vmax.f32 %v1853, 0.0
    %v1860 = vmax.f32 %v1854, 0.0
    %v1862 = vlaneseq
    %v1863 = vshrl.u32 %v1862, 7
    %v1864 = vsub.s32 0, %v1863
    %v1865 = vrot.slane %v46, %v1864
    %v1866 = vlaneseq
    %v1867 = vshrl.u32 %v1866, 7
    %v1868 = vsub.s32 1, %v1867
    %v1869 = vrot.slane %v46, %v1868
    %v1870 = vlaneseq
    %v1871 = vshrl.u32 %v1870, 7
    %v1872 = vsub.s32 2, %v1871
    %v1873 = vrot.slane %v46, %v1872
    %v1874 = vlaneseq
    %v1875 = vshrl.u32 %v1874, 7
    %v1876 = vsub.s32 3, %v1875
    %v1877 = vrot.slane %v46, %v1876
    %v1878 = vlaneseq
    %v1879 = vshrl.u32 %v1878, 7
    %v1880 = vsub.s32 4, %v1879
    %v1881 = vrot.slane %v46, %v1880
    %v1882 = vlaneseq
    %v1883 = vshrl.u32 %v1882, 7
    %v1884 = vsub.s32 5, %v1883
    %v1885 = vrot.slane %v46, %v1884
    %v1892 = vmul.f32 %v1855, %v1865
    %v1893 = vmul.f32 %v1856, %v1869
    %v1894 = vmul.f32 %v1857, %v1873
    %v1895 = vmul.f32 %v1858, %v1877
    %v1896 = vmul.f32 %v1859, %v1881
    %v1897 = vmul.f32 %v1860, %v1885
    %v1898 = vsel %vm324, %v1892, 0.0
    %v1899 = vsel %vm324, %v1893, 0.0
    %v1900 = vadd.f32 %v1898, %v1899
    %v1901 = vsel %vm324, %v1894, 0.0
    %v1902 = vadd.f32 %v1900, %v1901
    %v1903 = vsel %vm324, %v1895, 0.0
    %v1904 = vadd.f32 %v1902, %v1903
    %v1905 = vsel %vm324, %v1896, 0.0
    %v1906 = vadd.f32 %v1904, %v1905
    %vm1907 = vcmask 125952
    %v1908 = vsel %vm1907, %v1897, 0.0
    %v1909 = vadd.f32 %v1906, %v1908
    %1910 = vadd.xlane.f32.xlu0 %v1909
    %v1911 = vpop.xlane.xlu0 %1910
    %v1912 = vmul.f32 %v1911, 0.001953125
    %v1913 = vsub.f32 %v1892, %v1912
    %v1914 = vsub.f32 %v1893, %v1912
    %v1915 = vsub.f32 %v1894, %v1912
    %v1916 = vsub.f32 %v1895, %v1912
    %v1917 = vsub.f32 %v1896, %v1912
    %v1918 = vsub.f32 %v1897, %v1912
    %v1919 = vmul.f32 %v1913, %v1865
    %v1920 = vmul.f32 %v1914, %v1869
    %v1921 = vmul.f32 %v1915, %v1873
    %v1922 = vmul.f32 %v1916, %v1877
    %v1923 = vmul.f32 %v1917, %v1881
    %v1924 = vmul.f32 %v1918, %v1885
    %v1925 = vmul.f32 %v1919, %v1919
    %v1926 = vmul.f32 %v1920, %v1920
    %v1927 = vmul.f32 %v1921, %v1921
    %v1928 = vmul.f32 %v1922, %v1922
    %v1929 = vmul.f32 %v1923, %v1923
    %v1930 = vmul.f32 %v1924, %v1924
    %v1931 = vsel %vm324, %v1925, 0.0
    %v1932 = vsel %vm324, %v1926, 0.0
    %v1933 = vadd.f32 %v1931, %v1932
    %v1934 = vsel %vm324, %v1927, 0.0
    %v1935 = vadd.f32 %v1933, %v1934
    %v1936 = vsel %vm324, %v1928, 0.0
    %v1937 = vadd.f32 %v1935, %v1936
    %v1938 = vsel %vm324, %v1929, 0.0
    %v1939 = vadd.f32 %v1937, %v1938
    %v1940 = vsel %vm1907, %v1930, 0.0
    %v1941 = vadd.f32 %v1939, %v1940
    %1942 = vadd.xlane.f32.xlu0 %v1941
    %v1943 = vpop.xlane.xlu0 %1942
    %v1944 = vmul.f32 %v1943, 0.001953125
    %v1945 = vadd.f32 %v1944, 1e-05
    %v1946 = vrsqrt.pop %v1945
    %v1947 = vmul.f32 %v1843, %v1946
    %1949 = vset.pattern.permute.xlu0 1
    %1950 = vperm.xlu0 %1949, %v1947
    %v1951 = vpop.permute.xlu0 %1950
    %v1953 = vmul.f32 %v1919, %v1951
    %v1954 = vmul.f32 %v1920, %v1951
    %v1955 = vmul.f32 %v1921, %v1951
    %v1956 = vmul.f32 %v1922, %v1951
    %v1957 = vmul.f32 %v1923, %v1951
    %v1958 = vmul.f32 %v1924, %v1951
    %1959 = vset.pattern.permute.xlu0 2
    %1960 = vperm.xlu0 %1959, %v1843
    %v1961 = vpop.permute.xlu0 %1960
    %v1963 = vadd.f32 %v1953, %v1961
    %v1964 = vadd.f32 %v1954, %v1961
    %v1965 = vadd.f32 %v1955, %v1961
    %v1966 = vadd.f32 %v1956, %v1961
    %v1967 = vadd.f32 %v1957, %v1961
    %v1968 = vadd.f32 %v1958, %v1961
    %v1969 = vmul.f32 %v1963, %v1865
    %v1970 = vmul.f32 %v1964, %v1869
    %v1971 = vmul.f32 %v1965, %v1873
    %v1972 = vmul.f32 %v1966, %v1877
    %v1973 = vmul.f32 %v1967, %v1881
    %v1974 = vmul.f32 %v1968, %v1885
    %v1975 = vpack.c.bf16 %v1969, %v1969
    %v1976 = vpack.c.bf16 %v1970, %v1970
    %v1977 = vpack.c.bf16 %v1971, %v1971
    %v1978 = vpack.c.bf16 %v1972, %v1972
    %v1979 = vpack.c.bf16 %v1973, %v1973
    %v1980 = vpack.c.bf16 %v1974, %v1974
    %v1987 = vunpack.c.l.b16 %v1975
    %v1988 = vunpack.c.l.b16 %v1976
    %v1989 = vunpack.c.l.b16 %v1977
    %v1990 = vunpack.c.l.b16 %v1978
    %v1991 = vunpack.c.l.b16 %v1979
    %v1992 = vunpack.c.l.b16 %v1980
    %v1993 = vpack.c.b16 %v1988, %v1987
    %v1994 = vpack.c.b16 %v1990, %v1989
    %v1995 = vpack.c.b16 %v1992, %v1991
    %1999 = vst [vmem:[#allocation2 + $0x4] sm:$0x33] %v1993
    %2000 = vst [vmem:[#allocation2 + $0xc] sm:$0x33] %v1994
    %vm2001 = vcmask 1041408
    %vm2002 = vcmask 128004
    %vm2003 = vmor %vm2002, %vm2001
    %2004 = vst.msk [vmem:[#allocation2 + $0x14] sm:$0x33] %vm2003, %v1995
    %v2005 = vld [vmem:[#allocation2] sm:$0x33]
    %v2006 = vld [vmem:[#allocation2 + $0x8] sm:$0x33]
    %v2007 = vld [vmem:[#allocation2 + $0x10] sm:$0x33]
    %v2008 = vld [vmem:[%s5] sm:$0x3]
    %s2009 = scalar_lea.vmem %s5, 2
    %v2010 = vld [vmem:[%s2009] sm:$0x3]
    %v2014 = vunpack.c.l.b16 %v2005
    %v2015 = vunpack.c.h.b16 %v2005
    %v2016 = vunpack.c.l.b16 %v2006
    %v2017 = vunpack.c.h.b16 %v2006
    %v2018 = vunpack.c.l.b16 %v2007
    %v2019 = vunpack.c.h.b16 %v2007
    %v2020 = vpack.c.b16 %v2014, %v2014
    %v2021 = vpack.c.b16 %v2015, %v2015
    %v2022 = vpack.c.b16 %v2016, %v2016
    %v2023 = vpack.c.b16 %v2017, %v2017
    %v2024 = vpack.c.b16 %v2018, %v2018
    %v2025 = vpack.c.b16 %v2019, %v2019
    %2026 = vrot.lane.b32.xlu0 %v2020, 17
    %v2027 = vpop.permute.xlu0 %2026
    %2028 = vrot.lane.b32.xlu0 %v2021, 17
    %v2029 = vpop.permute.xlu0 %2028
    %2030 = vrot.lane.b32.xlu0 %v2022, 17
    %v2031 = vpop.permute.xlu0 %2030
    %2032 = vrot.lane.b32.xlu0 %v2023, 17
    %v2033 = vpop.permute.xlu0 %2032
    %2034 = vrot.lane.b32.xlu0 %v2024, 17
    %v2035 = vpop.permute.xlu0 %2034
    %2036 = vrot.lane.b32.xlu0 %v2025, 17
    %v2037 = vpop.permute.xlu0 %2036
    %v2038 = vsel %vm314, %v2027, %v2029
    %v2039 = vsel %vm314, %v2029, %v2031
    %v2040 = vsel %vm314, %v2031, %v2033
    %v2041 = vsel %vm314, %v2033, %v2035
    %v2042 = vsel %vm314, %v2035, %v2037
    %vm2043 = vcmask 31744
    %v2045 = vsel %vm2043, %v2010, 0
    %v2048 = vsel %vm2001, %v2038, 0
    %v2051 = vsel %vm2001, %v2039, 0
    %v2054 = vsel %vm2001, %v2040, 0
    %v2057 = vsel %vm2001, %v2041, 0
    %v2060 = vsel %vm2001, %v2042, 0
    %v2063 = vsel %vm2001, %v2037, 0
    %2065 = vmatprep.subr.bf16.mxu0 0
    %2066 = vmatpush1.bf16.msra.mxu0 0
    %2067 = vmatprep.subr.bf16.mxu0 0
    %2068 = vmatpush1.bf16.msra.mxu0 0
    %2069 = vmatprep.subr.bf16.mxu0 0
    %2070 = vmatpush1.bf16.msra.mxu0 0
    %2071 = vmatprep.subr.bf16.mxu0 0
    %2072 = vmatpush1.bf16.msra.mxu0 0
    %2073 = vmatprep.subr.bf16.mxu0 0
    %2074 = vmatpush1.bf16.msra.mxu0 0
    %2075 = vmatprep.subr.bf16.mxu0 0
    %2076 = vmatpush1.bf16.msra.mxu0 0
    %2077 = vmatprep.subr.bf16.mxu0 0
    %2078 = vmatpush1.bf16.msra.mxu0 0
    %2079 = vmatprep.subr.bf16.mxu0 %v2051
    %2080 = vmatpush1.bf16.msra.mxu0 %v2048
    %2081 = vmatprep.subr.bf16.mxu0 0
    %2082 = vmatpush2.bf16.msra.mxu0 0
    %2083 = vmatprep.subr.bf16.mxu0 0
    %2084 = vmatpush2.bf16.msra.mxu0 0
    %2085 = vmatprep.subr.bf16.mxu0 0
    %2086 = vmatpush2.bf16.msra.mxu0 0
    %2087 = vmatprep.subr.bf16.mxu0 0
    %2088 = vmatpush2.bf16.msra.mxu0 0
    %2089 = vmatprep.subr.bf16.mxu0 0
    %2090 = vmatpush2.bf16.msra.mxu0 0
    %2091 = vmatprep.subr.bf16.mxu0 0
    %2092 = vmatpush2.bf16.msra.mxu0 0
    %2093 = vmatprep.subr.bf16.mxu0 0
    %2094 = vmatpush2.bf16.msra.mxu0 0
    %2095 = vmatprep.subr.bf16.mxu0 0
    %2096 = vmatpush2.bf16.msra.mxu0 0
    %2097 = vmatprep.mubr.bf16.mxu0 0
    %2098 = vmatmul.mubr.bf16.gmra.mxu0 %v2045
    %v2099 = vpop.f32.mrf.mxu0
    %v2100 = vadd.f32 0.0, %v2099
    %v2101 = vpop.f32.mrf.mxu0
    %v2102 = vadd.f32 0.0, %v2101
    %v2103 = vpop.f32.mrf.mxu0
    %v2104 = vpop.f32.mrf.mxu0
    %2105 = vdwg.mxu0
    %2106 = vmatprep.subr.bf16.mxu0 0
    %2107 = vmatpush1.bf16.msra.mxu0 0
    %2108 = vmatprep.subr.bf16.mxu0 0
    %2109 = vmatpush1.bf16.msra.mxu0 0
    %2110 = vmatprep.subr.bf16.mxu0 0
    %2111 = vmatpush1.bf16.msra.mxu0 0
    %2112 = vmatprep.subr.bf16.mxu0 0
    %2113 = vmatpush1.bf16.msra.mxu0 0
    %2114 = vmatprep.subr.bf16.mxu0 0
    %2115 = vmatpush1.bf16.msra.mxu0 0
    %2116 = vmatprep.subr.bf16.mxu0 0
    %2117 = vmatpush1.bf16.msra.mxu0 0
    %2118 = vmatprep.subr.bf16.mxu0 0
    %2119 = vmatpush1.bf16.msra.mxu0 0
    %2120 = vmatprep.subr.bf16.mxu0 %v2057
    %2121 = vmatpush1.bf16.msra.mxu0 %v2054
    %2122 = vmatprep.subr.bf16.mxu0 0
    %2123 = vmatpush2.bf16.msra.mxu0 0
    %2124 = vmatprep.subr.bf16.mxu0 0
    %2125 = vmatpush2.bf16.msra.mxu0 0
    %2126 = vmatprep.subr.bf16.mxu0 0
    %2127 = vmatpush2.bf16.msra.mxu0 0
    %2128 = vmatprep.subr.bf16.mxu0 0
    %2129 = vmatpush2.bf16.msra.mxu0 0
    %2130 = vmatprep.subr.bf16.mxu0 0
    %2131 = vmatpush2.bf16.msra.mxu0 0
    %2132 = vmatprep.subr.bf16.mxu0 0
    %2133 = vmatpush2.bf16.msra.mxu0 0
    %2134 = vmatprep.subr.bf16.mxu0 0
    %2135 = vmatpush2.bf16.msra.mxu0 0
    %2136 = vmatprep.subr.bf16.mxu0 0
    %2137 = vmatpush2.bf16.msra.mxu0 0
    %2138 = vmatprep.mubr.bf16.mxu0 0
    %2139 = vmatmul.mubr.bf16.gmra.mxu0 %v2045
    %v2140 = vpop.f32.mrf.mxu0
    %v2141 = vadd.f32 0.0, %v2140
    %v2142 = vpop.f32.mrf.mxu0
    %v2143 = vadd.f32 0.0, %v2142
    %v2144 = vpop.f32.mrf.mxu0
    %v2145 = vpop.f32.mrf.mxu0
    %2146 = vdwg.mxu0
    %2147 = vmatprep.subr.bf16.mxu0 0
    %2148 = vmatpush1.bf16.msra.mxu0 0
    %2149 = vmatprep.subr.bf16.mxu0 0
    %2150 = vmatpush1.bf16.msra.mxu0 0
    %2151 = vmatprep.subr.bf16.mxu0 0
    %2152 = vmatpush1.bf16.msra.mxu0 0
    %2153 = vmatprep.subr.bf16.mxu0 0
    %2154 = vmatpush1.bf16.msra.mxu0 0
    %2155 = vmatprep.subr.bf16.mxu0 0
    %2156 = vmatpush1.bf16.msra.mxu0 0
    %2157 = vmatprep.subr.bf16.mxu0 0
    %2158 = vmatpush1.bf16.msra.mxu0 0
    %2159 = vmatprep.subr.bf16.mxu0 0
    %2160 = vmatpush1.bf16.msra.mxu0 0
    %2161 = vmatprep.subr.bf16.mxu0 %v2063
    %2162 = vmatpush1.bf16.msra.mxu0 %v2060
    %2163 = vmatprep.subr.bf16.mxu0 0
    %2164 = vmatpush2.bf16.msra.mxu0 0
    %2165 = vmatprep.subr.bf16.mxu0 0
    %2166 = vmatpush2.bf16.msra.mxu0 0
    %2167 = vmatprep.subr.bf16.mxu0 0
    %2168 = vmatpush2.bf16.msra.mxu0 0
    %2169 = vmatprep.subr.bf16.mxu0 0
    %2170 = vmatpush2.bf16.msra.mxu0 0
    %2171 = vmatprep.subr.bf16.mxu0 0
    %2172 = vmatpush2.bf16.msra.mxu0 0
    %2173 = vmatprep.subr.bf16.mxu0 0
    %2174 = vmatpush2.bf16.msra.mxu0 0
    %2175 = vmatprep.subr.bf16.mxu0 0
    %2176 = vmatpush2.bf16.msra.mxu0 0
    %2177 = vmatprep.subr.bf16.mxu0 0
    %2178 = vmatpush2.bf16.msra.mxu0 0
    %2179 = vmatprep.mubr.bf16.mxu0 0
    %2180 = vmatmul.mubr.bf16.gmra.mxu0 %v2045
    %v2181 = vpop.f32.mrf.mxu0
    %v2182 = vadd.f32 0.0, %v2181
    %v2183 = vpop.f32.mrf.mxu0
    %v2184 = vadd.f32 0.0, %v2183
    %v2185 = vpop.f32.mrf.mxu0
    %v2186 = vpop.f32.mrf.mxu0
    %2187 = vdwg.mxu0
    %2188 = vrot.lane.b32.xlu0 %v2020, 18
    %v2189 = vpop.permute.xlu0 %2188
    %2190 = vrot.lane.b32.xlu0 %v2021, 18
    %v2191 = vpop.permute.xlu0 %2190
    %2192 = vrot.lane.b32.xlu0 %v2022, 18
    %v2193 = vpop.permute.xlu0 %2192
    %2194 = vrot.lane.b32.xlu0 %v2023, 18
    %v2195 = vpop.permute.xlu0 %2194
    %2196 = vrot.lane.b32.xlu0 %v2024, 18
    %v2197 = vpop.permute.xlu0 %2196
    %2198 = vrot.lane.b32.xlu0 %v2025, 18
    %v2199 = vpop.permute.xlu0 %2198
    %v2200 = vsel %vm478, %v2189, %v2191
    %v2201 = vsel %vm478, %v2191, %v2193
    %v2202 = vsel %vm478, %v2193, %v2195
    %v2203 = vsel %vm478, %v2195, %v2197
    %v2204 = vsel %vm478, %v2197, %v2199
    %v2206 = vsel %vm2043, %v2008, 0
    %v2209 = vsel %vm2001, %v2200, 0
    %v2212 = vsel %vm2001, %v2201, 0
    %v2215 = vsel %vm2001, %v2202, 0
    %v2218 = vsel %vm2001, %v2203, 0
    %v2221 = vsel %vm2001, %v2204, 0
    %v2224 = vsel %vm2001, %v2199, 0
    %2226 = vmatprep.subr.bf16.mxu0 0
    %2227 = vmatpush1.bf16.msra.mxu0 0
    %2228 = vmatprep.subr.bf16.mxu0 0
    %2229 = vmatpush1.bf16.msra.mxu0 0
    %2230 = vmatprep.subr.bf16.mxu0 0
    %2231 = vmatpush1.bf16.msra.mxu0 0
    %2232 = vmatprep.subr.bf16.mxu0 0
    %2233 = vmatpush1.bf16.msra.mxu0 0
    %2234 = vmatprep.subr.bf16.mxu0 0
    %2235 = vmatpush1.bf16.msra.mxu0 0
    %2236 = vmatprep.subr.bf16.mxu0 0
    %2237 = vmatpush1.bf16.msra.mxu0 0
    %2238 = vmatprep.subr.bf16.mxu0 0
    %2239 = vmatpush1.bf16.msra.mxu0 0
    %2240 = vmatprep.subr.bf16.mxu0 %v2212
    %2241 = vmatpush1.bf16.msra.mxu0 %v2209
    %2242 = vmatprep.subr.bf16.mxu0 0
    %2243 = vmatpush2.bf16.msra.mxu0 0
    %2244 = vmatprep.subr.bf16.mxu0 0
    %2245 = vmatpush2.bf16.msra.mxu0 0
    %2246 = vmatprep.subr.bf16.mxu0 0
    %2247 = vmatpush2.bf16.msra.mxu0 0
    %2248 = vmatprep.subr.bf16.mxu0 0
    %2249 = vmatpush2.bf16.msra.mxu0 0
    %2250 = vmatprep.subr.bf16.mxu0 0
    %2251 = vmatpush2.bf16.msra.mxu0 0
    %2252 = vmatprep.subr.bf16.mxu0 0
    %2253 = vmatpush2.bf16.msra.mxu0 0
    %2254 = vmatprep.subr.bf16.mxu0 0
    %2255 = vmatpush2.bf16.msra.mxu0 0
    %2256 = vmatprep.subr.bf16.mxu0 0
    %2257 = vmatpush2.bf16.msra.mxu0 0
    %2258 = vmatprep.mubr.bf16.mxu0 0
    %2259 = vmatmul.mubr.bf16.gmra.mxu0 %v2206
    %v2260 = vpop.f32.mrf.mxu0
    %v2261 = vadd.f32 %v2100, %v2260
    %v2262 = vpop.f32.mrf.mxu0
    %v2263 = vadd.f32 %v2102, %v2262
    %v2264 = vpop.f32.mrf.mxu0
    %v2265 = vpop.f32.mrf.mxu0
    %2266 = vdwg.mxu0
    %2267 = vmatprep.subr.bf16.mxu0 0
    %2268 = vmatpush1.bf16.msra.mxu0 0
    %2269 = vmatprep.subr.bf16.mxu0 0
    %2270 = vmatpush1.bf16.msra.mxu0 0
    %2271 = vmatprep.subr.bf16.mxu0 0
    %2272 = vmatpush1.bf16.msra.mxu0 0
    %2273 = vmatprep.subr.bf16.mxu0 0
    %2274 = vmatpush1.bf16.msra.mxu0 0
    %2275 = vmatprep.subr.bf16.mxu0 0
    %2276 = vmatpush1.bf16.msra.mxu0 0
    %2277 = vmatprep.subr.bf16.mxu0 0
    %2278 = vmatpush1.bf16.msra.mxu0 0
    %2279 = vmatprep.subr.bf16.mxu0 0
    %2280 = vmatpush1.bf16.msra.mxu0 0
    %2281 = vmatprep.subr.bf16.mxu0 %v2218
    %2282 = vmatpush1.bf16.msra.mxu0 %v2215
    %2283 = vmatprep.subr.bf16.mxu0 0
    %2284 = vmatpush2.bf16.msra.mxu0 0
    %2285 = vmatprep.subr.bf16.mxu0 0
    %2286 = vmatpush2.bf16.msra.mxu0 0
    %2287 = vmatprep.subr.bf16.mxu0 0
    %2288 = vmatpush2.bf16.msra.mxu0 0
    %2289 = vmatprep.subr.bf16.mxu0 0
    %2290 = vmatpush2.bf16.msra.mxu0 0
    %2291 = vmatprep.subr.bf16.mxu0 0
    %2292 = vmatpush2.bf16.msra.mxu0 0
    %2293 = vmatprep.subr.bf16.mxu0 0
    %2294 = vmatpush2.bf16.msra.mxu0 0
    %2295 = vmatprep.subr.bf16.mxu0 0
    %2296 = vmatpush2.bf16.msra.mxu0 0
    %2297 = vmatprep.subr.bf16.mxu0 0
    %2298 = vmatpush2.bf16.msra.mxu0 0
    %2299 = vmatprep.mubr.bf16.mxu0 0
    %2300 = vmatmul.mubr.bf16.gmra.mxu0 %v2206
    %v2301 = vpop.f32.mrf.mxu0
    %v2302 = vadd.f32 %v2141, %v2301
    %v2303 = vpop.f32.mrf.mxu0
    %v2304 = vadd.f32 %v2143, %v2303
    %v2305 = vpop.f32.mrf.mxu0
    %v2306 = vpop.f32.mrf.mxu0
    %2307 = vdwg.mxu0
    %2308 = vmatprep.subr.bf16.mxu0 0
    %2309 = vmatpush1.bf16.msra.mxu0 0
    %2310 = vmatprep.subr.bf16.mxu0 0
    %2311 = vmatpush1.bf16.msra.mxu0 0
    %2312 = vmatprep.subr.bf16.mxu0 0
    %2313 = vmatpush1.bf16.msra.mxu0 0
    %2314 = vmatprep.subr.bf16.mxu0 0
    %2315 = vmatpush1.bf16.msra.mxu0 0
    %2316 = vmatprep.subr.bf16.mxu0 0
    %2317 = vmatpush1.bf16.msra.mxu0 0
    %2318 = vmatprep.subr.bf16.mxu0 0
    %2319 = vmatpush1.bf16.msra.mxu0 0
    %2320 = vmatprep.subr.bf16.mxu0 0
    %2321 = vmatpush1.bf16.msra.mxu0 0
    %2322 = vmatprep.subr.bf16.mxu0 %v2224
    %2323 = vmatpush1.bf16.msra.mxu0 %v2221
    %2324 = vmatprep.subr.bf16.mxu0 0
    %2325 = vmatpush2.bf16.msra.mxu0 0
    %2326 = vmatprep.subr.bf16.mxu0 0
    %2327 = vmatpush2.bf16.msra.mxu0 0
    %2328 = vmatprep.subr.bf16.mxu0 0
    %2329 = vmatpush2.bf16.msra.mxu0 0
    %2330 = vmatprep.subr.bf16.mxu0 0
    %2331 = vmatpush2.bf16.msra.mxu0 0
    %2332 = vmatprep.subr.bf16.mxu0 0
    %2333 = vmatpush2.bf16.msra.mxu0 0
    %2334 = vmatprep.subr.bf16.mxu0 0
    %2335 = vmatpush2.bf16.msra.mxu0 0
    %2336 = vmatprep.subr.bf16.mxu0 0
    %2337 = vmatpush2.bf16.msra.mxu0 0
    %2338 = vmatprep.subr.bf16.mxu0 0
    %2339 = vmatpush2.bf16.msra.mxu0 0
    %2340 = vmatprep.mubr.bf16.mxu0 0
    %2341 = vmatmul.mubr.bf16.gmra.mxu0 %v2206
    %v2342 = vpop.f32.mrf.mxu0
    %v2343 = vadd.f32 %v2182, %v2342
    %v2344 = vpop.f32.mrf.mxu0
    %v2345 = vadd.f32 %v2184, %v2344
    %v2346 = vpop.f32.mrf.mxu0
    %v2347 = vpop.f32.mrf.mxu0
    %2348 = vdwg.mxu0
    %s2349 = scalar_lea.vmem %s5, 4
    %v2350 = vld [vmem:[%s2349] sm:$0x3]
    %2351 = vrot.lane.b32.xlu0 %v2020, 16
    %v2352 = vpop.permute.xlu0 %2351
    %2353 = vrot.lane.b32.xlu0 %v2021, 16
    %v2354 = vpop.permute.xlu0 %2353
    %2355 = vrot.lane.b32.xlu0 %v2022, 16
    %v2356 = vpop.permute.xlu0 %2355
    %2357 = vrot.lane.b32.xlu0 %v2023, 16
    %v2358 = vpop.permute.xlu0 %2357
    %2359 = vrot.lane.b32.xlu0 %v2024, 16
    %v2360 = vpop.permute.xlu0 %2359
    %2361 = vrot.lane.b32.xlu0 %v2025, 16
    %v2362 = vpop.permute.xlu0 %2361
    %v2363 = vsel %vm642, %v2352, %v2354
    %v2364 = vsel %vm642, %v2354, %v2356
    %v2365 = vsel %vm642, %v2356, %v2358
    %v2366 = vsel %vm642, %v2358, %v2360
    %v2367 = vsel %vm642, %v2360, %v2362
    %v2369 = vsel %vm2043, %v2350, 0
    %v2372 = vsel %vm2001, %v2363, 0
    %v2375 = vsel %vm2001, %v2364, 0
    %v2378 = vsel %vm2001, %v2365, 0
    %v2381 = vsel %vm2001, %v2366, 0
    %v2384 = vsel %vm2001, %v2367, 0
    %v2387 = vsel %vm2001, %v2362, 0
    %2389 = vmatprep.subr.bf16.mxu0 0
    %2390 = vmatpush1.bf16.msra.mxu0 0
    %2391 = vmatprep.subr.bf16.mxu0 0
    %2392 = vmatpush1.bf16.msra.mxu0 0
    %2393 = vmatprep.subr.bf16.mxu0 0
    %2394 = vmatpush1.bf16.msra.mxu0 0
    %2395 = vmatprep.subr.bf16.mxu0 0
    %2396 = vmatpush1.bf16.msra.mxu0 0
    %2397 = vmatprep.subr.bf16.mxu0 0
    %2398 = vmatpush1.bf16.msra.mxu0 0
    %2399 = vmatprep.subr.bf16.mxu0 0
    %2400 = vmatpush1.bf16.msra.mxu0 0
    %2401 = vmatprep.subr.bf16.mxu0 0
    %2402 = vmatpush1.bf16.msra.mxu0 0
    %2403 = vmatprep.subr.bf16.mxu0 %v2375
    %2404 = vmatpush1.bf16.msra.mxu0 %v2372
    %2405 = vmatprep.subr.bf16.mxu0 0
    %2406 = vmatpush2.bf16.msra.mxu0 0
    %2407 = vmatprep.subr.bf16.mxu0 0
    %2408 = vmatpush2.bf16.msra.mxu0 0
    %2409 = vmatprep.subr.bf16.mxu0 0
    %2410 = vmatpush2.bf16.msra.mxu0 0
    %2411 = vmatprep.subr.bf16.mxu0 0
    %2412 = vmatpush2.bf16.msra.mxu0 0
    %2413 = vmatprep.subr.bf16.mxu0 0
    %2414 = vmatpush2.bf16.msra.mxu0 0
    %2415 = vmatprep.subr.bf16.mxu0 0
    %2416 = vmatpush2.bf16.msra.mxu0 0
    %2417 = vmatprep.subr.bf16.mxu0 0
    %2418 = vmatpush2.bf16.msra.mxu0 0
    %2419 = vmatprep.subr.bf16.mxu0 0
    %2420 = vmatpush2.bf16.msra.mxu0 0
    %2421 = vmatprep.mubr.bf16.mxu0 0
    %2422 = vmatmul.mubr.bf16.gmra.mxu0 %v2369
    %v2423 = vpop.f32.mrf.mxu0
    %v2424 = vadd.f32 0.0, %v2423
    %v2425 = vpop.f32.mrf.mxu0
    %v2426 = vadd.f32 0.0, %v2425
    %v2427 = vpop.f32.mrf.mxu0
    %v2428 = vpop.f32.mrf.mxu0
    %2429 = vdwg.mxu0
    %2430 = vmatprep.subr.bf16.mxu0 0
    %2431 = vmatpush1.bf16.msra.mxu0 0
    %2432 = vmatprep.subr.bf16.mxu0 0
    %2433 = vmatpush1.bf16.msra.mxu0 0
    %2434 = vmatprep.subr.bf16.mxu0 0
    %2435 = vmatpush1.bf16.msra.mxu0 0
    %2436 = vmatprep.subr.bf16.mxu0 0
    %2437 = vmatpush1.bf16.msra.mxu0 0
    %2438 = vmatprep.subr.bf16.mxu0 0
    %2439 = vmatpush1.bf16.msra.mxu0 0
    %2440 = vmatprep.subr.bf16.mxu0 0
    %2441 = vmatpush1.bf16.msra.mxu0 0
    %2442 = vmatprep.subr.bf16.mxu0 0
    %2443 = vmatpush1.bf16.msra.mxu0 0
    %2444 = vmatprep.subr.bf16.mxu0 %v2381
    %2445 = vmatpush1.bf16.msra.mxu0 %v2378
    %2446 = vmatprep.subr.bf16.mxu0 0
    %2447 = vmatpush2.bf16.msra.mxu0 0
    %2448 = vmatprep.subr.bf16.mxu0 0
    %2449 = vmatpush2.bf16.msra.mxu0 0
    %2450 = vmatprep.subr.bf16.mxu0 0
    %2451 = vmatpush2.bf16.msra.mxu0 0
    %2452 = vmatprep.subr.bf16.mxu0 0
    %2453 = vmatpush2.bf16.msra.mxu0 0
    %2454 = vmatprep.subr.bf16.mxu0 0
    %2455 = vmatpush2.bf16.msra.mxu0 0
    %2456 = vmatprep.subr.bf16.mxu0 0
    %2457 = vmatpush2.bf16.msra.mxu0 0
    %2458 = vmatprep.subr.bf16.mxu0 0
    %2459 = vmatpush2.bf16.msra.mxu0 0
    %2460 = vmatprep.subr.bf16.mxu0 0
    %2461 = vmatpush2.bf16.msra.mxu0 0
    %2462 = vmatprep.mubr.bf16.mxu0 0
    %2463 = vmatmul.mubr.bf16.gmra.mxu0 %v2369
    %v2464 = vpop.f32.mrf.mxu0
    %v2465 = vadd.f32 0.0, %v2464
    %v2466 = vpop.f32.mrf.mxu0
    %v2467 = vadd.f32 0.0, %v2466
    %v2468 = vpop.f32.mrf.mxu0
    %v2469 = vpop.f32.mrf.mxu0
    %2470 = vdwg.mxu0
    %2471 = vmatprep.subr.bf16.mxu0 0
    %2472 = vmatpush1.bf16.msra.mxu0 0
    %2473 = vmatprep.subr.bf16.mxu0 0
    %2474 = vmatpush1.bf16.msra.mxu0 0
    %2475 = vmatprep.subr.bf16.mxu0 0
    %2476 = vmatpush1.bf16.msra.mxu0 0
    %2477 = vmatprep.subr.bf16.mxu0 0
    %2478 = vmatpush1.bf16.msra.mxu0 0
    %2479 = vmatprep.subr.bf16.mxu0 0
    %2480 = vmatpush1.bf16.msra.mxu0 0
    %2481 = vmatprep.subr.bf16.mxu0 0
    %2482 = vmatpush1.bf16.msra.mxu0 0
    %2483 = vmatprep.subr.bf16.mxu0 0
    %2484 = vmatpush1.bf16.msra.mxu0 0
    %2485 = vmatprep.subr.bf16.mxu0 %v2387
    %2486 = vmatpush1.bf16.msra.mxu0 %v2384
    %2487 = vmatprep.subr.bf16.mxu0 0
    %2488 = vmatpush2.bf16.msra.mxu0 0
    %2489 = vmatprep.subr.bf16.mxu0 0
    %2490 = vmatpush2.bf16.msra.mxu0 0
    %2491 = vmatprep.subr.bf16.mxu0 0
    %2492 = vmatpush2.bf16.msra.mxu0 0
    %2493 = vmatprep.subr.bf16.mxu0 0
    %2494 = vmatpush2.bf16.msra.mxu0 0
    %2495 = vmatprep.subr.bf16.mxu0 0
    %2496 = vmatpush2.bf16.msra.mxu0 0
    %2497 = vmatprep.subr.bf16.mxu0 0
    %2498 = vmatpush2.bf16.msra.mxu0 0
    %2499 = vmatprep.subr.bf16.mxu0 0
    %2500 = vmatpush2.bf16.msra.mxu0 0
    %2501 = vmatprep.subr.bf16.mxu0 0
    %2502 = vmatpush2.bf16.msra.mxu0 0
    %2503 = vmatprep.mubr.bf16.mxu0 0
    %2504 = vmatmul.mubr.bf16.gmra.mxu0 %v2369
    %v2505 = vpop.f32.mrf.mxu0
    %v2506 = vadd.f32 0.0, %v2505
    %v2507 = vpop.f32.mrf.mxu0
    %v2508 = vadd.f32 0.0, %v2507
    %v2509 = vpop.f32.mrf.mxu0
    %v2510 = vpop.f32.mrf.mxu0
    %2511 = vdwg.mxu0
    %v2512 = vadd.f32 %v2261, %v2424
    %v2513 = vadd.f32 %v2263, %v2426
    %v2514 = vadd.f32 %v2302, %v2465
    %v2515 = vadd.f32 %v2304, %v2467
    %v2516 = vadd.f32 %v2343, %v2506
    %v2517 = vadd.f32 %v2345, %v2508
    %v2518 = vld [vmem:[#allocation2] sm:$0x33]
    %v2519 = vld [vmem:[#allocation2 + $0x8] sm:$0x33]
    %v2520 = vld [vmem:[#allocation2 + $0x10] sm:$0x33]
    %v2521 = vld [vmem:[#allocation2 + $0x18] sm:$0x3]
    %s2522 = scalar_lea.vmem %s5, 6
    %v2523 = vld [vmem:[%s2522] sm:$0x3]
    %v2528 = vunpack.c.l.b16 %v2518
    %v2529 = vunpack.c.h.b16 %v2518
    %v2530 = vunpack.c.l.b16 %v2519
    %v2531 = vunpack.c.h.b16 %v2519
    %v2532 = vunpack.c.l.b16 %v2520
    %v2533 = vunpack.c.h.b16 %v2520
    %v2534 = vunpack.c.l.b16 %v2521
    %v2535 = vpack.c.b16 %v2528, %v2528
    %v2536 = vpack.c.b16 %v2529, %v2529
    %v2537 = vpack.c.b16 %v2530, %v2530
    %v2538 = vpack.c.b16 %v2531, %v2531
    %v2539 = vpack.c.b16 %v2532, %v2532
    %v2540 = vpack.c.b16 %v2533, %v2533
    %v2541 = vpack.c.b16 %v2534, %v2534
    %2542 = vrot.lane.b32.xlu0 %v2535, 1
    %v2543 = vpop.permute.xlu0 %2542
    %2544 = vrot.lane.b32.xlu0 %v2536, 1
    %v2545 = vpop.permute.xlu0 %2544
    %2546 = vrot.lane.b32.xlu0 %v2537, 1
    %v2547 = vpop.permute.xlu0 %2546
    %2548 = vrot.lane.b32.xlu0 %v2538, 1
    %v2549 = vpop.permute.xlu0 %2548
    %2550 = vrot.lane.b32.xlu0 %v2539, 1
    %v2551 = vpop.permute.xlu0 %2550
    %2552 = vrot.lane.b32.xlu0 %v2540, 1
    %v2553 = vpop.permute.xlu0 %2552
    %2554 = vrot.lane.b32.xlu0 %v2541, 1
    %v2555 = vpop.permute.xlu0 %2554
    %v2556 = vsel %vm836, %v2543, %v2545
    %v2557 = vsel %vm836, %v2545, %v2547
    %v2558 = vsel %vm836, %v2547, %v2549
    %v2559 = vsel %vm836, %v2549, %v2551
    %v2560 = vsel %vm836, %v2551, %v2553
    %v2561 = vsel %vm836, %v2553, %v2555
    %v2563 = vsel %vm2043, %v2523, 0
    %v2566 = vsel %vm2001, %v2556, 0
    %v2569 = vsel %vm2001, %v2557, 0
    %v2572 = vsel %vm2001, %v2558, 0
    %v2575 = vsel %vm2001, %v2559, 0
    %v2578 = vsel %vm2001, %v2560, 0
    %v2581 = vsel %vm2001, %v2561, 0
    %2583 = vmatprep.subr.bf16.mxu0 0
    %2584 = vmatpush1.bf16.msra.mxu0 0
    %2585 = vmatprep.subr.bf16.mxu0 0
    %2586 = vmatpush1.bf16.msra.mxu0 0
    %2587 = vmatprep.subr.bf16.mxu0 0
    %2588 = vmatpush1.bf16.msra.mxu0 0
    %2589 = vmatprep.subr.bf16.mxu0 0
    %2590 = vmatpush1.bf16.msra.mxu0 0
    %2591 = vmatprep.subr.bf16.mxu0 0
    %2592 = vmatpush1.bf16.msra.mxu0 0
    %2593 = vmatprep.subr.bf16.mxu0 0
    %2594 = vmatpush1.bf16.msra.mxu0 0
    %2595 = vmatprep.subr.bf16.mxu0 0
    %2596 = vmatpush1.bf16.msra.mxu0 0
    %2597 = vmatprep.subr.bf16.mxu0 %v2569
    %2598 = vmatpush1.bf16.msra.mxu0 %v2566
    %2599 = vmatprep.subr.bf16.mxu0 0
    %2600 = vmatpush2.bf16.msra.mxu0 0
    %2601 = vmatprep.subr.bf16.mxu0 0
    %2602 = vmatpush2.bf16.msra.mxu0 0
    %2603 = vmatprep.subr.bf16.mxu0 0
    %2604 = vmatpush2.bf16.msra.mxu0 0
    %2605 = vmatprep.subr.bf16.mxu0 0
    %2606 = vmatpush2.bf16.msra.mxu0 0
    %2607 = vmatprep.subr.bf16.mxu0 0
    %2608 = vmatpush2.bf16.msra.mxu0 0
    %2609 = vmatprep.subr.bf16.mxu0 0
    %2610 = vmatpush2.bf16.msra.mxu0 0
    %2611 = vmatprep.subr.bf16.mxu0 0
    %2612 = vmatpush2.bf16.msra.mxu0 0
    %2613 = vmatprep.subr.bf16.mxu0 0
    %2614 = vmatpush2.bf16.msra.mxu0 0
    %2615 = vmatprep.mubr.bf16.mxu0 0
    %2616 = vmatmul.mubr.bf16.gmra.mxu0 %v2563
    %v2617 = vpop.f32.mrf.mxu0
    %v2618 = vadd.f32 0.0, %v2617
    %v2619 = vpop.f32.mrf.mxu0
    %v2620 = vadd.f32 0.0, %v2619
    %v2621 = vpop.f32.mrf.mxu0
    %v2622 = vpop.f32.mrf.mxu0
    %2623 = vdwg.mxu0
    %2624 = vmatprep.subr.bf16.mxu0 0
    %2625 = vmatpush1.bf16.msra.mxu0 0
    %2626 = vmatprep.subr.bf16.mxu0 0
    %2627 = vmatpush1.bf16.msra.mxu0 0
    %2628 = vmatprep.subr.bf16.mxu0 0
    %2629 = vmatpush1.bf16.msra.mxu0 0
    %2630 = vmatprep.subr.bf16.mxu0 0
    %2631 = vmatpush1.bf16.msra.mxu0 0
    %2632 = vmatprep.subr.bf16.mxu0 0
    %2633 = vmatpush1.bf16.msra.mxu0 0
    %2634 = vmatprep.subr.bf16.mxu0 0
    %2635 = vmatpush1.bf16.msra.mxu0 0
    %2636 = vmatprep.subr.bf16.mxu0 0
    %2637 = vmatpush1.bf16.msra.mxu0 0
    %2638 = vmatprep.subr.bf16.mxu0 %v2575
    %2639 = vmatpush1.bf16.msra.mxu0 %v2572
    %2640 = vmatprep.subr.bf16.mxu0 0
    %2641 = vmatpush2.bf16.msra.mxu0 0
    %2642 = vmatprep.subr.bf16.mxu0 0
    %2643 = vmatpush2.bf16.msra.mxu0 0
    %2644 = vmatprep.subr.bf16.mxu0 0
    %2645 = vmatpush2.bf16.msra.mxu0 0
    %2646 = vmatprep.subr.bf16.mxu0 0
    %2647 = vmatpush2.bf16.msra.mxu0 0
    %2648 = vmatprep.subr.bf16.mxu0 0
    %2649 = vmatpush2.bf16.msra.mxu0 0
    %2650 = vmatprep.subr.bf16.mxu0 0
    %2651 = vmatpush2.bf16.msra.mxu0 0
    %2652 = vmatprep.subr.bf16.mxu0 0
    %2653 = vmatpush2.bf16.msra.mxu0 0
    %2654 = vmatprep.subr.bf16.mxu0 0
    %2655 = vmatpush2.bf16.msra.mxu0 0
    %2656 = vmatprep.mubr.bf16.mxu0 0
    %2657 = vmatmul.mubr.bf16.gmra.mxu0 %v2563
    %v2658 = vpop.f32.mrf.mxu0
    %v2659 = vadd.f32 0.0, %v2658
    %v2660 = vpop.f32.mrf.mxu0
    %v2661 = vadd.f32 0.0, %v2660
    %v2662 = vpop.f32.mrf.mxu0
    %v2663 = vpop.f32.mrf.mxu0
    %2664 = vdwg.mxu0
    %2665 = vmatprep.subr.bf16.mxu0 0
    %2666 = vmatpush1.bf16.msra.mxu0 0
    %2667 = vmatprep.subr.bf16.mxu0 0
    %2668 = vmatpush1.bf16.msra.mxu0 0
    %2669 = vmatprep.subr.bf16.mxu0 0
    %2670 = vmatpush1.bf16.msra.mxu0 0
    %2671 = vmatprep.subr.bf16.mxu0 0
    %2672 = vmatpush1.bf16.msra.mxu0 0
    %2673 = vmatprep.subr.bf16.mxu0 0
    %2674 = vmatpush1.bf16.msra.mxu0 0
    %2675 = vmatprep.subr.bf16.mxu0 0
    %2676 = vmatpush1.bf16.msra.mxu0 0
    %2677 = vmatprep.subr.bf16.mxu0 0
    %2678 = vmatpush1.bf16.msra.mxu0 0
    %2679 = vmatprep.subr.bf16.mxu0 %v2581
    %2680 = vmatpush1.bf16.msra.mxu0 %v2578
    %2681 = vmatprep.subr.bf16.mxu0 0
    %2682 = vmatpush2.bf16.msra.mxu0 0
    %2683 = vmatprep.subr.bf16.mxu0 0
    %2684 = vmatpush2.bf16.msra.mxu0 0
    %2685 = vmatprep.subr.bf16.mxu0 0
    %2686 = vmatpush2.bf16.msra.mxu0 0
    %2687 = vmatprep.subr.bf16.mxu0 0
    %2688 = vmatpush2.bf16.msra.mxu0 0
    %2689 = vmatprep.subr.bf16.mxu0 0
    %2690 = vmatpush2.bf16.msra.mxu0 0
    %2691 = vmatprep.subr.bf16.mxu0 0
    %2692 = vmatpush2.bf16.msra.mxu0 0
    %2693 = vmatprep.subr.bf16.mxu0 0
    %2694 = vmatpush2.bf16.msra.mxu0 0
    %2695 = vmatprep.subr.bf16.mxu0 0
    %2696 = vmatpush2.bf16.msra.mxu0 0
    %2697 = vmatprep.mubr.bf16.mxu0 0
    %2698 = vmatmul.mubr.bf16.gmra.mxu0 %v2563
    %v2699 = vpop.f32.mrf.mxu0
    %v2700 = vadd.f32 0.0, %v2699
    %v2701 = vpop.f32.mrf.mxu0
    %v2702 = vadd.f32 0.0, %v2701
    %v2703 = vpop.f32.mrf.mxu0
    %v2704 = vpop.f32.mrf.mxu0
    %2705 = vdwg.mxu0
    %v2706 = vadd.f32 %v2512, %v2618
    %v2707 = vadd.f32 %v2513, %v2620
    %v2708 = vadd.f32 %v2514, %v2659
    %v2709 = vadd.f32 %v2515, %v2661
    %v2710 = vadd.f32 %v2516, %v2700
    %v2711 = vadd.f32 %v2517, %v2702
    %v2712 = vld [vmem:[#allocation2 + $0x4] sm:$0x33]
    %v2713 = vld [vmem:[#allocation2 + $0xc] sm:$0x33]
    %v2714 = vld [vmem:[#allocation2 + $0x14] sm:$0x33]
    %s2715 = scalar_lea.vmem %s5, 8
    %v2716 = vld [vmem:[%s2715] sm:$0x3]
    %v2720 = vunpack.c.l.b16 %v2712
    %v2721 = vunpack.c.h.b16 %v2712
    %v2722 = vunpack.c.l.b16 %v2713
    %v2723 = vunpack.c.h.b16 %v2713
    %v2724 = vunpack.c.l.b16 %v2714
    %v2725 = vunpack.c.h.b16 %v2714
    %v2726 = vpack.c.b16 %v2720, %v2720
    %v2727 = vpack.c.b16 %v2721, %v2721
    %v2728 = vpack.c.b16 %v2722, %v2722
    %v2729 = vpack.c.b16 %v2723, %v2723
    %v2730 = vpack.c.b16 %v2724, %v2724
    %v2731 = vpack.c.b16 %v2725, %v2725
    %v2733 = vsel %vm2043, %v2716, 0
    %v2736 = vsel %vm2001, %v2726, 0
    %v2739 = vsel %vm2001, %v2727, 0
    %v2742 = vsel %vm2001, %v2728, 0
    %v2745 = vsel %vm2001, %v2729, 0
    %v2748 = vsel %vm2001, %v2730, 0
    %v2751 = vsel %vm2001, %v2731, 0
    %2753 = vmatprep.subr.bf16.mxu0 0
    %2754 = vmatpush1.bf16.msra.mxu0 0
    %2755 = vmatprep.subr.bf16.mxu0 0
    %2756 = vmatpush1.bf16.msra.mxu0 0
    %2757 = vmatprep.subr.bf16.mxu0 0
    %2758 = vmatpush1.bf16.msra.mxu0 0
    %2759 = vmatprep.subr.bf16.mxu0 0
    %2760 = vmatpush1.bf16.msra.mxu0 0
    %2761 = vmatprep.subr.bf16.mxu0 0
    %2762 = vmatpush1.bf16.msra.mxu0 0
    %2763 = vmatprep.subr.bf16.mxu0 0
    %2764 = vmatpush1.bf16.msra.mxu0 0
    %2765 = vmatprep.subr.bf16.mxu0 0
    %2766 = vmatpush1.bf16.msra.mxu0 0
    %2767 = vmatprep.subr.bf16.mxu0 %v2739
    %2768 = vmatpush1.bf16.msra.mxu0 %v2736
    %2769 = vmatprep.subr.bf16.mxu0 0
    %2770 = vmatpush2.bf16.msra.mxu0 0
    %2771 = vmatprep.subr.bf16.mxu0 0
    %2772 = vmatpush2.bf16.msra.mxu0 0
    %2773 = vmatprep.subr.bf16.mxu0 0
    %2774 = vmatpush2.bf16.msra.mxu0 0
    %2775 = vmatprep.subr.bf16.mxu0 0
    %2776 = vmatpush2.bf16.msra.mxu0 0
    %2777 = vmatprep.subr.bf16.mxu0 0
    %2778 = vmatpush2.bf16.msra.mxu0 0
    %2779 = vmatprep.subr.bf16.mxu0 0
    %2780 = vmatpush2.bf16.msra.mxu0 0
    %2781 = vmatprep.subr.bf16.mxu0 0
    %2782 = vmatpush2.bf16.msra.mxu0 0
    %2783 = vmatprep.subr.bf16.mxu0 0
    %2784 = vmatpush2.bf16.msra.mxu0 0
    %2785 = vmatprep.mubr.bf16.mxu0 0
    %2786 = vmatmul.mubr.bf16.gmra.mxu0 %v2733
    %v2787 = vpop.f32.mrf.mxu0
    %v2788 = vadd.f32 0.0, %v2787
    %v2789 = vpop.f32.mrf.mxu0
    %v2790 = vadd.f32 0.0, %v2789
    %v2791 = vpop.f32.mrf.mxu0
    %v2792 = vpop.f32.mrf.mxu0
    %2793 = vdwg.mxu0
    %2794 = vmatprep.subr.bf16.mxu0 0
    %2795 = vmatpush1.bf16.msra.mxu0 0
    %2796 = vmatprep.subr.bf16.mxu0 0
    %2797 = vmatpush1.bf16.msra.mxu0 0
    %2798 = vmatprep.subr.bf16.mxu0 0
    %2799 = vmatpush1.bf16.msra.mxu0 0
    %2800 = vmatprep.subr.bf16.mxu0 0
    %2801 = vmatpush1.bf16.msra.mxu0 0
    %2802 = vmatprep.subr.bf16.mxu0 0
    %2803 = vmatpush1.bf16.msra.mxu0 0
    %2804 = vmatprep.subr.bf16.mxu0 0
    %2805 = vmatpush1.bf16.msra.mxu0 0
    %2806 = vmatprep.subr.bf16.mxu0 0
    %2807 = vmatpush1.bf16.msra.mxu0 0
    %2808 = vmatprep.subr.bf16.mxu0 %v2745
    %2809 = vmatpush1.bf16.msra.mxu0 %v2742
    %2810 = vmatprep.subr.bf16.mxu0 0
    %2811 = vmatpush2.bf16.msra.mxu0 0
    %2812 = vmatprep.subr.bf16.mxu0 0
    %2813 = vmatpush2.bf16.msra.mxu0 0
    %2814 = vmatprep.subr.bf16.mxu0 0
    %2815 = vmatpush2.bf16.msra.mxu0 0
    %2816 = vmatprep.subr.bf16.mxu0 0
    %2817 = vmatpush2.bf16.msra.mxu0 0
    %2818 = vmatprep.subr.bf16.mxu0 0
    %2819 = vmatpush2.bf16.msra.mxu0 0
    %2820 = vmatprep.subr.bf16.mxu0 0
    %2821 = vmatpush2.bf16.msra.mxu0 0
    %2822 = vmatprep.subr.bf16.mxu0 0
    %2823 = vmatpush2.bf16.msra.mxu0 0
    %2824 = vmatprep.subr.bf16.mxu0 0
    %2825 = vmatpush2.bf16.msra.mxu0 0
    %2826 = vmatprep.mubr.bf16.mxu0 0
    %2827 = vmatmul.mubr.bf16.gmra.mxu0 %v2733
    %v2828 = vpop.f32.mrf.mxu0
    %v2829 = vadd.f32 0.0, %v2828
    %v2830 = vpop.f32.mrf.mxu0
    %v2831 = vadd.f32 0.0, %v2830
    %v2832 = vpop.f32.mrf.mxu0
    %v2833 = vpop.f32.mrf.mxu0
    %2834 = vdwg.mxu0
    %2835 = vmatprep.subr.bf16.mxu0 0
    %2836 = vmatpush1.bf16.msra.mxu0 0
    %2837 = vmatprep.subr.bf16.mxu0 0
    %2838 = vmatpush1.bf16.msra.mxu0 0
    %2839 = vmatprep.subr.bf16.mxu0 0
    %2840 = vmatpush1.bf16.msra.mxu0 0
    %2841 = vmatprep.subr.bf16.mxu0 0
    %2842 = vmatpush1.bf16.msra.mxu0 0
    %2843 = vmatprep.subr.bf16.mxu0 0
    %2844 = vmatpush1.bf16.msra.mxu0 0
    %2845 = vmatprep.subr.bf16.mxu0 0
    %2846 = vmatpush1.bf16.msra.mxu0 0
    %2847 = vmatprep.subr.bf16.mxu0 0
    %2848 = vmatpush1.bf16.msra.mxu0 0
    %2849 = vmatprep.subr.bf16.mxu0 %v2751
    %2850 = vmatpush1.bf16.msra.mxu0 %v2748
    %2851 = vmatprep.subr.bf16.mxu0 0
    %2852 = vmatpush2.bf16.msra.mxu0 0
    %2853 = vmatprep.subr.bf16.mxu0 0
    %2854 = vmatpush2.bf16.msra.mxu0 0
    %2855 = vmatprep.subr.bf16.mxu0 0
    %2856 = vmatpush2.bf16.msra.mxu0 0
    %2857 = vmatprep.subr.bf16.mxu0 0
    %2858 = vmatpush2.bf16.msra.mxu0 0
    %2859 = vmatprep.subr.bf16.mxu0 0
    %2860 = vmatpush2.bf16.msra.mxu0 0
    %2861 = vmatprep.subr.bf16.mxu0 0
    %2862 = vmatpush2.bf16.msra.mxu0 0
    %2863 = vmatprep.subr.bf16.mxu0 0
    %2864 = vmatpush2.bf16.msra.mxu0 0
    %2865 = vmatprep.subr.bf16.mxu0 0
    %2866 = vmatpush2.bf16.msra.mxu0 0
    %2867 = vmatprep.mubr.bf16.mxu0 0
    %2868 = vmatmul.mubr.bf16.gmra.mxu0 %v2733
    %v2869 = vpop.f32.mrf.mxu0
    %v2870 = vadd.f32 0.0, %v2869
    %v2871 = vpop.f32.mrf.mxu0
    %v2872 = vadd.f32 0.0, %v2871
    %v2873 = vpop.f32.mrf.mxu0
    %v2874 = vpop.f32.mrf.mxu0
    %2875 = vdwg.mxu0
    %v2876 = vadd.f32 %v2706, %v2788
    %v2877 = vadd.f32 %v2707, %v2790
    %v2878 = vadd.f32 %v2708, %v2829
    %v2879 = vadd.f32 %v2709, %v2831
    %v2880 = vadd.f32 %v2710, %v2870
    %v2881 = vadd.f32 %v2711, %v2872
    %s2882 = scalar_lea.vmem %s5, 10
    %v2883 = vld [vmem:[%s2882] sm:$0x3]
    %2884 = vrot.lane.b32.xlu0 %v2726, 127
    %v2885 = vpop.permute.xlu0 %2884
    %2886 = vrot.lane.b32.xlu0 %v2727, 127
    %v2887 = vpop.permute.xlu0 %2886
    %2888 = vrot.lane.b32.xlu0 %v2728, 127
    %v2889 = vpop.permute.xlu0 %2888
    %2890 = vrot.lane.b32.xlu0 %v2729, 127
    %v2891 = vpop.permute.xlu0 %2890
    %2892 = vrot.lane.b32.xlu0 %v2730, 127
    %v2893 = vpop.permute.xlu0 %2892
    %2894 = vrot.lane.b32.xlu0 %v2731, 127
    %v2895 = vpop.permute.xlu0 %2894
    %v2896 = vsel %vm1177, %v2885, %v2887
    %v2897 = vsel %vm1177, %v2887, %v2889
    %v2898 = vsel %vm1177, %v2889, %v2891
    %v2899 = vsel %vm1177, %v2891, %v2893
    %v2900 = vsel %vm1177, %v2893, %v2895
    %v2902 = vsel %vm2043, %v2883, 0
    %v2905 = vsel %vm2001, %v2896, 0
    %v2908 = vsel %vm2001, %v2897, 0
    %v2911 = vsel %vm2001, %v2898, 0
    %v2914 = vsel %vm2001, %v2899, 0
    %v2917 = vsel %vm2001, %v2900, 0
    %v2920 = vsel %vm2001, %v2895, 0
    %2922 = vmatprep.subr.bf16.mxu0 0
    %2923 = vmatpush1.bf16.msra.mxu0 0
    %2924 = vmatprep.subr.bf16.mxu0 0
    %2925 = vmatpush1.bf16.msra.mxu0 0
    %2926 = vmatprep.subr.bf16.mxu0 0
    %2927 = vmatpush1.bf16.msra.mxu0 0
    %2928 = vmatprep.subr.bf16.mxu0 0
    %2929 = vmatpush1.bf16.msra.mxu0 0
    %2930 = vmatprep.subr.bf16.mxu0 0
    %2931 = vmatpush1.bf16.msra.mxu0 0
    %2932 = vmatprep.subr.bf16.mxu0 0
    %2933 = vmatpush1.bf16.msra.mxu0 0
    %2934 = vmatprep.subr.bf16.mxu0 0
    %2935 = vmatpush1.bf16.msra.mxu0 0
    %2936 = vmatprep.subr.bf16.mxu0 %v2908
    %2937 = vmatpush1.bf16.msra.mxu0 %v2905
    %2938 = vmatprep.subr.bf16.mxu0 0
    %2939 = vmatpush2.bf16.msra.mxu0 0
    %2940 = vmatprep.subr.bf16.mxu0 0
    %2941 = vmatpush2.bf16.msra.mxu0 0
    %2942 = vmatprep.subr.bf16.mxu0 0
    %2943 = vmatpush2.bf16.msra.mxu0 0
    %2944 = vmatprep.subr.bf16.mxu0 0
    %2945 = vmatpush2.bf16.msra.mxu0 0
    %2946 = vmatprep.subr.bf16.mxu0 0
    %2947 = vmatpush2.bf16.msra.mxu0 0
    %2948 = vmatprep.subr.bf16.mxu0 0
    %2949 = vmatpush2.bf16.msra.mxu0 0
    %2950 = vmatprep.subr.bf16.mxu0 0
    %2951 = vmatpush2.bf16.msra.mxu0 0
    %2952 = vmatprep.subr.bf16.mxu0 0
    %2953 = vmatpush2.bf16.msra.mxu0 0
    %2954 = vmatprep.mubr.bf16.mxu0 0
    %2955 = vmatmul.mubr.bf16.gmra.mxu0 %v2902
    %v2956 = vpop.f32.mrf.mxu0
    %v2957 = vadd.f32 0.0, %v2956
    %v2958 = vpop.f32.mrf.mxu0
    %v2959 = vadd.f32 0.0, %v2958
    %v2960 = vpop.f32.mrf.mxu0
    %v2961 = vpop.f32.mrf.mxu0
    %2962 = vdwg.mxu0
    %2963 = vmatprep.subr.bf16.mxu0 0
    %2964 = vmatpush1.bf16.msra.mxu0 0
    %2965 = vmatprep.subr.bf16.mxu0 0
    %2966 = vmatpush1.bf16.msra.mxu0 0
    %2967 = vmatprep.subr.bf16.mxu0 0
    %2968 = vmatpush1.bf16.msra.mxu0 0
    %2969 = vmatprep.subr.bf16.mxu0 0
    %2970 = vmatpush1.bf16.msra.mxu0 0
    %2971 = vmatprep.subr.bf16.mxu0 0
    %2972 = vmatpush1.bf16.msra.mxu0 0
    %2973 = vmatprep.subr.bf16.mxu0 0
    %2974 = vmatpush1.bf16.msra.mxu0 0
    %2975 = vmatprep.subr.bf16.mxu0 0
    %2976 = vmatpush1.bf16.msra.mxu0 0
    %2977 = vmatprep.subr.bf16.mxu0 %v2914
    %2978 = vmatpush1.bf16.msra.mxu0 %v2911
    %2979 = vmatprep.subr.bf16.mxu0 0
    %2980 = vmatpush2.bf16.msra.mxu0 0
    %2981 = vmatprep.subr.bf16.mxu0 0
    %2982 = vmatpush2.bf16.msra.mxu0 0
    %2983 = vmatprep.subr.bf16.mxu0 0
    %2984 = vmatpush2.bf16.msra.mxu0 0
    %2985 = vmatprep.subr.bf16.mxu0 0
    %2986 = vmatpush2.bf16.msra.mxu0 0
    %2987 = vmatprep.subr.bf16.mxu0 0
    %2988 = vmatpush2.bf16.msra.mxu0 0
    %2989 = vmatprep.subr.bf16.mxu0 0
    %2990 = vmatpush2.bf16.msra.mxu0 0
    %2991 = vmatprep.subr.bf16.mxu0 0
    %2992 = vmatpush2.bf16.msra.mxu0 0
    %2993 = vmatprep.subr.bf16.mxu0 0
    %2994 = vmatpush2.bf16.msra.mxu0 0
    %2995 = vmatprep.mubr.bf16.mxu0 0
    %2996 = vmatmul.mubr.bf16.gmra.mxu0 %v2902
    %v2997 = vpop.f32.mrf.mxu0
    %v2998 = vadd.f32 0.0, %v2997
    %v2999 = vpop.f32.mrf.mxu0
    %v3000 = vadd.f32 0.0, %v2999
    %v3001 = vpop.f32.mrf.mxu0
    %v3002 = vpop.f32.mrf.mxu0
    %3003 = vdwg.mxu0
    %3004 = vmatprep.subr.bf16.mxu0 0
    %3005 = vmatpush1.bf16.msra.mxu0 0
    %3006 = vmatprep.subr.bf16.mxu0 0
    %3007 = vmatpush1.bf16.msra.mxu0 0
    %3008 = vmatprep.subr.bf16.mxu0 0
    %3009 = vmatpush1.bf16.msra.mxu0 0
    %3010 = vmatprep.subr.bf16.mxu0 0
    %3011 = vmatpush1.bf16.msra.mxu0 0
    %3012 = vmatprep.subr.bf16.mxu0 0
    %3013 = vmatpush1.bf16.msra.mxu0 0
    %3014 = vmatprep.subr.bf16.mxu0 0
    %3015 = vmatpush1.bf16.msra.mxu0 0
    %3016 = vmatprep.subr.bf16.mxu0 0
    %3017 = vmatpush1.bf16.msra.mxu0 0
    %3018 = vmatprep.subr.bf16.mxu0 %v2920
    %3019 = vmatpush1.bf16.msra.mxu0 %v2917
    %3020 = vmatprep.subr.bf16.mxu0 0
    %3021 = vmatpush2.bf16.msra.mxu0 0
    %3022 = vmatprep.subr.bf16.mxu0 0
    %3023 = vmatpush2.bf16.msra.mxu0 0
    %3024 = vmatprep.subr.bf16.mxu0 0
    %3025 = vmatpush2.bf16.msra.mxu0 0
    %3026 = vmatprep.subr.bf16.mxu0 0
    %3027 = vmatpush2.bf16.msra.mxu0 0
    %3028 = vmatprep.subr.bf16.mxu0 0
    %3029 = vmatpush2.bf16.msra.mxu0 0
    %3030 = vmatprep.subr.bf16.mxu0 0
    %3031 = vmatpush2.bf16.msra.mxu0 0
    %3032 = vmatprep.subr.bf16.mxu0 0
    %3033 = vmatpush2.bf16.msra.mxu0 0
    %3034 = vmatprep.subr.bf16.mxu0 0
    %3035 = vmatpush2.bf16.msra.mxu0 0
    %3036 = vmatprep.mubr.bf16.mxu0 0
    %3037 = vmatmul.mubr.bf16.gmra.mxu0 %v2902
    %v3038 = vpop.f32.mrf.mxu0
    %v3039 = vadd.f32 0.0, %v3038
    %v3040 = vpop.f32.mrf.mxu0
    %v3041 = vadd.f32 0.0, %v3040
    %v3042 = vpop.f32.mrf.mxu0
    %v3043 = vpop.f32.mrf.mxu0
    %3044 = vdwg.mxu0
    %v3045 = vadd.f32 %v2876, %v2957
    %v3046 = vadd.f32 %v2877, %v2959
    %v3047 = vadd.f32 %v2878, %v2998
    %v3048 = vadd.f32 %v2879, %v3000
    %v3049 = vadd.f32 %v2880, %v3039
    %v3050 = vadd.f32 %v2881, %v3041
    %s3051 = scalar_lea.vmem %s5, 12
    %v3052 = vld [vmem:[%s3051] sm:$0x3]
    %3053 = vrot.lane.b32.xlu0 %v2726, 112
    %v3054 = vpop.permute.xlu0 %3053
    %3055 = vrot.lane.b32.xlu0 %v2727, 112
    %v3056 = vpop.permute.xlu0 %3055
    %3057 = vrot.lane.b32.xlu0 %v2728, 112
    %v3058 = vpop.permute.xlu0 %3057
    %3059 = vrot.lane.b32.xlu0 %v2729, 112
    %v3060 = vpop.permute.xlu0 %3059
    %3061 = vrot.lane.b32.xlu0 %v2730, 112
    %v3062 = vpop.permute.xlu0 %3061
    %3063 = vrot.lane.b32.xlu0 %v2731, 112
    %v3064 = vpop.permute.xlu0 %3063
    %v3065 = vsel %vm1347, %v3054, %v3056
    %v3066 = vsel %vm1347, %v3056, %v3058
    %v3067 = vsel %vm1347, %v3058, %v3060
    %v3068 = vsel %vm1347, %v3060, %v3062
    %v3069 = vsel %vm1347, %v3062, %v3064
    %v3071 = vsel %vm2043, %v3052, 0
    %v3074 = vsel %vm2001, %v3065, 0
    %v3077 = vsel %vm2001, %v3066, 0
    %v3080 = vsel %vm2001, %v3067, 0
    %v3083 = vsel %vm2001, %v3068, 0
    %v3086 = vsel %vm2001, %v3069, 0
    %v3089 = vsel %vm2001, %v3064, 0
    %3091 = vmatprep.subr.bf16.mxu0 0
    %3092 = vmatpush1.bf16.msra.mxu0 0
    %3093 = vmatprep.subr.bf16.mxu0 0
    %3094 = vmatpush1.bf16.msra.mxu0 0
    %3095 = vmatprep.subr.bf16.mxu0 0
    %3096 = vmatpush1.bf16.msra.mxu0 0
    %3097 = vmatprep.subr.bf16.mxu0 0
    %3098 = vmatpush1.bf16.msra.mxu0 0
    %3099 = vmatprep.subr.bf16.mxu0 0
    %3100 = vmatpush1.bf16.msra.mxu0 0
    %3101 = vmatprep.subr.bf16.mxu0 0
    %3102 = vmatpush1.bf16.msra.mxu0 0
    %3103 = vmatprep.subr.bf16.mxu0 0
    %3104 = vmatpush1.bf16.msra.mxu0 0
    %3105 = vmatprep.subr.bf16.mxu0 %v3077
    %3106 = vmatpush1.bf16.msra.mxu0 %v3074
    %3107 = vmatprep.subr.bf16.mxu0 0
    %3108 = vmatpush2.bf16.msra.mxu0 0
    %3109 = vmatprep.subr.bf16.mxu0 0
    %3110 = vmatpush2.bf16.msra.mxu0 0
    %3111 = vmatprep.subr.bf16.mxu0 0
    %3112 = vmatpush2.bf16.msra.mxu0 0
    %3113 = vmatprep.subr.bf16.mxu0 0
    %3114 = vmatpush2.bf16.msra.mxu0 0
    %3115 = vmatprep.subr.bf16.mxu0 0
    %3116 = vmatpush2.bf16.msra.mxu0 0
    %3117 = vmatprep.subr.bf16.mxu0 0
    %3118 = vmatpush2.bf16.msra.mxu0 0
    %3119 = vmatprep.subr.bf16.mxu0 0
    %3120 = vmatpush2.bf16.msra.mxu0 0
    %3121 = vmatprep.subr.bf16.mxu0 0
    %3122 = vmatpush2.bf16.msra.mxu0 0
    %3123 = vmatprep.mubr.bf16.mxu0 0
    %3124 = vmatmul.mubr.bf16.gmra.mxu0 %v3071
    %v3125 = vpop.f32.mrf.mxu0
    %v3126 = vadd.f32 0.0, %v3125
    %v3127 = vpop.f32.mrf.mxu0
    %v3128 = vadd.f32 0.0, %v3127
    %v3129 = vpop.f32.mrf.mxu0
    %v3130 = vpop.f32.mrf.mxu0
    %3131 = vdwg.mxu0
    %3132 = vmatprep.subr.bf16.mxu0 0
    %3133 = vmatpush1.bf16.msra.mxu0 0
    %3134 = vmatprep.subr.bf16.mxu0 0
    %3135 = vmatpush1.bf16.msra.mxu0 0
    %3136 = vmatprep.subr.bf16.mxu0 0
    %3137 = vmatpush1.bf16.msra.mxu0 0
    %3138 = vmatprep.subr.bf16.mxu0 0
    %3139 = vmatpush1.bf16.msra.mxu0 0
    %3140 = vmatprep.subr.bf16.mxu0 0
    %3141 = vmatpush1.bf16.msra.mxu0 0
    %3142 = vmatprep.subr.bf16.mxu0 0
    %3143 = vmatpush1.bf16.msra.mxu0 0
    %3144 = vmatprep.subr.bf16.mxu0 0
    %3145 = vmatpush1.bf16.msra.mxu0 0
    %3146 = vmatprep.subr.bf16.mxu0 %v3083
    %3147 = vmatpush1.bf16.msra.mxu0 %v3080
    %3148 = vmatprep.subr.bf16.mxu0 0
    %3149 = vmatpush2.bf16.msra.mxu0 0
    %3150 = vmatprep.subr.bf16.mxu0 0
    %3151 = vmatpush2.bf16.msra.mxu0 0
    %3152 = vmatprep.subr.bf16.mxu0 0
    %3153 = vmatpush2.bf16.msra.mxu0 0
    %3154 = vmatprep.subr.bf16.mxu0 0
    %3155 = vmatpush2.bf16.msra.mxu0 0
    %3156 = vmatprep.subr.bf16.mxu0 0
    %3157 = vmatpush2.bf16.msra.mxu0 0
    %3158 = vmatprep.subr.bf16.mxu0 0
    %3159 = vmatpush2.bf16.msra.mxu0 0
    %3160 = vmatprep.subr.bf16.mxu0 0
    %3161 = vmatpush2.bf16.msra.mxu0 0
    %3162 = vmatprep.subr.bf16.mxu0 0
    %3163 = vmatpush2.bf16.msra.mxu0 0
    %3164 = vmatprep.mubr.bf16.mxu0 0
    %3165 = vmatmul.mubr.bf16.gmra.mxu0 %v3071
    %v3166 = vpop.f32.mrf.mxu0
    %v3167 = vadd.f32 0.0, %v3166
    %v3168 = vpop.f32.mrf.mxu0
    %v3169 = vadd.f32 0.0, %v3168
    %v3170 = vpop.f32.mrf.mxu0
    %v3171 = vpop.f32.mrf.mxu0
    %3172 = vdwg.mxu0
    %3173 = vmatprep.subr.bf16.mxu0 0
    %3174 = vmatpush1.bf16.msra.mxu0 0
    %3175 = vmatprep.subr.bf16.mxu0 0
    %3176 = vmatpush1.bf16.msra.mxu0 0
    %3177 = vmatprep.subr.bf16.mxu0 0
    %3178 = vmatpush1.bf16.msra.mxu0 0
    %3179 = vmatprep.subr.bf16.mxu0 0
    %3180 = vmatpush1.bf16.msra.mxu0 0
    %3181 = vmatprep.subr.bf16.mxu0 0
    %3182 = vmatpush1.bf16.msra.mxu0 0
    %3183 = vmatprep.subr.bf16.mxu0 0
    %3184 = vmatpush1.bf16.msra.mxu0 0
    %3185 = vmatprep.subr.bf16.mxu0 0
    %3186 = vmatpush1.bf16.msra.mxu0 0
    %3187 = vmatprep.subr.bf16.mxu0 %v3089
    %3188 = vmatpush1.bf16.msra.mxu0 %v3086
    %3189 = vmatprep.subr.bf16.mxu0 0
    %3190 = vmatpush2.bf16.msra.mxu0 0
    %3191 = vmatprep.subr.bf16.mxu0 0
    %3192 = vmatpush2.bf16.msra.mxu0 0
    %3193 = vmatprep.subr.bf16.mxu0 0
    %3194 = vmatpush2.bf16.msra.mxu0 0
    %3195 = vmatprep.subr.bf16.mxu0 0
    %3196 = vmatpush2.bf16.msra.mxu0 0
    %3197 = vmatprep.subr.bf16.mxu0 0
    %3198 = vmatpush2.bf16.msra.mxu0 0
    %3199 = vmatprep.subr.bf16.mxu0 0
    %3200 = vmatpush2.bf16.msra.mxu0 0
    %3201 = vmatprep.subr.bf16.mxu0 0
    %3202 = vmatpush2.bf16.msra.mxu0 0
    %3203 = vmatprep.subr.bf16.mxu0 0
    %3204 = vmatpush2.bf16.msra.mxu0 0
    %3205 = vmatprep.mubr.bf16.mxu0 0
    %3206 = vmatmul.mubr.bf16.gmra.mxu0 %v3071
    %v3207 = vpop.f32.mrf.mxu0
    %v3208 = vadd.f32 0.0, %v3207
    %v3209 = vpop.f32.mrf.mxu0
    %v3210 = vadd.f32 0.0, %v3209
    %v3211 = vpop.f32.mrf.mxu0
    %v3212 = vpop.f32.mrf.mxu0
    %3213 = vdwg.mxu0
    %v3214 = vadd.f32 %v3045, %v3126
    %v3215 = vadd.f32 %v3046, %v3128
    %v3216 = vadd.f32 %v3047, %v3167
    %v3217 = vadd.f32 %v3048, %v3169
    %v3218 = vadd.f32 %v3049, %v3208
    %v3219 = vadd.f32 %v3050, %v3210
    %s3220 = scalar_lea.vmem %s5, 14
    %v3221 = vld [vmem:[%s3220] sm:$0x3]
    %3222 = vrot.lane.b32.xlu0 %v2726, 111
    %v3223 = vpop.permute.xlu0 %3222
    %3224 = vrot.lane.b32.xlu0 %v2727, 111
    %v3225 = vpop.permute.xlu0 %3224
    %3226 = vrot.lane.b32.xlu0 %v2728, 111
    %v3227 = vpop.permute.xlu0 %3226
    %3228 = vrot.lane.b32.xlu0 %v2729, 111
    %v3229 = vpop.permute.xlu0 %3228
    %3230 = vrot.lane.b32.xlu0 %v2730, 111
    %v3231 = vpop.permute.xlu0 %3230
    %3232 = vrot.lane.b32.xlu0 %v2731, 111
    %v3233 = vpop.permute.xlu0 %3232
    %v3234 = vsel %vm1517, %v3223, %v3225
    %v3235 = vsel %vm1517, %v3225, %v3227
    %v3236 = vsel %vm1517, %v3227, %v3229
    %v3237 = vsel %vm1517, %v3229, %v3231
    %v3238 = vsel %vm1517, %v3231, %v3233
    %v3240 = vsel %vm2043, %v3221, 0
    %v3243 = vsel %vm2001, %v3234, 0
    %v3246 = vsel %vm2001, %v3235, 0
    %v3249 = vsel %vm2001, %v3236, 0
    %v3252 = vsel %vm2001, %v3237, 0
    %v3255 = vsel %vm2001, %v3238, 0
    %v3258 = vsel %vm2001, %v3233, 0
    %3260 = vmatprep.subr.bf16.mxu0 0
    %3261 = vmatpush1.bf16.msra.mxu0 0
    %3262 = vmatprep.subr.bf16.mxu0 0
    %3263 = vmatpush1.bf16.msra.mxu0 0
    %3264 = vmatprep.subr.bf16.mxu0 0
    %3265 = vmatpush1.bf16.msra.mxu0 0
    %3266 = vmatprep.subr.bf16.mxu0 0
    %3267 = vmatpush1.bf16.msra.mxu0 0
    %3268 = vmatprep.subr.bf16.mxu0 0
    %3269 = vmatpush1.bf16.msra.mxu0 0
    %3270 = vmatprep.subr.bf16.mxu0 0
    %3271 = vmatpush1.bf16.msra.mxu0 0
    %3272 = vmatprep.subr.bf16.mxu0 0
    %3273 = vmatpush1.bf16.msra.mxu0 0
    %3274 = vmatprep.subr.bf16.mxu0 %v3246
    %3275 = vmatpush1.bf16.msra.mxu0 %v3243
    %3276 = vmatprep.subr.bf16.mxu0 0
    %3277 = vmatpush2.bf16.msra.mxu0 0
    %3278 = vmatprep.subr.bf16.mxu0 0
    %3279 = vmatpush2.bf16.msra.mxu0 0
    %3280 = vmatprep.subr.bf16.mxu0 0
    %3281 = vmatpush2.bf16.msra.mxu0 0
    %3282 = vmatprep.subr.bf16.mxu0 0
    %3283 = vmatpush2.bf16.msra.mxu0 0
    %3284 = vmatprep.subr.bf16.mxu0 0
    %3285 = vmatpush2.bf16.msra.mxu0 0
    %3286 = vmatprep.subr.bf16.mxu0 0
    %3287 = vmatpush2.bf16.msra.mxu0 0
    %3288 = vmatprep.subr.bf16.mxu0 0
    %3289 = vmatpush2.bf16.msra.mxu0 0
    %3290 = vmatprep.subr.bf16.mxu0 0
    %3291 = vmatpush2.bf16.msra.mxu0 0
    %3292 = vmatprep.mubr.bf16.mxu0 0
    %3293 = vmatmul.mubr.bf16.gmra.mxu0 %v3240
    %v3294 = vpop.f32.mrf.mxu0
    %v3295 = vadd.f32 0.0, %v3294
    %v3296 = vpop.f32.mrf.mxu0
    %v3297 = vadd.f32 0.0, %v3296
    %v3298 = vpop.f32.mrf.mxu0
    %v3299 = vpop.f32.mrf.mxu0
    %3300 = vdwg.mxu0
    %3301 = vmatprep.subr.bf16.mxu0 0
    %3302 = vmatpush1.bf16.msra.mxu0 0
    %3303 = vmatprep.subr.bf16.mxu0 0
    %3304 = vmatpush1.bf16.msra.mxu0 0
    %3305 = vmatprep.subr.bf16.mxu0 0
    %3306 = vmatpush1.bf16.msra.mxu0 0
    %3307 = vmatprep.subr.bf16.mxu0 0
    %3308 = vmatpush1.bf16.msra.mxu0 0
    %3309 = vmatprep.subr.bf16.mxu0 0
    %3310 = vmatpush1.bf16.msra.mxu0 0
    %3311 = vmatprep.subr.bf16.mxu0 0
    %3312 = vmatpush1.bf16.msra.mxu0 0
    %3313 = vmatprep.subr.bf16.mxu0 0
    %3314 = vmatpush1.bf16.msra.mxu0 0
    %3315 = vmatprep.subr.bf16.mxu0 %v3252
    %3316 = vmatpush1.bf16.msra.mxu0 %v3249
    %3317 = vmatprep.subr.bf16.mxu0 0
    %3318 = vmatpush2.bf16.msra.mxu0 0
    %3319 = vmatprep.subr.bf16.mxu0 0
    %3320 = vmatpush2.bf16.msra.mxu0 0
    %3321 = vmatprep.subr.bf16.mxu0 0
    %3322 = vmatpush2.bf16.msra.mxu0 0
    %3323 = vmatprep.subr.bf16.mxu0 0
    %3324 = vmatpush2.bf16.msra.mxu0 0
    %3325 = vmatprep.subr.bf16.mxu0 0
    %3326 = vmatpush2.bf16.msra.mxu0 0
    %3327 = vmatprep.subr.bf16.mxu0 0
    %3328 = vmatpush2.bf16.msra.mxu0 0
    %3329 = vmatprep.subr.bf16.mxu0 0
    %3330 = vmatpush2.bf16.msra.mxu0 0
    %3331 = vmatprep.subr.bf16.mxu0 0
    %3332 = vmatpush2.bf16.msra.mxu0 0
    %3333 = vmatprep.mubr.bf16.mxu0 0
    %3334 = vmatmul.mubr.bf16.gmra.mxu0 %v3240
    %v3335 = vpop.f32.mrf.mxu0
    %v3336 = vadd.f32 0.0, %v3335
    %v3337 = vpop.f32.mrf.mxu0
    %v3338 = vadd.f32 0.0, %v3337
    %v3339 = vpop.f32.mrf.mxu0
    %v3340 = vpop.f32.mrf.mxu0
    %3341 = vdwg.mxu0
    %3342 = vmatprep.subr.bf16.mxu0 0
    %3343 = vmatpush1.bf16.msra.mxu0 0
    %3344 = vmatprep.subr.bf16.mxu0 0
    %3345 = vmatpush1.bf16.msra.mxu0 0
    %3346 = vmatprep.subr.bf16.mxu0 0
    %3347 = vmatpush1.bf16.msra.mxu0 0
    %3348 = vmatprep.subr.bf16.mxu0 0
    %3349 = vmatpush1.bf16.msra.mxu0 0
    %3350 = vmatprep.subr.bf16.mxu0 0
    %3351 = vmatpush1.bf16.msra.mxu0 0
    %3352 = vmatprep.subr.bf16.mxu0 0
    %3353 = vmatpush1.bf16.msra.mxu0 0
    %3354 = vmatprep.subr.bf16.mxu0 0
    %3355 = vmatpush1.bf16.msra.mxu0 0
    %3356 = vmatprep.subr.bf16.mxu0 %v3258
    %3357 = vmatpush1.bf16.msra.mxu0 %v3255
    %3358 = vmatprep.subr.bf16.mxu0 0
    %3359 = vmatpush2.bf16.msra.mxu0 0
    %3360 = vmatprep.subr.bf16.mxu0 0
    %3361 = vmatpush2.bf16.msra.mxu0 0
    %3362 = vmatprep.subr.bf16.mxu0 0
    %3363 = vmatpush2.bf16.msra.mxu0 0
    %3364 = vmatprep.subr.bf16.mxu0 0
    %3365 = vmatpush2.bf16.msra.mxu0 0
    %3366 = vmatprep.subr.bf16.mxu0 0
    %3367 = vmatpush2.bf16.msra.mxu0 0
    %3368 = vmatprep.subr.bf16.mxu0 0
    %3369 = vmatpush2.bf16.msra.mxu0 0
    %3370 = vmatprep.subr.bf16.mxu0 0
    %3371 = vmatpush2.bf16.msra.mxu0 0
    %3372 = vmatprep.subr.bf16.mxu0 0
    %3373 = vmatpush2.bf16.msra.mxu0 0
    %3374 = vmatprep.mubr.bf16.mxu0 0
    %3375 = vmatmul.mubr.bf16.gmra.mxu0 %v3240
    %v3376 = vpop.f32.mrf.mxu0
    %v3377 = vadd.f32 0.0, %v3376
    %v3378 = vpop.f32.mrf.mxu0
    %v3379 = vadd.f32 0.0, %v3378
    %v3380 = vpop.f32.mrf.mxu0
    %v3381 = vpop.f32.mrf.mxu0
    %3382 = vdwg.mxu0
    %v3383 = vadd.f32 %v3214, %v3295
    %v3384 = vadd.f32 %v3215, %v3297
    %v3385 = vadd.f32 %v3216, %v3336
    %v3386 = vadd.f32 %v3217, %v3338
    %v3387 = vadd.f32 %v3218, %v3377
    %v3388 = vadd.f32 %v3219, %v3379
    %s3389 = scalar_lea.vmem %s5, 16
    %v3390 = vld [vmem:[%s3389] sm:$0x3]
    %3391 = vrot.lane.b32.xlu0 %v2726, 110
    %v3392 = vpop.permute.xlu0 %3391
    %3393 = vrot.lane.b32.xlu0 %v2727, 110
    %v3394 = vpop.permute.xlu0 %3393
    %3395 = vrot.lane.b32.xlu0 %v2728, 110
    %v3396 = vpop.permute.xlu0 %3395
    %3397 = vrot.lane.b32.xlu0 %v2729, 110
    %v3398 = vpop.permute.xlu0 %3397
    %3399 = vrot.lane.b32.xlu0 %v2730, 110
    %v3400 = vpop.permute.xlu0 %3399
    %3401 = vrot.lane.b32.xlu0 %v2731, 110
    %v3402 = vpop.permute.xlu0 %3401
    %v3403 = vsel %vm1687, %v3392, %v3394
    %v3404 = vsel %vm1687, %v3394, %v3396
    %v3405 = vsel %vm1687, %v3396, %v3398
    %v3406 = vsel %vm1687, %v3398, %v3400
    %v3407 = vsel %vm1687, %v3400, %v3402
    %v3409 = vsel %vm2043, %v3390, 0
    %v3412 = vsel %vm2001, %v3403, 0
    %v3415 = vsel %vm2001, %v3404, 0
    %v3418 = vsel %vm2001, %v3405, 0
    %v3421 = vsel %vm2001, %v3406, 0
    %v3424 = vsel %vm2001, %v3407, 0
    %v3427 = vsel %vm2001, %v3402, 0
    %3429 = vmatprep.subr.bf16.mxu0 0
    %3430 = vmatpush1.bf16.msra.mxu0 0
    %3431 = vmatprep.subr.bf16.mxu0 0
    %3432 = vmatpush1.bf16.msra.mxu0 0
    %3433 = vmatprep.subr.bf16.mxu0 0
    %3434 = vmatpush1.bf16.msra.mxu0 0
    %3435 = vmatprep.subr.bf16.mxu0 0
    %3436 = vmatpush1.bf16.msra.mxu0 0
    %3437 = vmatprep.subr.bf16.mxu0 0
    %3438 = vmatpush1.bf16.msra.mxu0 0
    %3439 = vmatprep.subr.bf16.mxu0 0
    %3440 = vmatpush1.bf16.msra.mxu0 0
    %3441 = vmatprep.subr.bf16.mxu0 0
    %3442 = vmatpush1.bf16.msra.mxu0 0
    %3443 = vmatprep.subr.bf16.mxu0 %v3415
    %3444 = vmatpush1.bf16.msra.mxu0 %v3412
    %3445 = vmatprep.subr.bf16.mxu0 0
    %3446 = vmatpush2.bf16.msra.mxu0 0
    %3447 = vmatprep.subr.bf16.mxu0 0
    %3448 = vmatpush2.bf16.msra.mxu0 0
    %3449 = vmatprep.subr.bf16.mxu0 0
    %3450 = vmatpush2.bf16.msra.mxu0 0
    %3451 = vmatprep.subr.bf16.mxu0 0
    %3452 = vmatpush2.bf16.msra.mxu0 0
    %3453 = vmatprep.subr.bf16.mxu0 0
    %3454 = vmatpush2.bf16.msra.mxu0 0
    %3455 = vmatprep.subr.bf16.mxu0 0
    %3456 = vmatpush2.bf16.msra.mxu0 0
    %3457 = vmatprep.subr.bf16.mxu0 0
    %3458 = vmatpush2.bf16.msra.mxu0 0
    %3459 = vmatprep.subr.bf16.mxu0 0
    %3460 = vmatpush2.bf16.msra.mxu0 0
    %3461 = vmatprep.mubr.bf16.mxu0 0
    %3462 = vmatmul.mubr.bf16.gmra.mxu0 %v3409
    %v3463 = vpop.f32.mrf.mxu0
    %v3464 = vadd.f32 0.0, %v3463
    %v3465 = vpop.f32.mrf.mxu0
    %v3466 = vadd.f32 0.0, %v3465
    %v3467 = vpop.f32.mrf.mxu0
    %v3468 = vpop.f32.mrf.mxu0
    %3469 = vdwg.mxu0
    %3470 = vmatprep.subr.bf16.mxu0 0
    %3471 = vmatpush1.bf16.msra.mxu0 0
    %3472 = vmatprep.subr.bf16.mxu0 0
    %3473 = vmatpush1.bf16.msra.mxu0 0
    %3474 = vmatprep.subr.bf16.mxu0 0
    %3475 = vmatpush1.bf16.msra.mxu0 0
    %3476 = vmatprep.subr.bf16.mxu0 0
    %3477 = vmatpush1.bf16.msra.mxu0 0
    %3478 = vmatprep.subr.bf16.mxu0 0
    %3479 = vmatpush1.bf16.msra.mxu0 0
    %3480 = vmatprep.subr.bf16.mxu0 0
    %3481 = vmatpush1.bf16.msra.mxu0 0
    %3482 = vmatprep.subr.bf16.mxu0 0
    %3483 = vmatpush1.bf16.msra.mxu0 0
    %3484 = vmatprep.subr.bf16.mxu0 %v3421
    %3485 = vmatpush1.bf16.msra.mxu0 %v3418
    %3486 = vmatprep.subr.bf16.mxu0 0
    %3487 = vmatpush2.bf16.msra.mxu0 0
    %3488 = vmatprep.subr.bf16.mxu0 0
    %3489 = vmatpush2.bf16.msra.mxu0 0
    %3490 = vmatprep.subr.bf16.mxu0 0
    %3491 = vmatpush2.bf16.msra.mxu0 0
    %3492 = vmatprep.subr.bf16.mxu0 0
    %3493 = vmatpush2.bf16.msra.mxu0 0
    %3494 = vmatprep.subr.bf16.mxu0 0
    %3495 = vmatpush2.bf16.msra.mxu0 0
    %3496 = vmatprep.subr.bf16.mxu0 0
    %3497 = vmatpush2.bf16.msra.mxu0 0
    %3498 = vmatprep.subr.bf16.mxu0 0
    %3499 = vmatpush2.bf16.msra.mxu0 0
    %3500 = vmatprep.subr.bf16.mxu0 0
    %3501 = vmatpush2.bf16.msra.mxu0 0
    %3502 = vmatprep.mubr.bf16.mxu0 0
    %3503 = vmatmul.mubr.bf16.gmra.mxu0 %v3409
    %v3504 = vpop.f32.mrf.mxu0
    %v3505 = vadd.f32 0.0, %v3504
    %v3506 = vpop.f32.mrf.mxu0
    %v3507 = vadd.f32 0.0, %v3506
    %v3508 = vpop.f32.mrf.mxu0
    %v3509 = vpop.f32.mrf.mxu0
    %3510 = vdwg.mxu0
    %3511 = vmatprep.subr.bf16.mxu0 0
    %3512 = vmatpush1.bf16.msra.mxu0 0
    %3513 = vmatprep.subr.bf16.mxu0 0
    %3514 = vmatpush1.bf16.msra.mxu0 0
    %3515 = vmatprep.subr.bf16.mxu0 0
    %3516 = vmatpush1.bf16.msra.mxu0 0
    %3517 = vmatprep.subr.bf16.mxu0 0
    %3518 = vmatpush1.bf16.msra.mxu0 0
    %3519 = vmatprep.subr.bf16.mxu0 0
    %3520 = vmatpush1.bf16.msra.mxu0 0
    %3521 = vmatprep.subr.bf16.mxu0 0
    %3522 = vmatpush1.bf16.msra.mxu0 0
    %3523 = vmatprep.subr.bf16.mxu0 0
    %3524 = vmatpush1.bf16.msra.mxu0 0
    %3525 = vmatprep.subr.bf16.mxu0 %v3427
    %3526 = vmatpush1.bf16.msra.mxu0 %v3424
    %3527 = vmatprep.subr.bf16.mxu0 0
    %3528 = vmatpush2.bf16.msra.mxu0 0
    %3529 = vmatprep.subr.bf16.mxu0 0
    %3530 = vmatpush2.bf16.msra.mxu0 0
    %3531 = vmatprep.subr.bf16.mxu0 0
    %3532 = vmatpush2.bf16.msra.mxu0 0
    %3533 = vmatprep.subr.bf16.mxu0 0
    %3534 = vmatpush2.bf16.msra.mxu0 0
    %3535 = vmatprep.subr.bf16.mxu0 0
    %3536 = vmatpush2.bf16.msra.mxu0 0
    %3537 = vmatprep.subr.bf16.mxu0 0
    %3538 = vmatpush2.bf16.msra.mxu0 0
    %3539 = vmatprep.subr.bf16.mxu0 0
    %3540 = vmatpush2.bf16.msra.mxu0 0
    %3541 = vmatprep.subr.bf16.mxu0 0
    %3542 = vmatpush2.bf16.msra.mxu0 0
    %3543 = vmatprep.mubr.bf16.mxu0 0
    %3544 = vmatmul.mubr.bf16.gmra.mxu0 %v3409
    %v3545 = vpop.f32.mrf.mxu0
    %v3546 = vadd.f32 0.0, %v3545
    %v3547 = vpop.f32.mrf.mxu0
    %v3548 = vadd.f32 0.0, %v3547
    %v3549 = vpop.f32.mrf.mxu0
    %v3550 = vpop.f32.mrf.mxu0
    %3551 = vdwg.mxu0
    %v3552 = vadd.f32 %v3383, %v3464
    %v3553 = vadd.f32 %v3384, %v3466
    %v3554 = vadd.f32 %v3385, %v3505
    %v3555 = vadd.f32 %v3386, %v3507
    %v3556 = vadd.f32 %v3387, %v3546
    %v3557 = vadd.f32 %v3388, %v3548
    %v3558 = vld [vmem:[%s6] sm:$0xf]
    %3560 = vset.pattern.permute.xlu0 3
    %3561 = vperm.xlu0 %3560, %v3558
    %v3562 = vpop.permute.xlu0 %3561
    %v3564 = vadd.f32 %v3552, %v3562
    %v3565 = vadd.f32 %v3553, %v3562
    %v3566 = vadd.f32 %v3554, %v3562
    %v3567 = vadd.f32 %v3555, %v3562
    %v3568 = vadd.f32 %v3556, %v3562
    %v3569 = vadd.f32 %v3557, %v3562
    %v3570 = vmax.f32 %v3564, 0.0
    %v3571 = vmax.f32 %v3565, 0.0
    %v3572 = vmax.f32 %v3566, 0.0
    %v3573 = vmax.f32 %v3567, 0.0
    %v3574 = vmax.f32 %v3568, 0.0
    %v3575 = vmax.f32 %v3569, 0.0
    %v3576 = vmul.f32 %v3570, %v1865
    %v3577 = vmul.f32 %v3571, %v1869
    %v3578 = vmul.f32 %v3572, %v1873
    %v3579 = vmul.f32 %v3573, %v1877
    %v3580 = vmul.f32 %v3574, %v1881
    %v3581 = vmul.f32 %v3575, %v1885
    %v3582 = vsel %vm324, %v3576, 0.0
    %v3583 = vsel %vm324, %v3577, 0.0
    %v3584 = vadd.f32 %v3582, %v3583
    %v3585 = vsel %vm324, %v3578, 0.0
    %v3586 = vadd.f32 %v3584, %v3585
    %v3587 = vsel %vm324, %v3579, 0.0
    %v3588 = vadd.f32 %v3586, %v3587
    %v3589 = vsel %vm324, %v3580, 0.0
    %v3590 = vadd.f32 %v3588, %v3589
    %v3591 = vsel %vm1907, %v3581, 0.0
    %v3592 = vadd.f32 %v3590, %v3591
    %3593 = vadd.xlane.f32.xlu0 %v3592
    %v3594 = vpop.xlane.xlu0 %3593
    %v3595 = vmul.f32 %v3594, 0.001953125
    %v3596 = vsub.f32 %v3576, %v3595
    %v3597 = vsub.f32 %v3577, %v3595
    %v3598 = vsub.f32 %v3578, %v3595
    %v3599 = vsub.f32 %v3579, %v3595
    %v3600 = vsub.f32 %v3580, %v3595
    %v3601 = vsub.f32 %v3581, %v3595
    %v3602 = vmul.f32 %v3596, %v1865
    %v3603 = vmul.f32 %v3597, %v1869
    %v3604 = vmul.f32 %v3598, %v1873
    %v3605 = vmul.f32 %v3599, %v1877
    %v3606 = vmul.f32 %v3600, %v1881
    %v3607 = vmul.f32 %v3601, %v1885
    %v3608 = vmul.f32 %v3602, %v3602
    %v3609 = vmul.f32 %v3603, %v3603
    %v3610 = vmul.f32 %v3604, %v3604
    %v3611 = vmul.f32 %v3605, %v3605
    %v3612 = vmul.f32 %v3606, %v3606
    %v3613 = vmul.f32 %v3607, %v3607
    %v3614 = vsel %vm324, %v3608, 0.0
    %v3615 = vsel %vm324, %v3609, 0.0
    %v3616 = vadd.f32 %v3614, %v3615
    %v3617 = vsel %vm324, %v3610, 0.0
    %v3618 = vadd.f32 %v3616, %v3617
    %v3619 = vsel %vm324, %v3611, 0.0
    %v3620 = vadd.f32 %v3618, %v3619
    %v3621 = vsel %vm324, %v3612, 0.0
    %v3622 = vadd.f32 %v3620, %v3621
    %v3623 = vsel %vm1907, %v3613, 0.0
    %v3624 = vadd.f32 %v3622, %v3623
    %3625 = vadd.xlane.f32.xlu0 %v3624
    %v3626 = vpop.xlane.xlu0 %3625
    %v3627 = vmul.f32 %v3626, 0.001953125
    %v3628 = vadd.f32 %v3627, 1e-05
    %v3629 = vrsqrt.pop %v3628
    %v3630 = vmul.f32 %v3558, %v3629
    %3632 = vset.pattern.permute.xlu0 4
    %3633 = vperm.xlu0 %3632, %v3630
    %v3634 = vpop.permute.xlu0 %3633
    %v3636 = vmul.f32 %v3602, %v3634
    %v3637 = vmul.f32 %v3603, %v3634
    %v3638 = vmul.f32 %v3604, %v3634
    %v3639 = vmul.f32 %v3605, %v3634
    %v3640 = vmul.f32 %v3606, %v3634
    %v3641 = vmul.f32 %v3607, %v3634
    %3642 = vset.pattern.permute.xlu0 5
    %3643 = vperm.xlu0 %3642, %v3558
    %v3644 = vpop.permute.xlu0 %3643
    %v3646 = vadd.f32 %v3636, %v3644
    %v3647 = vadd.f32 %v3637, %v3644
    %v3648 = vadd.f32 %v3638, %v3644
    %v3649 = vadd.f32 %v3639, %v3644
    %v3650 = vadd.f32 %v3640, %v3644
    %v3651 = vadd.f32 %v3641, %v3644
    %v3654 = vcombine.low %v3646, %v3647
    %3656 = vst [vmem:[#allocation6] sm:$0xff] %v3654
    %3657 = vst.msk [vmem:[#allocation6 + $0x8] sm:$0xf] %vm1907, %v3648
    %v3660 = vcombine.low %v3649, %v3650
    %s3662 = scalar_lea.vmem [#allocation6], 12
    %3663 = vst [vmem:[%s3662] sm:$0xff] %v3660
    %3664 = vst.msk [vmem:[%s3662 + $0x8] sm:$0xf] %vm1907, %v3651
    // Predicated region
    $region34: #{tpu_custom_call.1} parent=1 // pred_check
      _
    $region35: #{tpu_custom_call.1} parent=1 // pred_check_branch
      %3666 = sbr.rel (0) target = $region37
    $region36: #{tpu_custom_call.1} parent=1 // pred_region
      %s3668 = ssub.s32 384, 384
      %3669 = vsyncadd [#allocation5], %s3668
      %s3670 = sshll.u32 [#allocation6], 4
      %s3671 = int_to_ptr.vmem [resolvable:$true] %s3670
      %3676 = dma.vmem_to_hbm [thread:$0]  %s3671, 384, %s7, [#allocation5], 192, 192, 12
    $region37: #{tpu_custom_call.1} parent=1 // pred_fallthru
      _
    // Predicated region
    $region38: #{tpu_custom_call.1} parent=1 // pred_check
      _
    $region39: #{tpu_custom_call.1} parent=1 // pred_check_branch
      %3678 = sbr.rel (0) target = $region41
    $region40: #{tpu_custom_call.1} parent=1 // pred_region
      %3679 = dma.done [#allocation5], 384
    $region41: #{tpu_custom_call.1} parent=1 // pred_fallthru
      _
    %3680 = vsyncpa [#allocation4], 1
    %3681 = vsyncpa [#allocation5], 1

</llo_original>
